<compile_context>
chip_gen: v7x
topology: tpu7x:2x2x1
jax: 0.10.0
libtpu: 0.0.40
codegen_flags: <defaults>
</compile_context>

<pallas_src>
import functools

import jax
import jax.numpy as jnp
from jax.experimental import pallas as pl
from jax.experimental.pallas import tpu as pltpu

EPS = 1e-5
LANE = 128


def _rup(c, m=LANE):
    return max(m, ((c + m - 1) // m) * m)


# ----------------------------------------------------------------------------
# Fused bottleneck kernel (one grid step == B_blk images, everything in VMEM)
# ----------------------------------------------------------------------------
def _bottleneck_kernel(*refs, id_is_conv, B_blk, H1, W1, W1p):
    if id_is_conv:
        (x_ref, w1_ref, w2_ref, w3_ref, wid_ref,
         s1, b1, s2, b2, s3, b3, sid, bid, o_ref, y1w_ref) = refs
    else:
        (x_ref, w1_ref, w2_ref, w3_ref,
         s1, b1, s2, b2, s3, b3, o_ref, y1w_ref) = refs
        wid_ref = sid = bid = None

    f32, bf16 = jnp.float32, jnp.bfloat16
    M1p = H1 * W1p
    BM = B_blk * M1p
    BH = B_blk * H1
    Ch_p = w3_ref.shape[0]
    Cup_p = w3_ref.shape[1]

    x = x_ref[...]                                   # (B_blk, M1p, Cin_p)
    xr = x.reshape(BM, x.shape[-1])
    xmx = xr.astype(bf16)                            # no-op when already bf16

    # ---- weight_layer1: 1x1 conv (stride folded into input prep) + BN + ReLU
    y1 = jnp.dot(xmx, w1_ref[...], preferred_element_type=f32)
    y1 = jnp.maximum(y1 * s1[...] + b1[...], 0.0)    # (BM, Ch_p) f32
    y1 = y1.reshape(BH, W1p, Ch_p)                   # free: W1p % 8 == 0

    # Build the three W-shifted copies of y1 once (XLU rolls on f32) instead of
    # six sublane-unaligned tap slices + per-tap casts.
    colw = jax.lax.broadcasted_iota(jnp.int32, (BH, W1p, Ch_p), 1)
    if W1p > W1:
        # Zero the padded W columns so the circular rolls wrap zeros in
        # (conv zero-padding), then no per-tap edge mask is needed.
        y1 = jnp.where(colw < W1, y1, 0.0)
        t_left = pltpu.roll(y1, 1, 1)                # kx=0 tap: y1[w-1]
        t_right = pltpu.roll(y1, W1p - 1, 1)         # kx=2 tap: y1[w+1]
    else:
        t_left = jnp.where(colw > 0, pltpu.roll(y1, 1, 1), 0.0)
        t_right = jnp.where(colw < W1 - 1, pltpu.roll(y1, W1p - 1, 1), 0.0)

    def _to4(v):                                     # (BH,W1p,C) -> (B,H1,W1p,C)
        return v.astype(bf16).reshape(B_blk, H1, W1p, Ch_p)

    # Haloed bf16 scratch, lane-packed as [kx=0 | kx=1 | kx=2].  Only the two
    # 1-row halos are zeroed, and every step: under a 'parallel' grid each
    # TensorCore owns its own scratch, so a program_id==0-only zero is wrong.
    zrow = jnp.zeros((B_blk, 1, W1p, 3 * Ch_p), bf16)
    y1w_ref[:, 0:1, :, :] = zrow
    y1w_ref[:, H1 + 1:H1 + 2, :, :] = zrow
    y1w_ref[:, 1:H1 + 1, :, 0 * Ch_p:1 * Ch_p] = _to4(t_left)
    y1w_ref[:, 1:H1 + 1, :, 1 * Ch_p:2 * Ch_p] = _to4(y1)
    y1w_ref[:, 1:H1 + 1, :, 2 * Ch_p:3 * Ch_p] = _to4(t_right)

    # ---- weight_layer2: 3x3 conv (pad=1) = 3 MXU matmuls with K = 3*Ch_p ----
    acc2 = None
    for ky in range(3):                              # outer-dim slices: aligned
        lhs = y1w_ref[:, ky:ky + H1, :, :].reshape(BM, 3 * Ch_p)
        part = jnp.dot(lhs, w2_ref[ky], preferred_element_type=f32)
        acc2 = part if acc2 is None else acc2 + part
    y2 = jnp.maximum(acc2 * s2[...] + b2[...], 0.0).astype(bf16)

    # ---- weight_layer3: 1x1 conv + BN ---------------------------------------
    y3 = jnp.dot(y2, w3_ref[...], preferred_element_type=f32) * s3[...] + b3[...]

    # ---- identity branch (downsample / up_scale conv, or f32 pass-through) --
    if id_is_conv:
        ident = (jnp.dot(xmx, wid_ref[...], preferred_element_type=f32)
                 * sid[...] + bid[...])
    else:
        ident = xr.astype(f32)                       # x was DMA'd as f32 here

    out = jnp.maximum(y3 + ident, 0.0)               # residual add + final ReLU
    o_ref[...] = out.reshape(B_blk, M1p, Cup_p).astype(o_ref.dtype)


# ----------------------------------------------------------------------------
# Parameter folding / layout helpers (all fuse into a single XLA prep)
# ----------------------------------------------------------------------------
def _pad_mat(w, r, c):
    return jnp.zeros((r, c), w.dtype).at[: w.shape[0], : w.shape[1]].set(w)


def _fold_bn_padded(bn, cp):
    gamma, beta, rmean, rvar = bn
    scale = gamma / jnp.sqrt(rvar + EPS)
    bias = beta - rmean * scale
    c = scale.shape[0]
    sp = jnp.zeros((1, cp), jnp.float32).at[0, :c].set(scale)
    bp = jnp.zeros((1, cp), jnp.float32).at[0, :c].set(bias)
    return sp, bp


def _w1x1(w_oihw, rp, cp):
    # (Cout, Cin, 1, 1) -> (Cin, Cout), zero-pad to (rp, cp), bf16.
    return _pad_mat(jnp.transpose(w_oihw[:, :, 0, 0], (1, 0)), rp, cp).astype(jnp.bfloat16)


def _w3x3_packed(w_oihw, chp):
    # (Cout, Cin, 3, 3) -> (ky, kx, Cin, Cout) -> (3, 3*Ch_p, Ch_p), bf16.
    # Row index within the ky block is kx*Ch_p + cin, matching the lane packing
    # of the kernel's y1w scratch.
    cout, cin = w_oihw.shape[0], w_oihw.shape[1]
    w = jnp.transpose(w_oihw, (2, 3, 1, 0))
    out = jnp.zeros((3, 3, chp, chp), jnp.float32).at[:, :, :cin, :cout].set(w)
    return out.reshape(3, 3 * chp, chp).astype(jnp.bfloat16)


# ----------------------------------------------------------------------------
# Parameter construction (deterministic, synthetic)
# ----------------------------------------------------------------------------
def make_params(key, in_channels, hidden_channels, up_channels, downsample):
    ks = jax.random.split(key, 16)
    i = iter(range(16))

    def conv(k, cout, cin, kh, kw):
        return 0.1 * jax.random.normal(k, (cout, cin, kh, kw), jnp.float32)

    def bn(k, c):
        k1, k2, k3, k4 = jax.random.split(k, 4)
        gamma = 0.5 + jax.random.uniform(k1, (c,), jnp.float32)
        beta = 0.1 * jax.random.normal(k2, (c,), jnp.float32)
        rmean = 0.1 * jax.random.normal(k3, (c,), jnp.float32)
        rvar = 0.5 + jax.random.uniform(k4, (c,), jnp.float32)
        return gamma, beta, rmean, rvar

    p = {
        "w1": conv(ks[next(i)], hidden_channels, in_channels, 1, 1),
        "bn1": bn(ks[next(i)], hidden_channels),
        "w2": conv(ks[next(i)], hidden_channels, hidden_channels, 3, 3),
        "bn2": bn(ks[next(i)], hidden_channels),
        "w3": conv(ks[next(i)], up_channels, hidden_channels, 1, 1),
        "bn3": bn(ks[next(i)], up_channels),
        "downsample": downsample,
    }
    if downsample:
        p["w_ds"] = conv(ks[next(i)], up_channels, in_channels, 1, 1)
        p["bn_ds"] = bn(ks[next(i)], up_channels)
    elif in_channels != up_channels:
        p["w_up"] = conv(ks[next(i)], up_channels, in_channels, 1, 1)
        p["bn_up"] = bn(ks[next(i)], up_channels)
    return p


# ----------------------------------------------------------------------------
# Forward pass (Pallas-backed)
# ----------------------------------------------------------------------------
def encoder_bottleneck_forward(x_nchw, params):
    """x_nchw: (N, Cin, H, W) float32 -> (N, Cup, H', W') float32."""
    N, Cin, H, W = x_nchw.shape
    downsample = params["downsample"]
    stride = 2 if downsample else 1
    Ch = params["w1"].shape[0]
    Cup = params["w3"].shape[0]
    Cin_p, Ch_p, Cup_p = _rup(Cin), _rup(Ch), _rup(Cup)
    H1, W1 = H // stride, W // stride
    W1p = ((W1 + 7) // 8) * 8       # sublane-aligned W -> free in-kernel reshapes
    M1p = H1 * W1p

    if downsample:
        wid_oihw, bn_id, id_is_conv = params["w_ds"], params["bn_ds"], True
    elif "w_up" in params:
        wid_oihw, bn_id, id_is_conv = params["w_up"], params["bn_up"], True
    else:
        # Guard on *unpadded* channel counts (review correctness concern).
        assert Cin == Cup, "pass-through identity requires in_channels == up_channels"
        wid_oihw = bn_id = None
        id_is_conv = False

    # Image blocking: enough matmul rows per grid step to fill the MXU
    # (>= 256 rows on v6e/v7x), capped so the per-step working set stays small.
    per_img_bytes = M1p * (2 * Cin_p * (2 if id_is_conv else 4)
                           + 4 * Cup_p + 32 * Ch_p)
    want = max(1, -(-256 // M1p))
    want = min(want, max(1, (24 << 20) // max(per_img_bytes, 1)))
    B_blk = 1
    for d in range(1, N + 1):
        if N % d == 0 and d <= want:
            B_blk = d

    # Input prep (one XLA fusion): NCHW->NHWC, stride-2 pixel select, zero-pad
    # W -> W1p and channels -> Cin_p, flatten spatial.  bf16 when the identity
    # branch is a conv; f32 for the pass-through identity so the residual add
    # keeps full precision.
    in_dtype = jnp.bfloat16 if id_is_conv else jnp.float32
    x_nhwc = jnp.transpose(x_nchw, (0, 2, 3, 1))
    if stride == 2:
        x_nhwc = x_nhwc[:, ::2, ::2, :]
    xp = jnp.zeros((N, H1, W1p, Cin_p), in_dtype)
    xp = xp.at[:, :, :W1, :Cin].set(x_nhwc.astype(in_dtype))
    xp = xp.reshape(N, M1p, Cin_p)

    w1 = _w1x1(params["w1"], Cin_p, Ch_p)
    w2 = _w3x3_packed(params["w2"], Ch_p)
    w3 = _w1x1(params["w3"], Ch_p, Cup_p)
    s1, b1 = _fold_bn_padded(params["bn1"], Ch_p)
    s2, b2 = _fold_bn_padded(params["bn2"], Ch_p)
    s3, b3 = _fold_bn_padded(params["bn3"], Cup_p)

    args = [xp, w1, w2, w3]
    if id_is_conv:
        wid = _w1x1(wid_oihw, Cin_p, Cup_p)
        sid, bid = _fold_bn_padded(bn_id, Cup_p)
        args.append(wid)
    args += [s1, b1, s2, b2, s3, b3]
    if id_is_conv:
        args += [sid, bid]

    flops = 2 * N * M1p * (Cin_p * Ch_p + 9 * Ch_p * Ch_p + Ch_p * Cup_p
                           + (Cin_p * Cup_p if id_is_conv else 0))
    bytes_acc = sum(int(a.size) * a.dtype.itemsize for a in args) \
        + N * M1p * Cup_p * 2

    kern = functools.partial(_bottleneck_kernel, id_is_conv=id_is_conv,
                             B_blk=B_blk, H1=H1, W1=W1, W1p=W1p)

    def _build(single_buffer_resident):
        res_kw = {}
        if single_buffer_resident:
            # Resident operands (constant index_map) don't need double buffers;
            # halves their VMEM footprint (matters for v7x's 64 MiB budget).
            res_kw = dict(pipeline_mode=pl.Buffered(1))
        in_specs = [
            pl.BlockSpec((B_blk, M1p, Cin_p), lambda n: (n, 0, 0)),
            pl.BlockSpec((Cin_p, Ch_p), lambda n: (0, 0), **res_kw),
            pl.BlockSpec((3, 3 * Ch_p, Ch_p), lambda n: (0, 0, 0), **res_kw),
            pl.BlockSpec((Ch_p, Cup_p), lambda n: (0, 0), **res_kw),
        ]
        if id_is_conv:
            in_specs.append(pl.BlockSpec((Cin_p, Cup_p), lambda n: (0, 0), **res_kw))
        sb_dims = [Ch_p, Ch_p, Ch_p, Ch_p, Cup_p, Cup_p]
        if id_is_conv:
            sb_dims += [Cup_p, Cup_p]
        in_specs += [pl.BlockSpec((1, c), lambda n: (0, 0), **res_kw)
                     for c in sb_dims]
        return pl.pallas_call(
            kern,
            out_shape=jax.ShapeDtypeStruct((N, M1p, Cup_p), jnp.bfloat16),
            grid_spec=pltpu.PrefetchScalarGridSpec(
                num_scalar_prefetch=0,
                grid=(N // B_blk,),
                in_specs=in_specs,
                out_specs=pl.BlockSpec((B_blk, M1p, Cup_p), lambda n: (n, 0, 0)),
                scratch_shapes=[
                    pltpu.VMEM((B_blk, H1 + 2, W1p, 3 * Ch_p), jnp.bfloat16)],
            ),
            compiler_params=pltpu.CompilerParams(
                dimension_semantics=("parallel",),
                vmem_limit_bytes=64 * 1024 * 1024,
            ),
            cost_estimate=pl.CostEstimate(
                flops=int(flops), transcendentals=0,
                bytes_accessed=int(bytes_acc)),
        )

    use_single = hasattr(pl, "Buffered")
    try:
        out_p = _build(use_single)(*args)
    except Exception:
        if not use_single:
            raise
        out_p = _build(False)(*args)     # fallback: default double buffering

    # Drop W / channel padding, cast back to f32 in XLA, return NCHW.
    out = out_p.reshape(N, H1, W1p, Cup_p)[:, :, :W1, :Cup].astype(jnp.float32)
    return jnp.transpose(out, (0, 3, 1, 2))


# ----------------------------------------------------------------------------
# Pure-JAX reference (for correctness check)
# ----------------------------------------------------------------------------
def _ref_conv(x, w, stride, padding):
    return jax.lax.conv_general_dilated(
        x, w, (stride, stride), padding,
        dimension_numbers=("NCHW", "OIHW", "NCHW"))


def _ref_bn(x, bn):
    gamma, beta, rmean, rvar = bn
    inv = gamma / jnp.sqrt(rvar + EPS)
    return (x - rmean[None, :, None, None]) * inv[None, :, None, None] \
        + beta[None, :, None, None]


def reference_forward(x, p):
    stride1 = 2 if p["downsample"] else 1
    y = jax.nn.relu(_ref_bn(_ref_conv(x, p["w1"], stride1, "VALID"), p["bn1"]))
    y = jax.nn.relu(_ref_bn(_ref_conv(y, p["w2"], 1, [(1, 1), (1, 1)]), p["bn2"]))
    y = _ref_bn(_ref_conv(y, p["w3"], 1, "VALID"), p["bn3"])
    if p["downsample"]:
        identity = _ref_bn(_ref_conv(x, p["w_ds"], 2, "VALID"), p["bn_ds"])
    elif "w_up" in p:
        identity = _ref_bn(_ref_conv(x, p["w_up"], 1, "VALID"), p["bn_up"])
    else:
        identity = x
    return jax.nn.relu(y + identity)


# ----------------------------------------------------------------------------
if __name__ == "__main__":
    key = jax.random.PRNGKey(0)
    k_x, k_p, k_p2 = jax.random.split(key, 3)

    # Config 1: downsample=True (stride-2 conv identity). batch=2, in=4,
    # hidden=8, up=16, spatial 16x16 -> output 8x8.  B_blk=2 images/step.
    N, Cin, H, W = 2, 4, 16, 16
    hidden, up = 8, 16
    x = jax.random.normal(k_x, (N, Cin, H, W), jnp.float32)
    params = make_params(k_p, Cin, hidden, up, downsample=True)

    out = jax.block_until_ready(encoder_bottleneck_forward(x, params))
    ref = jax.block_until_ready(reference_forward(x, params))
    assert out.shape == ref.shape == (N, up, H // 2, W // 2), (out.shape, ref.shape)
    err = float(jnp.max(jnp.abs(out - ref)))
    assert err < 7.5e-2, err   # bf16 MXU inputs + bf16 output, f32 accumulation

    # Config 2: identity pass-through branch (in == up, no downsample);
    # f32 input copy keeps the residual add exact.
    params2 = make_params(k_p2, up, hidden, up, downsample=False)
    x2 = jax.random.normal(k_x, (N, up, H, W), jnp.float32)
    out2 = jax.block_until_ready(encoder_bottleneck_forward(x2, params2))
    ref2 = jax.block_until_ready(reference_forward(x2, params2))
    assert out2.shape == ref2.shape == (N, up, H, W), (out2.shape, ref2.shape)
    err2 = float(jnp.max(jnp.abs(out2 - ref2)))
    assert err2 < 7.5e-2, err2

    print("KERNEL_OK")
</pallas_src>

<mosaic_0001>
module attributes {stable_mosaic.version = 11 : i64} {
  func.func @_bottleneck_kernel(%arg0: i32, %arg1: memref<2x64x128xbf16, #tpu.memory_space<vmem>>, %arg2: memref<128x128xbf16, #tpu.memory_space<vmem>>, %arg3: memref<3x384x128xbf16, #tpu.memory_space<vmem>>, %arg4: memref<128x128xbf16, #tpu.memory_space<vmem>>, %arg5: memref<128x128xbf16, #tpu.memory_space<vmem>>, %arg6: memref<1x128xf32, #tpu.memory_space<vmem>>, %arg7: memref<1x128xf32, #tpu.memory_space<vmem>>, %arg8: memref<1x128xf32, #tpu.memory_space<vmem>>, %arg9: memref<1x128xf32, #tpu.memory_space<vmem>>, %arg10: memref<1x128xf32, #tpu.memory_space<vmem>>, %arg11: memref<1x128xf32, #tpu.memory_space<vmem>>, %arg12: memref<1x128xf32, #tpu.memory_space<vmem>>, %arg13: memref<1x128xf32, #tpu.memory_space<vmem>>, %arg14: memref<2x64x128xbf16, #tpu.memory_space<vmem>>, %arg15: memref<2x10x8x384xbf16, #tpu.memory_space<vmem>>) attributes {dimension_semantics = [#tpu.dimension_semantics<parallel>], iteration_bounds = array<i64: 1>, scalar_prefetch = 0 : i64, scratch_operands = 1 : i64, tpu.core_type = #tpu.core_type<tc>, window_params = [{transform_indices = @transform_0, window_bounds = array<i64: 2, 64, 128>}, {pipeline_mode = #tpu.pipeline_mode<synchronous>, transform_indices = @transform_1, window_bounds = array<i64: 128, 128>}, {pipeline_mode = #tpu.pipeline_mode<synchronous>, transform_indices = @transform_2, window_bounds = array<i64: 3, 384, 128>}, {pipeline_mode = #tpu.pipeline_mode<synchronous>, transform_indices = @transform_3, window_bounds = array<i64: 128, 128>}, {pipeline_mode = #tpu.pipeline_mode<synchronous>, transform_indices = @transform_4, window_bounds = array<i64: 128, 128>}, {pipeline_mode = #tpu.pipeline_mode<synchronous>, transform_indices = @transform_5, window_bounds = array<i64: 1, 128>}, {pipeline_mode = #tpu.pipeline_mode<synchronous>, transform_indices = @transform_6, window_bounds = array<i64: 1, 128>}, {pipeline_mode = #tpu.pipeline_mode<synchronous>, transform_indices = @transform_7, window_bounds = array<i64: 1, 128>}, {pipeline_mode = #tpu.pipeline_mode<synchronous>, transform_indices = @transform_8, window_bounds = array<i64: 1, 128>}, {pipeline_mode = #tpu.pipeline_mode<synchronous>, transform_indices = @transform_9, window_bounds = array<i64: 1, 128>}, {pipeline_mode = #tpu.pipeline_mode<synchronous>, transform_indices = @transform_10, window_bounds = array<i64: 1, 128>}, {pipeline_mode = #tpu.pipeline_mode<synchronous>, transform_indices = @transform_11, window_bounds = array<i64: 1, 128>}, {pipeline_mode = #tpu.pipeline_mode<synchronous>, transform_indices = @transform_12, window_bounds = array<i64: 1, 128>}, {transform_indices = @transform_13, window_bounds = array<i64: 2, 64, 128>}]} {
    %c0 = arith.constant 0 : index
    %c0_0 = arith.constant 0 : index
    %c0_1 = arith.constant 0 : index
    %0 = vector.load %arg1[%c0, %c0_0, %c0_1] : memref<2x64x128xbf16, #tpu.memory_space<vmem>>, vector<2x64x128xbf16>
    %1 = vector.shape_cast %0 : vector<2x64x128xbf16> to vector<128x128xbf16>
    %c0_2 = arith.constant 0 : index
    %c0_3 = arith.constant 0 : index
    %2 = vector.load %arg2[%c0_2, %c0_3] : memref<128x128xbf16, #tpu.memory_space<vmem>>, vector<128x128xbf16>
    %cst = arith.constant dense<0.000000e+00> : vector<128x128xf32>
    %3 = tpu.matmul %1, %2, %cst {dimension_numbers = #tpu.dot_dimension_numbers<[1], [0], [0], [1], [0, 0, 1, 1], [], []>} : vector<128x128xbf16>, vector<128x128xbf16>, vector<128x128xf32> -> vector<128x128xf32>
    %c0_4 = arith.constant 0 : index
    %c0_5 = arith.constant 0 : index
    %4 = vector.load %arg6[%c0_4, %c0_5] : memref<1x128xf32, #tpu.memory_space<vmem>>, vector<1x128xf32>
    %5 = vector.broadcast %4 : vector<1x128xf32> to vector<128x128xf32>
    %6 = arith.mulf %3, %5 : vector<128x128xf32>
    %c0_6 = arith.constant 0 : index
    %c0_7 = arith.constant 0 : index
    %7 = vector.load %arg7[%c0_6, %c0_7] : memref<1x128xf32, #tpu.memory_space<vmem>>, vector<1x128xf32>
    %8 = vector.broadcast %7 : vector<1x128xf32> to vector<128x128xf32>
    %9 = arith.addf %6, %8 : vector<128x128xf32>
    %cst_8 = arith.constant 0.000000e+00 : f32
    %10 = vector.broadcast %cst_8 : f32 to vector<128x128xf32>
    %11 = arith.maximumf %9, %10 : vector<128x128xf32>
    %12 = vector.shape_cast %11 : vector<128x128xf32> to vector<16x8x128xf32>
    %13 = tpu.iota {dimensions = array<i32: 1>} : vector<16x8x128xi32>
    %c0_i32 = arith.constant 0 : i32
    %14 = vector.broadcast %c0_i32 : i32 to vector<16x8x128xi32>
    %15 = arith.cmpi sgt, %13, %14 : vector<16x8x128xi32>
    %c1_i32 = arith.constant 1 : i32
    %16 = tpu.dynamic_rotate %12 by %c1_i32 dim 1 : vector<16x8x128xf32>, i32 -> vector<16x8x128xf32>
    %cst_9 = arith.constant 0.000000e+00 : f32
    %17 = vector.broadcast %cst_9 : f32 to vector<16x8x128xf32>
    %18 = arith.select %15, %16, %17 : vector<16x8x128xi1>, vector<16x8x128xf32>
    %c7_i32 = arith.constant 7 : i32
    %19 = vector.broadcast %c7_i32 : i32 to vector<16x8x128xi32>
    %20 = arith.cmpi slt, %13, %19 : vector<16x8x128xi32>
    %c7_i32_10 = arith.constant 7 : i32
    %21 = tpu.dynamic_rotate %12 by %c7_i32_10 dim 1 : vector<16x8x128xf32>, i32 -> vector<16x8x128xf32>
    %cst_11 = arith.constant 0.000000e+00 : f32
    %22 = vector.broadcast %cst_11 : f32 to vector<16x8x128xf32>
    %23 = arith.select %20, %21, %22 : vector<16x8x128xi1>, vector<16x8x128xf32>
    %cst_12 = arith.constant 0.000000e+00 : bf16
    %24 = vector.broadcast %cst_12 : bf16 to vector<2x1x8x384xbf16>
    %c0_13 = arith.constant 0 : index
    %c0_14 = arith.constant 0 : index
    %c0_15 = arith.constant 0 : index
    %c0_16 = arith.constant 0 : index
    %25 = vector.load %arg15[%c0_13, %c0_14, %c0_15, %c0_16] : memref<2x10x8x384xbf16, #tpu.memory_space<vmem>>, vector<2x1x8x384xbf16>
    tpu.vector_store %arg15[%c0_13, %c0_14, %c0_15, %c0_16], %24 {strides = array<i32>} : memref<2x10x8x384xbf16, #tpu.memory_space<vmem>>, vector<2x1x8x384xbf16>,
    %c0_17 = arith.constant 0 : index
    %c9 = arith.constant 9 : index
    %c0_18 = arith.constant 0 : index
    %c0_19 = arith.constant 0 : index
    %26 = vector.load %arg15[%c0_17, %c9, %c0_18, %c0_19] : memref<2x10x8x384xbf16, #tpu.memory_space<vmem>>, vector<2x1x8x384xbf16>
    tpu.vector_store %arg15[%c0_17, %c9, %c0_18, %c0_19], %24 {strides = array<i32>} : memref<2x10x8x384xbf16, #tpu.memory_space<vmem>>, vector<2x1x8x384xbf16>,
    %27 = arith.truncf %18 : vector<16x8x128xf32> to vector<16x8x128xbf16>
    %28 = vector.shape_cast %27 : vector<16x8x128xbf16> to vector<2x8x8x128xbf16>
    %c0_20 = arith.constant 0 : index
    %c1 = arith.constant 1 : index
    %c0_21 = arith.constant 0 : index
    %c0_22 = arith.constant 0 : index
    %29 = vector.load %arg15[%c0_20, %c1, %c0_21, %c0_22] : memref<2x10x8x384xbf16, #tpu.memory_space<vmem>>, vector<2x8x8x128xbf16>
    tpu.vector_store %arg15[%c0_20, %c1, %c0_21, %c0_22], %28 {strides = array<i32>} : memref<2x10x8x384xbf16, #tpu.memory_space<vmem>>, vector<2x8x8x128xbf16>,
    %30 = arith.truncf %12 : vector<16x8x128xf32> to vector<16x8x128xbf16>
    %31 = vector.shape_cast %30 : vector<16x8x128xbf16> to vector<2x8x8x128xbf16>
    %c0_23 = arith.constant 0 : index
    %c1_24 = arith.constant 1 : index
    %c0_25 = arith.constant 0 : index
    %c128 = arith.constant 128 : index
    %32 = vector.load %arg15[%c0_23, %c1_24, %c0_25, %c128] : memref<2x10x8x384xbf16, #tpu.memory_space<vmem>>, vector<2x8x8x128xbf16>
    tpu.vector_store %arg15[%c0_23, %c1_24, %c0_25, %c128], %31 {strides = array<i32>} : memref<2x10x8x384xbf16, #tpu.memory_space<vmem>>, vector<2x8x8x128xbf16>,
    %33 = arith.truncf %23 : vector<16x8x128xf32> to vector<16x8x128xbf16>
    %34 = vector.shape_cast %33 : vector<16x8x128xbf16> to vector<2x8x8x128xbf16>
    %c0_26 = arith.constant 0 : index
    %c1_27 = arith.constant 1 : index
    %c0_28 = arith.constant 0 : index
    %c256 = arith.constant 256 : index
    %35 = vector.load %arg15[%c0_26, %c1_27, %c0_28, %c256] : memref<2x10x8x384xbf16, #tpu.memory_space<vmem>>, vector<2x8x8x128xbf16>
    tpu.vector_store %arg15[%c0_26, %c1_27, %c0_28, %c256], %34 {strides = array<i32>} : memref<2x10x8x384xbf16, #tpu.memory_space<vmem>>, vector<2x8x8x128xbf16>,
    %c0_29 = arith.constant 0 : index
    %c0_30 = arith.constant 0 : index
    %c0_31 = arith.constant 0 : index
    %c0_32 = arith.constant 0 : index
    %36 = vector.load %arg15[%c0_29, %c0_30, %c0_31, %c0_32] : memref<2x10x8x384xbf16, #tpu.memory_space<vmem>>, vector<2x8x8x384xbf16>
    %37 = vector.shape_cast %36 : vector<2x8x8x384xbf16> to vector<128x384xbf16>
    %c0_33 = arith.constant 0 : index
    %c0_34 = arith.constant 0 : index
    %c0_35 = arith.constant 0 : index
    %38 = vector.load %arg3[%c0_33, %c0_34, %c0_35] : memref<3x384x128xbf16, #tpu.memory_space<vmem>>, vector<1x384x128xbf16>
    %39 = vector.shape_cast %38 : vector<1x384x128xbf16> to vector<384x128xbf16>
    %cst_36 = arith.constant dense<0.000000e+00> : vector<128x128xf32>
    %40 = tpu.matmul %37, %39, %cst_36 {dimension_numbers = #tpu.dot_dimension_numbers<[1], [0], [0], [1], [0, 0, 1, 1], [], []>} : vector<128x384xbf16>, vector<384x128xbf16>, vector<128x128xf32> -> vector<128x128xf32>
    %c0_37 = arith.constant 0 : index
    %c1_38 = arith.constant 1 : index
    %c0_39 = arith.constant 0 : index
    %c0_40 = arith.constant 0 : index
    %41 = vector.load %arg15[%c0_37, %c1_38, %c0_39, %c0_40] : memref<2x10x8x384xbf16, #tpu.memory_space<vmem>>, vector<2x8x8x384xbf16>
    %42 = vector.shape_cast %41 : vector<2x8x8x384xbf16> to vector<128x384xbf16>
    %c1_41 = arith.constant 1 : index
    %c0_42 = arith.constant 0 : index
    %c0_43 = arith.constant 0 : index
    %43 = vector.load %arg3[%c1_41, %c0_42, %c0_43] : memref<3x384x128xbf16, #tpu.memory_space<vmem>>, vector<1x384x128xbf16>
    %44 = vector.shape_cast %43 : vector<1x384x128xbf16> to vector<384x128xbf16>
    %cst_44 = arith.constant dense<0.000000e+00> : vector<128x128xf32>
    %45 = tpu.matmul %42, %44, %cst_44 {dimension_numbers = #tpu.dot_dimension_numbers<[1], [0], [0], [1], [0, 0, 1, 1], [], []>} : vector<128x384xbf16>, vector<384x128xbf16>, vector<128x128xf32> -> vector<128x128xf32>
    %46 = arith.addf %40, %45 : vector<128x128xf32>
    %c0_45 = arith.constant 0 : index
    %c2 = arith.constant 2 : index
    %c0_46 = arith.constant 0 : index
    %c0_47 = arith.constant 0 : index
    %47 = vector.load %arg15[%c0_45, %c2, %c0_46, %c0_47] : memref<2x10x8x384xbf16, #tpu.memory_space<vmem>>, vector<2x8x8x384xbf16>
    %48 = vector.shape_cast %47 : vector<2x8x8x384xbf16> to vector<128x384xbf16>
    %c2_48 = arith.constant 2 : index
    %c0_49 = arith.constant 0 : index
    %c0_50 = arith.constant 0 : index
    %49 = vector.load %arg3[%c2_48, %c0_49, %c0_50] : memref<3x384x128xbf16, #tpu.memory_space<vmem>>, vector<1x384x128xbf16>
    %50 = vector.shape_cast %49 : vector<1x384x128xbf16> to vector<384x128xbf16>
    %cst_51 = arith.constant dense<0.000000e+00> : vector<128x128xf32>
    %51 = tpu.matmul %48, %50, %cst_51 {dimension_numbers = #tpu.dot_dimension_numbers<[1], [0], [0], [1], [0, 0, 1, 1], [], []>} : vector<128x384xbf16>, vector<384x128xbf16>, vector<128x128xf32> -> vector<128x128xf32>
    %52 = arith.addf %46, %51 : vector<128x128xf32>
    %c0_52 = arith.constant 0 : index
    %c0_53 = arith.constant 0 : index
    %53 = vector.load %arg8[%c0_52, %c0_53] : memref<1x128xf32, #tpu.memory_space<vmem>>, vector<1x128xf32>
    %54 = vector.broadcast %53 : vector<1x128xf32> to vector<128x128xf32>
    %55 = arith.mulf %52, %54 : vector<128x128xf32>
    %c0_54 = arith.constant 0 : index
    %c0_55 = arith.constant 0 : index
    %56 = vector.load %arg9[%c0_54, %c0_55] : memref<1x128xf32, #tpu.memory_space<vmem>>, vector<1x128xf32>
    %57 = vector.broadcast %56 : vector<1x128xf32> to vector<128x128xf32>
    %58 = arith.addf %55, %57 : vector<128x128xf32>
    %cst_56 = arith.constant 0.000000e+00 : f32
    %59 = vector.broadcast %cst_56 : f32 to vector<128x128xf32>
    %60 = arith.maximumf %58, %59 : vector<128x128xf32>
    %61 = arith.truncf %60 : vector<128x128xf32> to vector<128x128xbf16>
    %c0_57 = arith.constant 0 : index
    %c0_58 = arith.constant 0 : index
    %62 = vector.load %arg4[%c0_57, %c0_58] : memref<128x128xbf16, #tpu.memory_space<vmem>>, vector<128x128xbf16>
    %cst_59 = arith.constant dense<0.000000e+00> : vector<128x128xf32>
    %63 = tpu.matmul %61, %62, %cst_59 {dimension_numbers = #tpu.dot_dimension_numbers<[1], [0], [0], [1], [0, 0, 1, 1], [], []>} : vector<128x128xbf16>, vector<128x128xbf16>, vector<128x128xf32> -> vector<128x128xf32>
    %c0_60 = arith.constant 0 : index
    %c0_61 = arith.constant 0 : index
    %64 = vector.load %arg10[%c0_60, %c0_61] : memref<1x128xf32, #tpu.memory_space<vmem>>, vector<1x128xf32>
    %65 = vector.broadcast %64 : vector<1x128xf32> to vector<128x128xf32>
    %66 = arith.mulf %63, %65 : vector<128x128xf32>
    %c0_62 = arith.constant 0 : index
    %c0_63 = arith.constant 0 : index
    %67 = vector.load %arg11[%c0_62, %c0_63] : memref<1x128xf32, #tpu.memory_space<vmem>>, vector<1x128xf32>
    %68 = vector.broadcast %67 : vector<1x128xf32> to vector<128x128xf32>
    %69 = arith.addf %66, %68 : vector<128x128xf32>
    %c0_64 = arith.constant 0 : index
    %c0_65 = arith.constant 0 : index
    %70 = vector.load %arg5[%c0_64, %c0_65] : memref<128x128xbf16, #tpu.memory_space<vmem>>, vector<128x128xbf16>
    %cst_66 = arith.constant dense<0.000000e+00> : vector<128x128xf32>
    %71 = tpu.matmul %1, %70, %cst_66 {dimension_numbers = #tpu.dot_dimension_numbers<[1], [0], [0], [1], [0, 0, 1, 1], [], []>} : vector<128x128xbf16>, vector<128x128xbf16>, vector<128x128xf32> -> vector<128x128xf32>
    %c0_67 = arith.constant 0 : index
    %c0_68 = arith.constant 0 : index
    %72 = vector.load %arg12[%c0_67, %c0_68] : memref<1x128xf32, #tpu.memory_space<vmem>>, vector<1x128xf32>
    %73 = vector.broadcast %72 : vector<1x128xf32> to vector<128x128xf32>
    %74 = arith.mulf %71, %73 : vector<128x128xf32>
    %c0_69 = arith.constant 0 : index
    %c0_70 = arith.constant 0 : index
    %75 = vector.load %arg13[%c0_69, %c0_70] : memref<1x128xf32, #tpu.memory_space<vmem>>, vector<1x128xf32>
    %76 = vector.broadcast %75 : vector<1x128xf32> to vector<128x128xf32>
    %77 = arith.addf %74, %76 : vector<128x128xf32>
    %78 = arith.addf %69, %77 : vector<128x128xf32>
    %cst_71 = arith.constant 0.000000e+00 : f32
    %79 = vector.broadcast %cst_71 : f32 to vector<128x128xf32>
    %80 = arith.maximumf %78, %79 : vector<128x128xf32>
    %81 = vector.shape_cast %80 : vector<128x128xf32> to vector<2x64x128xf32>
    %82 = arith.truncf %81 : vector<2x64x128xf32> to vector<2x64x128xbf16>
    %c0_72 = arith.constant 0 : index
    %c0_73 = arith.constant 0 : index
    %c0_74 = arith.constant 0 : index
    %83 = vector.load %arg14[%c0_72, %c0_73, %c0_74] : memref<2x64x128xbf16, #tpu.memory_space<vmem>>, vector<2x64x128xbf16>
    tpu.vector_store %arg14[%c0_72, %c0_73, %c0_74], %82 {strides = array<i32>} : memref<2x64x128xbf16, #tpu.memory_space<vmem>>, vector<2x64x128xbf16>,
    return
  }
  func.func @transform_0(%arg0: i32) -> (i32, i32, i32) {
    %c0_i32 = arith.constant 0 : i32
    %c0_i32_0 = arith.constant 0 : i32
    %c0_i32_1 = arith.constant 0 : i32
    return %arg0, %c0_i32, %c0_i32_0 : i32, i32, i32
  }
  func.func @transform_1(%arg0: i32) -> (i32, i32) {
    %c0_i32 = arith.constant 0 : i32
    %c0_i32_0 = arith.constant 0 : i32
    %c0_i32_1 = arith.constant 0 : i32
    return %c0_i32, %c0_i32_0 : i32, i32
  }
  func.func @transform_2(%arg0: i32) -> (i32, i32, i32) {
    %c0_i32 = arith.constant 0 : i32
    %c0_i32_0 = arith.constant 0 : i32
    %c0_i32_1 = arith.constant 0 : i32
    %c0_i32_2 = arith.constant 0 : i32
    return %c0_i32, %c0_i32_0, %c0_i32_1 : i32, i32, i32
  }
  func.func @transform_3(%arg0: i32) -> (i32, i32) {
    %c0_i32 = arith.constant 0 : i32
    %c0_i32_0 = arith.constant 0 : i32
    %c0_i32_1 = arith.constant 0 : i32
    return %c0_i32, %c0_i32_0 : i32, i32
  }
  func.func @transform_4(%arg0: i32) -> (i32, i32) {
    %c0_i32 = arith.constant 0 : i32
    %c0_i32_0 = arith.constant 0 : i32
    %c0_i32_1 = arith.constant 0 : i32
    return %c0_i32, %c0_i32_0 : i32, i32
  }
  func.func @transform_5(%arg0: i32) -> (i32, i32) {
    %c0_i32 = arith.constant 0 : i32
    %c0_i32_0 = arith.constant 0 : i32
    %c0_i32_1 = arith.constant 0 : i32
    return %c0_i32, %c0_i32_0 : i32, i32
  }
  func.func @transform_6(%arg0: i32) -> (i32, i32) {
    %c0_i32 = arith.constant 0 : i32
    %c0_i32_0 = arith.constant 0 : i32
    %c0_i32_1 = arith.constant 0 : i32
    return %c0_i32, %c0_i32_0 : i32, i32
  }
  func.func @transform_7(%arg0: i32) -> (i32, i32) {
    %c0_i32 = arith.constant 0 : i32
    %c0_i32_0 = arith.constant 0 : i32
    %c0_i32_1 = arith.constant 0 : i32
    return %c0_i32, %c0_i32_0 : i32, i32
  }
  func.func @transform_8(%arg0: i32) -> (i32, i32) {
    %c0_i32 = arith.constant 0 : i32
    %c0_i32_0 = arith.constant 0 : i32
    %c0_i32_1 = arith.constant 0 : i32
    return %c0_i32, %c0_i32_0 : i32, i32
  }
  func.func @transform_9(%arg0: i32) -> (i32, i32) {
    %c0_i32 = arith.constant 0 : i32
    %c0_i32_0 = arith.constant 0 : i32
    %c0_i32_1 = arith.constant 0 : i32
    return %c0_i32, %c0_i32_0 : i32, i32
  }
  func.func @transform_10(%arg0: i32) -> (i32, i32) {
    %c0_i32 = arith.constant 0 : i32
    %c0_i32_0 = arith.constant 0 : i32
    %c0_i32_1 = arith.constant 0 : i32
    return %c0_i32, %c0_i32_0 : i32, i32
  }
  func.func @transform_11(%arg0: i32) -> (i32, i32) {
    %c0_i32 = arith.constant 0 : i32
    %c0_i32_0 = arith.constant 0 : i32
    %c0_i32_1 = arith.constant 0 : i32
    return %c0_i32, %c0_i32_0 : i32, i32
  }
  func.func @transform_12(%arg0: i32) -> (i32, i32) {
    %c0_i32 = arith.constant 0 : i32
    %c0_i32_0 = arith.constant 0 : i32
    %c0_i32_1 = arith.constant 0 : i32
    return %c0_i32, %c0_i32_0 : i32, i32
  }
  func.func @transform_13(%arg0: i32) -> (i32, i32, i32) {
    %c0_i32 = arith.constant 0 : i32
    %c0_i32_0 = arith.constant 0 : i32
    %c0_i32_1 = arith.constant 0 : i32
    return %arg0, %c0_i32, %c0_i32_0 : i32, i32, i32
  }
}

module attributes {stable_mosaic.version = 11 : i64} {
  func.func @_bottleneck_kernel(%arg0: i32, %arg1: memref<2x64x128xbf16, #tpu.memory_space<vmem>>, %arg2: memref<128x128xbf16, #tpu.memory_space<vmem>>, %arg3: memref<3x384x128xbf16, #tpu.memory_space<vmem>>, %arg4: memref<128x128xbf16, #tpu.memory_space<vmem>>, %arg5: memref<128x128xbf16, #tpu.memory_space<vmem>>, %arg6: memref<1x128xf32, #tpu.memory_space<vmem>>, %arg7: memref<1x128xf32, #tpu.memory_space<vmem>>, %arg8: memref<1x128xf32, #tpu.memory_space<vmem>>, %arg9: memref<1x128xf32, #tpu.memory_space<vmem>>, %arg10: memref<1x128xf32, #tpu.memory_space<vmem>>, %arg11: memref<1x128xf32, #tpu.memory_space<vmem>>, %arg12: memref<1x128xf32, #tpu.memory_space<vmem>>, %arg13: memref<1x128xf32, #tpu.memory_space<vmem>>, %arg14: memref<2x64x128xbf16, #tpu.memory_space<vmem>>, %arg15: memref<2x10x8x384xbf16, #tpu.memory_space<vmem>>) attributes {dimension_semantics = [#tpu.dimension_semantics<parallel>], iteration_bounds = array<i64: 1>, scalar_prefetch = 0 : i64, scratch_operands = 1 : i64, tpu.core_type = #tpu.core_type<tc>, window_params = [{transform_indices = @transform_0, window_bounds = array<i64: 2, 64, 128>}, {pipeline_mode = #tpu.pipeline_mode<synchronous>, transform_indices = @transform_1, window_bounds = array<i64: 128, 128>}, {pipeline_mode = #tpu.pipeline_mode<synchronous>, transform_indices = @transform_2, window_bounds = array<i64: 3, 384, 128>}, {pipeline_mode = #tpu.pipeline_mode<synchronous>, transform_indices = @transform_3, window_bounds = array<i64: 128, 128>}, {pipeline_mode = #tpu.pipeline_mode<synchronous>, transform_indices = @transform_4, window_bounds = array<i64: 128, 128>}, {pipeline_mode = #tpu.pipeline_mode<synchronous>, transform_indices = @transform_5, window_bounds = array<i64: 1, 128>}, {pipeline_mode = #tpu.pipeline_mode<synchronous>, transform_indices = @transform_6, window_bounds = array<i64: 1, 128>}, {pipeline_mode = #tpu.pipeline_mode<synchronous>, transform_indices = @transform_7, window_bounds = array<i64: 1, 128>}, {pipeline_mode = #tpu.pipeline_mode<synchronous>, transform_indices = @transform_8, window_bounds = array<i64: 1, 128>}, {pipeline_mode = #tpu.pipeline_mode<synchronous>, transform_indices = @transform_9, window_bounds = array<i64: 1, 128>}, {pipeline_mode = #tpu.pipeline_mode<synchronous>, transform_indices = @transform_10, window_bounds = array<i64: 1, 128>}, {pipeline_mode = #tpu.pipeline_mode<synchronous>, transform_indices = @transform_11, window_bounds = array<i64: 1, 128>}, {pipeline_mode = #tpu.pipeline_mode<synchronous>, transform_indices = @transform_12, window_bounds = array<i64: 1, 128>}, {transform_indices = @transform_13, window_bounds = array<i64: 2, 64, 128>}]} {
    %c0 = arith.constant 0 : index
    %c0_0 = arith.constant 0 : index
    %c0_1 = arith.constant 0 : index
    %0 = vector.load %arg1[%c0, %c0_0, %c0_1] : memref<2x64x128xbf16, #tpu.memory_space<vmem>>, vector<2x64x128xbf16>
    %1 = vector.shape_cast %0 : vector<2x64x128xbf16> to vector<128x128xbf16>
    %c0_2 = arith.constant 0 : index
    %c0_3 = arith.constant 0 : index
    %2 = vector.load %arg2[%c0_2, %c0_3] : memref<128x128xbf16, #tpu.memory_space<vmem>>, vector<128x128xbf16>
    %cst = arith.constant dense<0.000000e+00> : vector<128x128xf32>
    %3 = tpu.matmul %1, %2, %cst {dimension_numbers = #tpu.dot_dimension_numbers<[1], [0], [0], [1], [0, 0, 1, 1], [], []>} : vector<128x128xbf16>, vector<128x128xbf16>, vector<128x128xf32> -> vector<128x128xf32>
    %c0_4 = arith.constant 0 : index
    %c0_5 = arith.constant 0 : index
    %4 = vector.load %arg6[%c0_4, %c0_5] : memref<1x128xf32, #tpu.memory_space<vmem>>, vector<1x128xf32>
    %5 = vector.broadcast %4 : vector<1x128xf32> to vector<128x128xf32>
    %6 = arith.mulf %3, %5 : vector<128x128xf32>
    %c0_6 = arith.constant 0 : index
    %c0_7 = arith.constant 0 : index
    %7 = vector.load %arg7[%c0_6, %c0_7] : memref<1x128xf32, #tpu.memory_space<vmem>>, vector<1x128xf32>
    %8 = vector.broadcast %7 : vector<1x128xf32> to vector<128x128xf32>
    %9 = arith.addf %6, %8 : vector<128x128xf32>
    %cst_8 = arith.constant 0.000000e+00 : f32
    %10 = vector.broadcast %cst_8 : f32 to vector<128x128xf32>
    %11 = arith.maximumf %9, %10 : vector<128x128xf32>
    %12 = vector.shape_cast %11 : vector<128x128xf32> to vector<16x8x128xf32>
    %13 = tpu.iota {dimensions = array<i32: 1>} : vector<16x8x128xi32>
    %c0_i32 = arith.constant 0 : i32
    %14 = vector.broadcast %c0_i32 : i32 to vector<16x8x128xi32>
    %15 = arith.cmpi sgt, %13, %14 : vector<16x8x128xi32>
    %c1_i32 = arith.constant 1 : i32
    %16 = tpu.dynamic_rotate %12 by %c1_i32 dim 1 : vector<16x8x128xf32>, i32 -> vector<16x8x128xf32>
    %cst_9 = arith.constant 0.000000e+00 : f32
    %17 = vector.broadcast %cst_9 : f32 to vector<16x8x128xf32>
    %18 = arith.select %15, %16, %17 : vector<16x8x128xi1>, vector<16x8x128xf32>
    %c7_i32 = arith.constant 7 : i32
    %19 = vector.broadcast %c7_i32 : i32 to vector<16x8x128xi32>
    %20 = arith.cmpi slt, %13, %19 : vector<16x8x128xi32>
    %c7_i32_10 = arith.constant 7 : i32
    %21 = tpu.dynamic_rotate %12 by %c7_i32_10 dim 1 : vector<16x8x128xf32>, i32 -> vector<16x8x128xf32>
    %cst_11 = arith.constant 0.000000e+00 : f32
    %22 = vector.broadcast %cst_11 : f32 to vector<16x8x128xf32>
    %23 = arith.select %20, %21, %22 : vector<16x8x128xi1>, vector<16x8x128xf32>
    %cst_12 = arith.constant 0.000000e+00 : bf16
    %24 = vector.broadcast %cst_12 : bf16 to vector<2x1x8x384xbf16>
    %c0_13 = arith.constant 0 : index
    %c0_14 = arith.constant 0 : index
    %c0_15 = arith.constant 0 : index
    %c0_16 = arith.constant 0 : index
    %25 = vector.load %arg15[%c0_13, %c0_14, %c0_15, %c0_16] : memref<2x10x8x384xbf16, #tpu.memory_space<vmem>>, vector<2x1x8x384xbf16>
    tpu.vector_store %arg15[%c0_13, %c0_14, %c0_15, %c0_16], %24 {strides = array<i32>} : memref<2x10x8x384xbf16, #tpu.memory_space<vmem>>, vector<2x1x8x384xbf16>,
    %c0_17 = arith.constant 0 : index
    %c9 = arith.constant 9 : index
    %c0_18 = arith.constant 0 : index
    %c0_19 = arith.constant 0 : index
    %26 = vector.load %arg15[%c0_17, %c9, %c0_18, %c0_19] : memref<2x10x8x384xbf16, #tpu.memory_space<vmem>>, vector<2x1x8x384xbf16>
    tpu.vector_store %arg15[%c0_17, %c9, %c0_18, %c0_19], %24 {strides = array<i32>} : memref<2x10x8x384xbf16, #tpu.memory_space<vmem>>, vector<2x1x8x384xbf16>,
    %27 = arith.truncf %18 : vector<16x8x128xf32> to vector<16x8x128xbf16>
    %28 = vector.shape_cast %27 : vector<16x8x128xbf16> to vector<2x8x8x128xbf16>
    %c0_20 = arith.constant 0 : index
    %c1 = arith.constant 1 : index
    %c0_21 = arith.constant 0 : index
    %c0_22 = arith.constant 0 : index
    %29 = vector.load %arg15[%c0_20, %c1, %c0_21, %c0_22] : memref<2x10x8x384xbf16, #tpu.memory_space<vmem>>, vector<2x8x8x128xbf16>
    tpu.vector_store %arg15[%c0_20, %c1, %c0_21, %c0_22], %28 {strides = array<i32>} : memref<2x10x8x384xbf16, #tpu.memory_space<vmem>>, vector<2x8x8x128xbf16>,
    %30 = arith.truncf %12 : vector<16x8x128xf32> to vector<16x8x128xbf16>
    %31 = vector.shape_cast %30 : vector<16x8x128xbf16> to vector<2x8x8x128xbf16>
    %c0_23 = arith.constant 0 : index
    %c1_24 = arith.constant 1 : index
    %c0_25 = arith.constant 0 : index
    %c128 = arith.constant 128 : index
    %32 = vector.load %arg15[%c0_23, %c1_24, %c0_25, %c128] : memref<2x10x8x384xbf16, #tpu.memory_space<vmem>>, vector<2x8x8x128xbf16>
    tpu.vector_store %arg15[%c0_23, %c1_24, %c0_25, %c128], %31 {strides = array<i32>} : memref<2x10x8x384xbf16, #tpu.memory_space<vmem>>, vector<2x8x8x128xbf16>,
    %33 = arith.truncf %23 : vector<16x8x128xf32> to vector<16x8x128xbf16>
    %34 = vector.shape_cast %33 : vector<16x8x128xbf16> to vector<2x8x8x128xbf16>
    %c0_26 = arith.constant 0 : index
    %c1_27 = arith.constant 1 : index
    %c0_28 = arith.constant 0 : index
    %c256 = arith.constant 256 : index
    %35 = vector.load %arg15[%c0_26, %c1_27, %c0_28, %c256] : memref<2x10x8x384xbf16, #tpu.memory_space<vmem>>, vector<2x8x8x128xbf16>
    tpu.vector_store %arg15[%c0_26, %c1_27, %c0_28, %c256], %34 {strides = array<i32>} : memref<2x10x8x384xbf16, #tpu.memory_space<vmem>>, vector<2x8x8x128xbf16>,
    %c0_29 = arith.constant 0 : index
    %c0_30 = arith.constant 0 : index
    %c0_31 = arith.constant 0 : index
    %c0_32 = arith.constant 0 : index
    %36 = vector.load %arg15[%c0_29, %c0_30, %c0_31, %c0_32] : memref<2x10x8x384xbf16, #tpu.memory_space<vmem>>, vector<2x8x8x384xbf16>
    %37 = vector.shape_cast %36 : vector<2x8x8x384xbf16> to vector<128x384xbf16>
    %c0_33 = arith.constant 0 : index
    %c0_34 = arith.constant 0 : index
    %c0_35 = arith.constant 0 : index
    %38 = vector.load %arg3[%c0_33, %c0_34, %c0_35] : memref<3x384x128xbf16, #tpu.memory_space<vmem>>, vector<1x384x128xbf16>
    %39 = vector.shape_cast %38 : vector<1x384x128xbf16> to vector<384x128xbf16>
    %cst_36 = arith.constant dense<0.000000e+00> : vector<128x128xf32>
    %40 = tpu.matmul %37, %39, %cst_36 {dimension_numbers = #tpu.dot_dimension_numbers<[1], [0], [0], [1], [0, 0, 1, 1], [], []>} : vector<128x384xbf16>, vector<384x128xbf16>, vector<128x128xf32> -> vector<128x128xf32>
    %c0_37 = arith.constant 0 : index
    %c1_38 = arith.constant 1 : index
    %c0_39 = arith.constant 0 : index
    %c0_40 = arith.constant 0 : index
    %41 = vector.load %arg15[%c0_37, %c1_38, %c0_39, %c0_40] : memref<2x10x8x384xbf16, #tpu.memory_space<vmem>>, vector<2x8x8x384xbf16>
    %42 = vector.shape_cast %41 : vector<2x8x8x384xbf16> to vector<128x384xbf16>
    %c1_41 = arith.constant 1 : index
    %c0_42 = arith.constant 0 : index
    %c0_43 = arith.constant 0 : index
    %43 = vector.load %arg3[%c1_41, %c0_42, %c0_43] : memref<3x384x128xbf16, #tpu.memory_space<vmem>>, vector<1x384x128xbf16>
    %44 = vector.shape_cast %43 : vector<1x384x128xbf16> to vector<384x128xbf16>
    %cst_44 = arith.constant dense<0.000000e+00> : vector<128x128xf32>
    %45 = tpu.matmul %42, %44, %cst_44 {dimension_numbers = #tpu.dot_dimension_numbers<[1], [0], [0], [1], [0, 0, 1, 1], [], []>} : vector<128x384xbf16>, vector<384x128xbf16>, vector<128x128xf32> -> vector<128x128xf32>
    %46 = arith.addf %40, %45 : vector<128x128xf32>
    %c0_45 = arith.constant 0 : index
    %c2 = arith.constant 2 : index
    %c0_46 = arith.constant 0 : index
    %c0_47 = arith.constant 0 : index
    %47 = vector.load %arg15[%c0_45, %c2, %c0_46, %c0_47] : memref<2x10x8x384xbf16, #tpu.memory_space<vmem>>, vector<2x8x8x384xbf16>
    %48 = vector.shape_cast %47 : vector<2x8x8x384xbf16> to vector<128x384xbf16>
    %c2_48 = arith.constant 2 : index
    %c0_49 = arith.constant 0 : index
    %c0_50 = arith.constant 0 : index
    %49 = vector.load %arg3[%c2_48, %c0_49, %c0_50] : memref<3x384x128xbf16, #tpu.memory_space<vmem>>, vector<1x384x128xbf16>
    %50 = vector.shape_cast %49 : vector<1x384x128xbf16> to vector<384x128xbf16>
    %cst_51 = arith.constant dense<0.000000e+00> : vector<128x128xf32>
    %51 = tpu.matmul %48, %50, %cst_51 {dimension_numbers = #tpu.dot_dimension_numbers<[1], [0], [0], [1], [0, 0, 1, 1], [], []>} : vector<128x384xbf16>, vector<384x128xbf16>, vector<128x128xf32> -> vector<128x128xf32>
    %52 = arith.addf %46, %51 : vector<128x128xf32>
    %c0_52 = arith.constant 0 : index
    %c0_53 = arith.constant 0 : index
    %53 = vector.load %arg8[%c0_52, %c0_53] : memref<1x128xf32, #tpu.memory_space<vmem>>, vector<1x128xf32>
    %54 = vector.broadcast %53 : vector<1x128xf32> to vector<128x128xf32>
    %55 = arith.mulf %52, %54 : vector<128x128xf32>
    %c0_54 = arith.constant 0 : index
    %c0_55 = arith.constant 0 : index
    %56 = vector.load %arg9[%c0_54, %c0_55] : memref<1x128xf32, #tpu.memory_space<vmem>>, vector<1x128xf32>
    %57 = vector.broadcast %56 : vector<1x128xf32> to vector<128x128xf32>
    %58 = arith.addf %55, %57 : vector<128x128xf32>
    %cst_56 = arith.constant 0.000000e+00 : f32
    %59 = vector.broadcast %cst_56 : f32 to vector<128x128xf32>
    %60 = arith.maximumf %58, %59 : vector<128x128xf32>
    %61 = arith.truncf %60 : vector<128x128xf32> to vector<128x128xbf16>
    %c0_57 = arith.constant 0 : index
    %c0_58 = arith.constant 0 : index
    %62 = vector.load %arg4[%c0_57, %c0_58] : memref<128x128xbf16, #tpu.memory_space<vmem>>, vector<128x128xbf16>
    %cst_59 = arith.constant dense<0.000000e+00> : vector<128x128xf32>
    %63 = tpu.matmul %61, %62, %cst_59 {dimension_numbers = #tpu.dot_dimension_numbers<[1], [0], [0], [1], [0, 0, 1, 1], [], []>} : vector<128x128xbf16>, vector<128x128xbf16>, vector<128x128xf32> -> vector<128x128xf32>
    %c0_60 = arith.constant 0 : index
    %c0_61 = arith.constant 0 : index
    %64 = vector.load %arg10[%c0_60, %c0_61] : memref<1x128xf32, #tpu.memory_space<vmem>>, vector<1x128xf32>
    %65 = vector.broadcast %64 : vector<1x128xf32> to vector<128x128xf32>
    %66 = arith.mulf %63, %65 : vector<128x128xf32>
    %c0_62 = arith.constant 0 : index
    %c0_63 = arith.constant 0 : index
    %67 = vector.load %arg11[%c0_62, %c0_63] : memref<1x128xf32, #tpu.memory_space<vmem>>, vector<1x128xf32>
    %68 = vector.broadcast %67 : vector<1x128xf32> to vector<128x128xf32>
    %69 = arith.addf %66, %68 : vector<128x128xf32>
    %c0_64 = arith.constant 0 : index
    %c0_65 = arith.constant 0 : index
    %70 = vector.load %arg5[%c0_64, %c0_65] : memref<128x128xbf16, #tpu.memory_space<vmem>>, vector<128x128xbf16>
    %cst_66 = arith.constant dense<0.000000e+00> : vector<128x128xf32>
    %71 = tpu.matmul %1, %70, %cst_66 {dimension_numbers = #tpu.dot_dimension_numbers<[1], [0], [0], [1], [0, 0, 1, 1], [], []>} : vector<128x128xbf16>, vector<128x128xbf16>, vector<128x128xf32> -> vector<128x128xf32>
    %c0_67 = arith.constant 0 : index
    %c0_68 = arith.constant 0 : index
    %72 = vector.load %arg12[%c0_67, %c0_68] : memref<1x128xf32, #tpu.memory_space<vmem>>, vector<1x128xf32>
    %73 = vector.broadcast %72 : vector<1x128xf32> to vector<128x128xf32>
    %74 = arith.mulf %71, %73 : vector<128x128xf32>
    %c0_69 = arith.constant 0 : index
    %c0_70 = arith.constant 0 : index
    %75 = vector.load %arg13[%c0_69, %c0_70] : memref<1x128xf32, #tpu.memory_space<vmem>>, vector<1x128xf32>
    %76 = vector.broadcast %75 : vector<1x128xf32> to vector<128x128xf32>
    %77 = arith.addf %74, %76 : vector<128x128xf32>
    %78 = arith.addf %69, %77 : vector<128x128xf32>
    %cst_71 = arith.constant 0.000000e+00 : f32
    %79 = vector.broadcast %cst_71 : f32 to vector<128x128xf32>
    %80 = arith.maximumf %78, %79 : vector<128x128xf32>
    %81 = vector.shape_cast %80 : vector<128x128xf32> to vector<2x64x128xf32>
    %82 = arith.truncf %81 : vector<2x64x128xf32> to vector<2x64x128xbf16>
    %c0_72 = arith.constant 0 : index
    %c0_73 = arith.constant 0 : index
    %c0_74 = arith.constant 0 : index
    %83 = vector.load %arg14[%c0_72, %c0_73, %c0_74] : memref<2x64x128xbf16, #tpu.memory_space<vmem>>, vector<2x64x128xbf16>
    tpu.vector_store %arg14[%c0_72, %c0_73, %c0_74], %82 {strides = array<i32>} : memref<2x64x128xbf16, #tpu.memory_space<vmem>>, vector<2x64x128xbf16>,
    return
  }
  func.func @transform_0(%arg0: i32) -> (i32, i32, i32) {
    %c0_i32 = arith.constant 0 : i32
    %c0_i32_0 = arith.constant 0 : i32
    %c0_i32_1 = arith.constant 0 : i32
    return %arg0, %c0_i32, %c0_i32_0 : i32, i32, i32
  }
  func.func @transform_1(%arg0: i32) -> (i32, i32) {
    %c0_i32 = arith.constant 0 : i32
    %c0_i32_0 = arith.constant 0 : i32
    %c0_i32_1 = arith.constant 0 : i32
    return %c0_i32, %c0_i32_0 : i32, i32
  }
  func.func @transform_2(%arg0: i32) -> (i32, i32, i32) {
    %c0_i32 = arith.constant 0 : i32
    %c0_i32_0 = arith.constant 0 : i32
    %c0_i32_1 = arith.constant 0 : i32
    %c0_i32_2 = arith.constant 0 : i32
    return %c0_i32, %c0_i32_0, %c0_i32_1 : i32, i32, i32
  }
  func.func @transform_3(%arg0: i32) -> (i32, i32) {
    %c0_i32 = arith.constant 0 : i32
    %c0_i32_0 = arith.constant 0 : i32
    %c0_i32_1 = arith.constant 0 : i32
    return %c0_i32, %c0_i32_0 : i32, i32
  }
  func.func @transform_4(%arg0: i32) -> (i32, i32) {
    %c0_i32 = arith.constant 0 : i32
    %c0_i32_0 = arith.constant 0 : i32
    %c0_i32_1 = arith.constant 0 : i32
    return %c0_i32, %c0_i32_0 : i32, i32
  }
  func.func @transform_5(%arg0: i32) -> (i32, i32) {
    %c0_i32 = arith.constant 0 : i32
    %c0_i32_0 = arith.constant 0 : i32
    %c0_i32_1 = arith.constant 0 : i32
    return %c0_i32, %c0_i32_0 : i32, i32
  }
  func.func @transform_6(%arg0: i32) -> (i32, i32) {
    %c0_i32 = arith.constant 0 : i32
    %c0_i32_0 = arith.constant 0 : i32
    %c0_i32_1 = arith.constant 0 : i32
    return %c0_i32, %c0_i32_0 : i32, i32
  }
  func.func @transform_7(%arg0: i32) -> (i32, i32) {
    %c0_i32 = arith.constant 0 : i32
    %c0_i32_0 = arith.constant 0 : i32
    %c0_i32_1 = arith.constant 0 : i32
    return %c0_i32, %c0_i32_0 : i32, i32
  }
  func.func @transform_8(%arg0: i32) -> (i32, i32) {
    %c0_i32 = arith.constant 0 : i32
    %c0_i32_0 = arith.constant 0 : i32
    %c0_i32_1 = arith.constant 0 : i32
    return %c0_i32, %c0_i32_0 : i32, i32
  }
  func.func @transform_9(%arg0: i32) -> (i32, i32) {
    %c0_i32 = arith.constant 0 : i32
    %c0_i32_0 = arith.constant 0 : i32
    %c0_i32_1 = arith.constant 0 : i32
    return %c0_i32, %c0_i32_0 : i32, i32
  }
  func.func @transform_10(%arg0: i32) -> (i32, i32) {
    %c0_i32 = arith.constant 0 : i32
    %c0_i32_0 = arith.constant 0 : i32
    %c0_i32_1 = arith.constant 0 : i32
    return %c0_i32, %c0_i32_0 : i32, i32
  }
  func.func @transform_11(%arg0: i32) -> (i32, i32) {
    %c0_i32 = arith.constant 0 : i32
    %c0_i32_0 = arith.constant 0 : i32
    %c0_i32_1 = arith.constant 0 : i32
    return %c0_i32, %c0_i32_0 : i32, i32
  }
  func.func @transform_12(%arg0: i32) -> (i32, i32) {
    %c0_i32 = arith.constant 0 : i32
    %c0_i32_0 = arith.constant 0 : i32
    %c0_i32_1 = arith.constant 0 : i32
    return %c0_i32, %c0_i32_0 : i32, i32
  }
  func.func @transform_13(%arg0: i32) -> (i32, i32, i32) {
    %c0_i32 = arith.constant 0 : i32
    %c0_i32_0 = arith.constant 0 : i32
    %c0_i32_1 = arith.constant 0 : i32
    return %arg0, %c0_i32, %c0_i32_0 : i32, i32, i32
  }
}

</mosaic_0001>

<llo_original>
// kernel: tpu_custom_call.1
$region0: #{tpu_custom_call.1}
  #allocation0 [shape = 'u32[]', space=smem, size = 0x4, offset = 0x4, fixed_abs, tag = 'smem constant byte address 0x4 - core index']
  #allocation1 [shape = 'u32[144,128]{1,0:T(1,128)}', space=vmem, size = 0x12000, scoped, tag = 'internal scratch']
  #allocation2 [shape = 'bf16[2,10,8,384]{3,2,1,0:T(8,128)(2,1)}', space=vmem, size = 0x1e000, scoped, tag = 'scratch operand']
  %s0 = inlined_call_operand.hbm [shape: bf16[2,64,128], index: 0, kind: input, shape index: {}]
  %s1 = inlined_call_operand.hbm [shape: bf16[128,128], index: 1, kind: input, shape index: {}]
  %s2 = inlined_call_operand.hbm [shape: bf16[3,384,128], index: 2, kind: input, shape index: {}]
  %s3 = inlined_call_operand.hbm [shape: bf16[128,128], index: 3, kind: input, shape index: {}]
  %s4 = inlined_call_operand.hbm [shape: bf16[128,128], index: 4, kind: input, shape index: {}]
  %s5 = inlined_call_operand.hbm [shape: f32[1,128], index: 5, kind: input, shape index: {}]
  %s6 = inlined_call_operand.hbm [shape: f32[1,128], index: 6, kind: input, shape index: {}]
  %s7 = inlined_call_operand.hbm [shape: f32[1,128], index: 7, kind: input, shape index: {}]
  %s8 = inlined_call_operand.hbm [shape: f32[1,128], index: 8, kind: input, shape index: {}]
  %s9 = inlined_call_operand.hbm [shape: f32[1,128], index: 9, kind: input, shape index: {}]
  %s10 = inlined_call_operand.hbm [shape: f32[1,128], index: 10, kind: input, shape index: {}]
  %s11 = inlined_call_operand.hbm [shape: f32[1,128], index: 11, kind: input, shape index: {}]
  %s12 = inlined_call_operand.hbm [shape: f32[1,128], index: 12, kind: input, shape index: {}]
  %s13 = inlined_call_operand.hbm [shape: bf16[2,64,128], index: 13, kind: output, shape index: {}]
  %s14 = sld [smem:[#allocation0]]
  $region114: #{tpu_custom_call.1} parent=0
    _
  %s16 = ssub.s32 1, %s14
  %s17 = scalar_select 0, %s16, %s14
  $region1: #{tpu_custom_call.1} parent=0
    #allocation3 [shape = 'u8[32768]{0}', space=vmem, size = 0x8000, scoped, tag = 'input window, operand 0, single buffered']
    #allocation4 [shape = 's32[1]{0}', space=sflag, size = 0x4, scoped, tag = 'scoped memory for tpu_custom_call.1']
    #allocation5 [shape = 's32[1]{0}', space=sflag, size = 0x4, scoped, tag = 'scoped memory for tpu_custom_call.1']
    #allocation6 [shape = 'u8[32768]{0}', space=vmem, size = 0x8000, scoped, tag = 'input window, operand 1, single buffered']
    #allocation7 [shape = 's32[1]{0}', space=sflag, size = 0x4, scoped, tag = 'scoped memory for tpu_custom_call.1']
    #allocation8 [shape = 'u8[294912]{0}', space=vmem, size = 0x48000, scoped, tag = 'input window, operand 2, single buffered']
    #allocation9 [shape = 'u8[32768]{0}', space=vmem, size = 0x8000, scoped, tag = 'input window, operand 3, single buffered']
    #allocation10 [shape = 's32[1]{0}', space=sflag, size = 0x4, scoped, tag = 'scoped memory for tpu_custom_call.1']
    #allocation11 [shape = 'u8[32768]{0}', space=vmem, size = 0x8000, scoped, tag = 'input window, operand 4, single buffered']
    #allocation12 [shape = 'u8[512]{0}', space=vmem, size = 0x400, scoped, tag = 'input window, operand 5, single buffered']
    #allocation13 [shape = 's32[1]{0}', space=sflag, size = 0x4, scoped, tag = 'scoped memory for tpu_custom_call.1']
    #allocation14 [shape = 'u8[512]{0}', space=vmem, size = 0x400, scoped, tag = 'input window, operand 6, single buffered']
    #allocation15 [shape = 'u8[512]{0}', space=vmem, size = 0x400, scoped, tag = 'input window, operand 7, single buffered']
    #allocation16 [shape = 's32[1]{0}', space=sflag, size = 0x4, scoped, tag = 'scoped memory for tpu_custom_call.1']
    #allocation17 [shape = 'u8[512]{0}', space=vmem, size = 0x400, scoped, tag = 'input window, operand 8, single buffered']
    #allocation18 [shape = 'u8[512]{0}', space=vmem, size = 0x400, scoped, tag = 'input window, operand 9, single buffered']
    #allocation19 [shape = 's32[1]{0}', space=sflag, size = 0x4, scoped, tag = 'scoped memory for tpu_custom_call.1']
    #allocation20 [shape = 'u8[512]{0}', space=vmem, size = 0x400, scoped, tag = 'input window, operand 10, single buffered']
    #allocation21 [shape = 'u8[512]{0}', space=vmem, size = 0x400, scoped, tag = 'input window, operand 11, single buffered']
    #allocation22 [shape = 's32[1]{0}', space=sflag, size = 0x4, scoped, tag = 'scoped memory for tpu_custom_call.1']
    #allocation23 [shape = 'u8[512]{0}', space=vmem, size = 0x400, scoped, tag = 'input window, operand 12, single buffered']
    #allocation24 [shape = 'u8[32768]{0}', space=vmem, size = 0x8000, scoped, tag = 'output window, operand 0, single buffered']
    %18 = vsyncpa [#allocation4], 0
    %19 = vsyncpa [#allocation7], 0
    %20 = vsyncpa [#allocation10], 0
    %21 = vsyncpa [#allocation13], 0
    %22 = vsyncpa [#allocation16], 0
    %23 = vsyncpa [#allocation19], 0
    %24 = vsyncpa [#allocation22], 0
    %25 = vsyncpa [#allocation5], 0
    // Predicated region
    $region2: #{tpu_custom_call.1} parent=1 // pred_check
      _
    $region3: #{tpu_custom_call.1} parent=1 // pred_check_branch
      %27 = sbr.rel (0) target = $region5
    $region4: #{tpu_custom_call.1} parent=1 // pred_region
      %s29 = ssub.s32 1024, 1024
      %30 = vsyncadd [#allocation4], %s29
      %s31 = sshll.u32 [#allocation3], 4
      %s32 = int_to_ptr.vmem [resolvable:$true] %s31
      %37 = dma.hbm_to_vmem [thread:$0]  %s0, 1024, %s32, [#allocation4], 64, 64, 4
    $region5: #{tpu_custom_call.1} parent=1 // pred_fallthru
      _
    // Predicated region
    $region6: #{tpu_custom_call.1} parent=1 // pred_check
      _
    $region7: #{tpu_custom_call.1} parent=1 // pred_check_branch
      %39 = sbr.rel (0) target = $region9
    $region8: #{tpu_custom_call.1} parent=1 // pred_region
      %s41 = ssub.s32 1024, 1024
      %42 = vsyncadd [#allocation7], %s41
      %s43 = sshll.u32 [#allocation6], 4
      %s44 = int_to_ptr.vmem [resolvable:$true] %s43
      %49 = dma.hbm_to_vmem [thread:$0]  %s1, 1024, %s44, [#allocation7], 64, 64, 4
    $region9: #{tpu_custom_call.1} parent=1 // pred_fallthru
      _
    // Predicated region
    $region10: #{tpu_custom_call.1} parent=1 // pred_check
      _
    $region11: #{tpu_custom_call.1} parent=1 // pred_check_branch
      %51 = sbr.rel (0) target = $region13
    $region12: #{tpu_custom_call.1} parent=1 // pred_region
      %s53 = ssub.s32 9216, 9216
      %54 = vsyncadd [#allocation7], %s53
      %s55 = sshll.u32 [#allocation8], 4
      %s56 = int_to_ptr.vmem [resolvable:$true] %s55
      %61 = dma.hbm_to_vmem [thread:$0]  %s2, 9216, %s56, [#allocation7], 64, 64, 4
    $region13: #{tpu_custom_call.1} parent=1 // pred_fallthru
      _
    // Predicated region
    $region14: #{tpu_custom_call.1} parent=1 // pred_check
      _
    $region15: #{tpu_custom_call.1} parent=1 // pred_check_branch
      %63 = sbr.rel (0) target = $region17
    $region16: #{tpu_custom_call.1} parent=1 // pred_region
      %s65 = ssub.s32 1024, 1024
      %66 = vsyncadd [#allocation10], %s65
      %s67 = sshll.u32 [#allocation9], 4
      %s68 = int_to_ptr.vmem [resolvable:$true] %s67
      %73 = dma.hbm_to_vmem [thread:$0]  %s3, 1024, %s68, [#allocation10], 64, 64, 4
    $region17: #{tpu_custom_call.1} parent=1 // pred_fallthru
      _
    // Predicated region
    $region18: #{tpu_custom_call.1} parent=1 // pred_check
      _
    $region19: #{tpu_custom_call.1} parent=1 // pred_check_branch
      %75 = sbr.rel (0) target = $region21
    $region20: #{tpu_custom_call.1} parent=1 // pred_region
      %s77 = ssub.s32 1024, 1024
      %78 = vsyncadd [#allocation10], %s77
      %s79 = sshll.u32 [#allocation11], 4
      %s80 = int_to_ptr.vmem [resolvable:$true] %s79
      %85 = dma.hbm_to_vmem [thread:$0]  %s4, 1024, %s80, [#allocation10], 64, 64, 4
    $region21: #{tpu_custom_call.1} parent=1 // pred_fallthru
      _
    // Predicated region
    $region22: #{tpu_custom_call.1} parent=1 // pred_check
      _
    $region23: #{tpu_custom_call.1} parent=1 // pred_check_branch
      %87 = sbr.rel (0) target = $region25
    $region24: #{tpu_custom_call.1} parent=1 // pred_region
      %s89 = ssub.s32 16, 16
      %90 = vsyncadd [#allocation13], %s89
      %s92 = sshll.u32 [#allocation12], 4
      %s93 = int_to_ptr.vmem [resolvable:$true] %s92
      %95 = dma.hbm_to_vmem [thread:$0]  %s5, 16, %s93, [#allocation13]
    $region25: #{tpu_custom_call.1} parent=1 // pred_fallthru
      _
    // Predicated region
    $region26: #{tpu_custom_call.1} parent=1 // pred_check
      _
    $region27: #{tpu_custom_call.1} parent=1 // pred_check_branch
      %97 = sbr.rel (0) target = $region29
    $region28: #{tpu_custom_call.1} parent=1 // pred_region
      %s99 = ssub.s32 16, 16
      %100 = vsyncadd [#allocation13], %s99
      %s102 = sshll.u32 [#allocation14], 4
      %s103 = int_to_ptr.vmem [resolvable:$true] %s102
      %105 = dma.hbm_to_vmem [thread:$0]  %s6, 16, %s103, [#allocation13]
    $region29: #{tpu_custom_call.1} parent=1 // pred_fallthru
      _
    // Predicated region
    $region30: #{tpu_custom_call.1} parent=1 // pred_check
      _
    $region31: #{tpu_custom_call.1} parent=1 // pred_check_branch
      %107 = sbr.rel (0) target = $region33
    $region32: #{tpu_custom_call.1} parent=1 // pred_region
      %s109 = ssub.s32 16, 16
      %110 = vsyncadd [#allocation16], %s109
      %s112 = sshll.u32 [#allocation15], 4
      %s113 = int_to_ptr.vmem [resolvable:$true] %s112
      %115 = dma.hbm_to_vmem [thread:$0]  %s7, 16, %s113, [#allocation16]
    $region33: #{tpu_custom_call.1} parent=1 // pred_fallthru
      _
    // Predicated region
    $region34: #{tpu_custom_call.1} parent=1 // pred_check
      _
    $region35: #{tpu_custom_call.1} parent=1 // pred_check_branch
      %117 = sbr.rel (0) target = $region37
    $region36: #{tpu_custom_call.1} parent=1 // pred_region
      %s119 = ssub.s32 16, 16
      %120 = vsyncadd [#allocation16], %s119
      %s122 = sshll.u32 [#allocation17], 4
      %s123 = int_to_ptr.vmem [resolvable:$true] %s122
      %125 = dma.hbm_to_vmem [thread:$0]  %s8, 16, %s123, [#allocation16]
    $region37: #{tpu_custom_call.1} parent=1 // pred_fallthru
      _
    // Predicated region
    $region38: #{tpu_custom_call.1} parent=1 // pred_check
      _
    $region39: #{tpu_custom_call.1} parent=1 // pred_check_branch
      %127 = sbr.rel (0) target = $region41
    $region40: #{tpu_custom_call.1} parent=1 // pred_region
      %s129 = ssub.s32 16, 16
      %130 = vsyncadd [#allocation19], %s129
      %s132 = sshll.u32 [#allocation18], 4
      %s133 = int_to_ptr.vmem [resolvable:$true] %s132
      %135 = dma.hbm_to_vmem [thread:$0]  %s9, 16, %s133, [#allocation19]
    $region41: #{tpu_custom_call.1} parent=1 // pred_fallthru
      _
    // Predicated region
    $region42: #{tpu_custom_call.1} parent=1 // pred_check
      _
    $region43: #{tpu_custom_call.1} parent=1 // pred_check_branch
      %137 = sbr.rel (0) target = $region45
    $region44: #{tpu_custom_call.1} parent=1 // pred_region
      %s139 = ssub.s32 16, 16
      %140 = vsyncadd [#allocation19], %s139
      %s142 = sshll.u32 [#allocation20], 4
      %s143 = int_to_ptr.vmem [resolvable:$true] %s142
      %145 = dma.hbm_to_vmem [thread:$0]  %s10, 16, %s143, [#allocation19]
    $region45: #{tpu_custom_call.1} parent=1 // pred_fallthru
      _
    // Predicated region
    $region46: #{tpu_custom_call.1} parent=1 // pred_check
      _
    $region47: #{tpu_custom_call.1} parent=1 // pred_check_branch
      %147 = sbr.rel (0) target = $region49
    $region48: #{tpu_custom_call.1} parent=1 // pred_region
      %s149 = ssub.s32 16, 16
      %150 = vsyncadd [#allocation22], %s149
      %s152 = sshll.u32 [#allocation21], 4
      %s153 = int_to_ptr.vmem [resolvable:$true] %s152
      %155 = dma.hbm_to_vmem [thread:$0]  %s11, 16, %s153, [#allocation22]
    $region49: #{tpu_custom_call.1} parent=1 // pred_fallthru
      _
    // Predicated region
    $region50: #{tpu_custom_call.1} parent=1 // pred_check
      _
    $region51: #{tpu_custom_call.1} parent=1 // pred_check_branch
      %157 = sbr.rel (0) target = $region53
    $region52: #{tpu_custom_call.1} parent=1 // pred_region
      %s159 = ssub.s32 16, 16
      %160 = vsyncadd [#allocation22], %s159
      %s162 = sshll.u32 [#allocation23], 4
      %s163 = int_to_ptr.vmem [resolvable:$true] %s162
      %165 = dma.hbm_to_vmem [thread:$0]  %s12, 16, %s163, [#allocation22]
    $region53: #{tpu_custom_call.1} parent=1 // pred_fallthru
      _
    // Predicated region
    $region54: #{tpu_custom_call.1} parent=1 // pred_check
      _
    $region55: #{tpu_custom_call.1} parent=1 // pred_check_branch
      %167 = sbr.rel (0) target = $region57
    $region56: #{tpu_custom_call.1} parent=1 // pred_region
      %168 = dma.done [#allocation4], 1024
    $region57: #{tpu_custom_call.1} parent=1 // pred_fallthru
      _
    // Predicated region
    $region58: #{tpu_custom_call.1} parent=1 // pred_check
      _
    $region59: #{tpu_custom_call.1} parent=1 // pred_check_branch
      %170 = sbr.rel (0) target = $region61
    $region60: #{tpu_custom_call.1} parent=1 // pred_region
      %171 = dma.done [#allocation7], 1024
    $region61: #{tpu_custom_call.1} parent=1 // pred_fallthru
      _
    // Predicated region
    $region62: #{tpu_custom_call.1} parent=1 // pred_check
      _
    $region63: #{tpu_custom_call.1} parent=1 // pred_check_branch
      %173 = sbr.rel (0) target = $region65
    $region64: #{tpu_custom_call.1} parent=1 // pred_region
      %174 = dma.done [#allocation7], 9216
    $region65: #{tpu_custom_call.1} parent=1 // pred_fallthru
      _
    // Predicated region
    $region66: #{tpu_custom_call.1} parent=1 // pred_check
      _
    $region67: #{tpu_custom_call.1} parent=1 // pred_check_branch
      %176 = sbr.rel (0) target = $region69
    $region68: #{tpu_custom_call.1} parent=1 // pred_region
      %177 = dma.done [#allocation10], 1024
    $region69: #{tpu_custom_call.1} parent=1 // pred_fallthru
      _
    // Predicated region
    $region70: #{tpu_custom_call.1} parent=1 // pred_check
      _
    $region71: #{tpu_custom_call.1} parent=1 // pred_check_branch
      %179 = sbr.rel (0) target = $region73
    $region72: #{tpu_custom_call.1} parent=1 // pred_region
      %180 = dma.done [#allocation10], 1024
    $region73: #{tpu_custom_call.1} parent=1 // pred_fallthru
      _
    // Predicated region
    $region74: #{tpu_custom_call.1} parent=1 // pred_check
      _
    $region75: #{tpu_custom_call.1} parent=1 // pred_check_branch
      %182 = sbr.rel (0) target = $region77
    $region76: #{tpu_custom_call.1} parent=1 // pred_region
      %183 = dma.done [#allocation13], 16
    $region77: #{tpu_custom_call.1} parent=1 // pred_fallthru
      _
    // Predicated region
    $region78: #{tpu_custom_call.1} parent=1 // pred_check
      _
    $region79: #{tpu_custom_call.1} parent=1 // pred_check_branch
      %185 = sbr.rel (0) target = $region81
    $region80: #{tpu_custom_call.1} parent=1 // pred_region
      %186 = dma.done [#allocation13], 16
    $region81: #{tpu_custom_call.1} parent=1 // pred_fallthru
      _
    // Predicated region
    $region82: #{tpu_custom_call.1} parent=1 // pred_check
      _
    $region83: #{tpu_custom_call.1} parent=1 // pred_check_branch
      %188 = sbr.rel (0) target = $region85
    $region84: #{tpu_custom_call.1} parent=1 // pred_region
      %189 = dma.done [#allocation16], 16
    $region85: #{tpu_custom_call.1} parent=1 // pred_fallthru
      _
    // Predicated region
    $region86: #{tpu_custom_call.1} parent=1 // pred_check
      _
    $region87: #{tpu_custom_call.1} parent=1 // pred_check_branch
      %191 = sbr.rel (0) target = $region89
    $region88: #{tpu_custom_call.1} parent=1 // pred_region
      %192 = dma.done [#allocation16], 16
    $region89: #{tpu_custom_call.1} parent=1 // pred_fallthru
      _
    // Predicated region
    $region90: #{tpu_custom_call.1} parent=1 // pred_check
      _
    $region91: #{tpu_custom_call.1} parent=1 // pred_check_branch
      %194 = sbr.rel (0) target = $region93
    $region92: #{tpu_custom_call.1} parent=1 // pred_region
      %195 = dma.done [#allocation19], 16
    $region93: #{tpu_custom_call.1} parent=1 // pred_fallthru
      _
    // Predicated region
    $region94: #{tpu_custom_call.1} parent=1 // pred_check
      _
    $region95: #{tpu_custom_call.1} parent=1 // pred_check_branch
      %197 = sbr.rel (0) target = $region97
    $region96: #{tpu_custom_call.1} parent=1 // pred_region
      %198 = dma.done [#allocation19], 16
    $region97: #{tpu_custom_call.1} parent=1 // pred_fallthru
      _
    // Predicated region
    $region98: #{tpu_custom_call.1} parent=1 // pred_check
      _
    $region99: #{tpu_custom_call.1} parent=1 // pred_check_branch
      %200 = sbr.rel (0) target = $region101
    $region100: #{tpu_custom_call.1} parent=1 // pred_region
      %201 = dma.done [#allocation22], 16
    $region101: #{tpu_custom_call.1} parent=1 // pred_fallthru
      _
    // Predicated region
    $region102: #{tpu_custom_call.1} parent=1 // pred_check
      _
    $region103: #{tpu_custom_call.1} parent=1 // pred_check_branch
      %203 = sbr.rel (0) target = $region105
    $region104: #{tpu_custom_call.1} parent=1 // pred_region
      %204 = dma.done [#allocation22], 16
    $region105: #{tpu_custom_call.1} parent=1 // pred_fallthru
      _
    %v206 = vld [vmem:[#allocation3] sm:$0xf]
    %v207 = vld [vmem:[#allocation3 + $0x4] sm:$0xf]
    %v208 = vld [vmem:[#allocation3 + $0x8] sm:$0xf]
    %v209 = vld [vmem:[#allocation3 + $0xc] sm:$0xf]
    %v210 = vld [vmem:[#allocation3 + $0x10] sm:$0xf]
    %v211 = vld [vmem:[#allocation3 + $0x14] sm:$0xf]
    %v212 = vld [vmem:[#allocation3 + $0x18] sm:$0xf]
    %v213 = vld [vmem:[#allocation3 + $0x1c] sm:$0xf]
    %v214 = vld [vmem:[#allocation3 + $0x20] sm:$0xf]
    %v215 = vld [vmem:[#allocation3 + $0x24] sm:$0xf]
    %v216 = vld [vmem:[#allocation3 + $0x28] sm:$0xf]
    %v217 = vld [vmem:[#allocation3 + $0x2c] sm:$0xf]
    %v218 = vld [vmem:[#allocation3 + $0x30] sm:$0xf]
    %v219 = vld [vmem:[#allocation3 + $0x34] sm:$0xf]
    %v220 = vld [vmem:[#allocation3 + $0x38] sm:$0xf]
    %v221 = vld [vmem:[#allocation3 + $0x3c] sm:$0xf]
    %v222 = vld [vmem:[#allocation6] sm:$0xf]
    %v223 = vld [vmem:[#allocation6 + $0x4] sm:$0xf]
    %v224 = vld [vmem:[#allocation6 + $0x8] sm:$0xf]
    %v225 = vld [vmem:[#allocation6 + $0xc] sm:$0xf]
    %v226 = vld [vmem:[#allocation6 + $0x10] sm:$0xf]
    %v227 = vld [vmem:[#allocation6 + $0x14] sm:$0xf]
    %v228 = vld [vmem:[#allocation6 + $0x18] sm:$0xf]
    %v229 = vld [vmem:[#allocation6 + $0x1c] sm:$0xf]
    %v230 = vld [vmem:[#allocation6 + $0x20] sm:$0xf]
    %v231 = vld [vmem:[#allocation6 + $0x24] sm:$0xf]
    %v232 = vld [vmem:[#allocation6 + $0x28] sm:$0xf]
    %v233 = vld [vmem:[#allocation6 + $0x2c] sm:$0xf]
    %v234 = vld [vmem:[#allocation6 + $0x30] sm:$0xf]
    %v235 = vld [vmem:[#allocation6 + $0x34] sm:$0xf]
    %v236 = vld [vmem:[#allocation6 + $0x38] sm:$0xf]
    %v237 = vld [vmem:[#allocation6 + $0x3c] sm:$0xf]
    %v254 = vunpack.c.l.b16 %v206
    %v255 = vunpack.c.l.b16 %v207
    %v256 = vunpack.c.l.b16 %v208
    %v257 = vunpack.c.l.b16 %v209
    %v258 = vunpack.c.l.b16 %v210
    %v259 = vunpack.c.l.b16 %v211
    %v260 = vunpack.c.l.b16 %v212
    %v261 = vunpack.c.l.b16 %v213
    %v262 = vunpack.c.l.b16 %v214
    %v263 = vunpack.c.l.b16 %v215
    %v264 = vunpack.c.l.b16 %v216
    %v265 = vunpack.c.l.b16 %v217
    %v266 = vunpack.c.l.b16 %v218
    %v267 = vunpack.c.l.b16 %v219
    %v268 = vunpack.c.l.b16 %v220
    %v269 = vunpack.c.l.b16 %v221
    %v270 = vpack.c.b16 %v255, %v254
    %v271 = vpack.c.b16 %v257, %v256
    %v272 = vpack.c.b16 %v259, %v258
    %v273 = vpack.c.b16 %v261, %v260
    %v274 = vpack.c.b16 %v263, %v262
    %v275 = vpack.c.b16 %v265, %v264
    %v276 = vpack.c.b16 %v267, %v266
    %v277 = vpack.c.b16 %v269, %v268
    %v302 = vunpack.c.l.b16 %v222
    %v303 = vunpack.c.l.b16 %v223
    %v304 = vunpack.c.l.b16 %v224
    %v305 = vunpack.c.l.b16 %v225
    %v306 = vunpack.c.l.b16 %v226
    %v307 = vunpack.c.l.b16 %v227
    %v308 = vunpack.c.l.b16 %v228
    %v309 = vunpack.c.l.b16 %v229
    %v310 = vunpack.c.l.b16 %v230
    %v311 = vunpack.c.l.b16 %v231
    %v312 = vunpack.c.l.b16 %v232
    %v313 = vunpack.c.l.b16 %v233
    %v314 = vunpack.c.l.b16 %v234
    %v315 = vunpack.c.l.b16 %v235
    %v316 = vunpack.c.l.b16 %v236
    %v317 = vunpack.c.l.b16 %v237
    %v318 = vpack.c.b16 %v303, %v302
    %v319 = vpack.c.b16 %v305, %v304
    %v320 = vpack.c.b16 %v307, %v306
    %v321 = vpack.c.b16 %v309, %v308
    %v322 = vpack.c.b16 %v311, %v310
    %v323 = vpack.c.b16 %v313, %v312
    %v324 = vpack.c.b16 %v315, %v314
    %v325 = vpack.c.b16 %v317, %v316
    %334 = vmatprep.subr.bf16.mxu0 0
    %335 = vmatpush1.bf16.msra.mxu0 %v318
    %336 = vmatprep.subr.bf16.mxu0 0
    %337 = vmatpush1.bf16.msra.mxu0 %v319
    %338 = vmatprep.subr.bf16.mxu0 0
    %339 = vmatpush1.bf16.msra.mxu0 %v320
    %340 = vmatprep.subr.bf16.mxu0 0
    %341 = vmatpush1.bf16.msra.mxu0 %v321
    %342 = vmatprep.subr.bf16.mxu0 0
    %343 = vmatpush1.bf16.msra.mxu0 %v322
    %344 = vmatprep.subr.bf16.mxu0 0
    %345 = vmatpush1.bf16.msra.mxu0 %v323
    %346 = vmatprep.subr.bf16.mxu0 0
    %347 = vmatpush1.bf16.msra.mxu0 %v324
    %348 = vmatprep.subr.bf16.mxu0 0
    %349 = vmatpush1.bf16.msra.mxu0 %v325
    %350 = vmatprep.subr.bf16.mxu0 0
    %351 = vmatpush1.bf16.msra.mxu0 0
    %352 = vmatprep.subr.bf16.mxu0 0
    %353 = vmatpush1.bf16.msra.mxu0 0
    %354 = vmatprep.subr.bf16.mxu0 0
    %355 = vmatpush1.bf16.msra.mxu0 0
    %356 = vmatprep.subr.bf16.mxu0 0
    %357 = vmatpush1.bf16.msra.mxu0 0
    %358 = vmatprep.subr.bf16.mxu0 0
    %359 = vmatpush1.bf16.msra.mxu0 0
    %360 = vmatprep.subr.bf16.mxu0 0
    %361 = vmatpush1.bf16.msra.mxu0 0
    %362 = vmatprep.subr.bf16.mxu0 0
    %363 = vmatpush1.bf16.msra.mxu0 0
    %364 = vmatprep.subr.bf16.mxu0 0
    %365 = vmatpush1.bf16.msra.mxu0 0
    %366 = vmatprep.mubr.bf16.mxu0 0
    %367 = vmatmul.mubr.bf16.gmra.mrb[0].mxu0 %v270
    %v368 = vpop.f32.mrb[0].mxu0
    %v369 = vadd.f32 0.0, %v368
    %v370 = vpop.f32.mrb[0].mxu0
    %v371 = vpop.f32.mrb[0].mxu0
    %v372 = vadd.f32 0.0, %v371
    %v373 = vpop.f32.mrb[0].mxu0
    %374 = vmatprep.mubr.bf16.mxu0 0
    %375 = vmatmul.mubr.bf16.gmra.mrb[0].mxu0 %v271
    %v376 = vpop.f32.mrb[0].mxu0
    %v377 = vadd.f32 0.0, %v376
    %v378 = vpop.f32.mrb[0].mxu0
    %v379 = vpop.f32.mrb[0].mxu0
    %v380 = vadd.f32 0.0, %v379
    %v381 = vpop.f32.mrb[0].mxu0
    %382 = vmatprep.mubr.bf16.mxu0 0
    %383 = vmatmul.mubr.bf16.gmra.mrb[0].mxu0 %v272
    %v384 = vpop.f32.mrb[0].mxu0
    %v385 = vadd.f32 0.0, %v384
    %v386 = vpop.f32.mrb[0].mxu0
    %v387 = vpop.f32.mrb[0].mxu0
    %v388 = vadd.f32 0.0, %v387
    %v389 = vpop.f32.mrb[0].mxu0
    %390 = vmatprep.mubr.bf16.mxu0 0
    %391 = vmatmul.mubr.bf16.gmra.mrb[0].mxu0 %v273
    %v392 = vpop.f32.mrb[0].mxu0
    %v393 = vadd.f32 0.0, %v392
    %v394 = vpop.f32.mrb[0].mxu0
    %v395 = vpop.f32.mrb[0].mxu0
    %v396 = vadd.f32 0.0, %v395
    %v397 = vpop.f32.mrb[0].mxu0
    %398 = vmatprep.mubr.bf16.mxu0 0
    %399 = vmatmul.mubr.bf16.gmra.mrb[0].mxu0 %v274
    %v400 = vpop.f32.mrb[0].mxu0
    %v401 = vadd.f32 0.0, %v400
    %v402 = vpop.f32.mrb[0].mxu0
    %v403 = vpop.f32.mrb[0].mxu0
    %v404 = vadd.f32 0.0, %v403
    %v405 = vpop.f32.mrb[0].mxu0
    %406 = vmatprep.mubr.bf16.mxu0 0
    %407 = vmatmul.mubr.bf16.gmra.mrb[0].mxu0 %v275
    %v408 = vpop.f32.mrb[0].mxu0
    %v409 = vadd.f32 0.0, %v408
    %v410 = vpop.f32.mrb[0].mxu0
    %v411 = vpop.f32.mrb[0].mxu0
    %v412 = vadd.f32 0.0, %v411
    %v413 = vpop.f32.mrb[0].mxu0
    %414 = vmatprep.mubr.bf16.mxu0 0
    %415 = vmatmul.mubr.bf16.gmra.mrb[0].mxu0 %v276
    %v416 = vpop.f32.mrb[0].mxu0
    %v417 = vadd.f32 0.0, %v416
    %v418 = vpop.f32.mrb[0].mxu0
    %v419 = vpop.f32.mrb[0].mxu0
    %v420 = vadd.f32 0.0, %v419
    %v421 = vpop.f32.mrb[0].mxu0
    %422 = vmatprep.mubr.bf16.mxu0 0
    %423 = vmatmul.mubr.bf16.gmra.mrb[0].mxu0 %v277
    %v424 = vpop.f32.mrb[0].mxu0
    %v425 = vadd.f32 0.0, %v424
    %v426 = vpop.f32.mrb[0].mxu0
    %v427 = vpop.f32.mrb[0].mxu0
    %v428 = vadd.f32 0.0, %v427
    %v429 = vpop.f32.mrb[0].mxu0
    %430 = vdwg.mxu0
    %v431 = vld [vmem:[#allocation12] sm:$0x1]
    %v433 = vlaneseq
    %v434 = vshrl.u32 %v433, 7
    %v435 = vsub.s32 0, %v434
    %v436 = vrot.slane %v431, %v435
    %v438 = vmul.f32 %v369, %v436
    %v439 = vmul.f32 %v372, %v436
    %v440 = vmul.f32 %v377, %v436
    %v441 = vmul.f32 %v380, %v436
    %v442 = vmul.f32 %v385, %v436
    %v443 = vmul.f32 %v388, %v436
    %v444 = vmul.f32 %v393, %v436
    %v445 = vmul.f32 %v396, %v436
    %v446 = vmul.f32 %v401, %v436
    %v447 = vmul.f32 %v404, %v436
    %v448 = vmul.f32 %v409, %v436
    %v449 = vmul.f32 %v412, %v436
    %v450 = vmul.f32 %v417, %v436
    %v451 = vmul.f32 %v420, %v436
    %v452 = vmul.f32 %v425, %v436
    %v453 = vmul.f32 %v428, %v436
    %v454 = vld [vmem:[#allocation14] sm:$0x1]
    %v456 = vlaneseq
    %v457 = vshrl.u32 %v456, 7
    %v458 = vsub.s32 0, %v457
    %v459 = vrot.slane %v454, %v458
    %v461 = vadd.f32 %v438, %v459
    %v462 = vadd.f32 %v439, %v459
    %v463 = vadd.f32 %v440, %v459
    %v464 = vadd.f32 %v441, %v459
    %v465 = vadd.f32 %v442, %v459
    %v466 = vadd.f32 %v443, %v459
    %v467 = vadd.f32 %v444, %v459
    %v468 = vadd.f32 %v445, %v459
    %v469 = vadd.f32 %v446, %v459
    %v470 = vadd.f32 %v447, %v459
    %v471 = vadd.f32 %v448, %v459
    %v472 = vadd.f32 %v449, %v459
    %v473 = vadd.f32 %v450, %v459
    %v474 = vadd.f32 %v451, %v459
    %v475 = vadd.f32 %v452, %v459
    %v476 = vadd.f32 %v453, %v459
    %v477 = vmax.f32 %v461, 0.0
    %v478 = vmax.f32 %v462, 0.0
    %v479 = vmax.f32 %v463, 0.0
    %v480 = vmax.f32 %v464, 0.0
    %v481 = vmax.f32 %v465, 0.0
    %v482 = vmax.f32 %v466, 0.0
    %v483 = vmax.f32 %v467, 0.0
    %v484 = vmax.f32 %v468, 0.0
    %v485 = vmax.f32 %v469, 0.0
    %v486 = vmax.f32 %v470, 0.0
    %v487 = vmax.f32 %v471, 0.0
    %v488 = vmax.f32 %v472, 0.0
    %v489 = vmax.f32 %v473, 0.0
    %v490 = vmax.f32 %v474, 0.0
    %v491 = vmax.f32 %v475, 0.0
    %v492 = vmax.f32 %v476, 0.0
    %v493 = vlaneseq
    %v494 = vshrl.u32 %v493, 7
    %vm495 = vcmp.gt.s32.totalorder %v494, 0
    %v496 = vrot.slane %v477, 7
    %v497 = vrot.slane %v478, 7
    %v498 = vrot.slane %v479, 7
    %v499 = vrot.slane %v480, 7
    %v500 = vrot.slane %v481, 7
    %v501 = vrot.slane %v482, 7
    %v502 = vrot.slane %v483, 7
    %v503 = vrot.slane %v484, 7
    %v504 = vrot.slane %v485, 7
    %v505 = vrot.slane %v486, 7
    %v506 = vrot.slane %v487, 7
    %v507 = vrot.slane %v488, 7
    %v508 = vrot.slane %v489, 7
    %v509 = vrot.slane %v490, 7
    %v510 = vrot.slane %v491, 7
    %v511 = vrot.slane %v492, 7
    %v512 = vsel %vm495, %v496, 0.0
    %v513 = vsel %vm495, %v497, 0.0
    %v514 = vsel %vm495, %v498, 0.0
    %v515 = vsel %vm495, %v499, 0.0
    %v516 = vsel %vm495, %v500, 0.0
    %v517 = vsel %vm495, %v501, 0.0
    %v518 = vsel %vm495, %v502, 0.0
    %v519 = vsel %vm495, %v503, 0.0
    %v520 = vsel %vm495, %v504, 0.0
    %v521 = vsel %vm495, %v505, 0.0
    %v522 = vsel %vm495, %v506, 0.0
    %v523 = vsel %vm495, %v507, 0.0
    %v524 = vsel %vm495, %v508, 0.0
    %v525 = vsel %vm495, %v509, 0.0
    %v526 = vsel %vm495, %v510, 0.0
    %v527 = vsel %vm495, %v511, 0.0
    %vm528 = vcmp.lt.s32.totalorder %v494, 7
    %v529 = vrot.slane %v477, 1
    %v530 = vrot.slane %v478, 1
    %v531 = vrot.slane %v479, 1
    %v532 = vrot.slane %v480, 1
    %v533 = vrot.slane %v481, 1
    %v534 = vrot.slane %v482, 1
    %v535 = vrot.slane %v483, 1
    %v536 = vrot.slane %v484, 1
    %v537 = vrot.slane %v485, 1
    %v538 = vrot.slane %v486, 1
    %v539 = vrot.slane %v487, 1
    %v540 = vrot.slane %v488, 1
    %v541 = vrot.slane %v489, 1
    %v542 = vrot.slane %v490, 1
    %v543 = vrot.slane %v491, 1
    %v544 = vrot.slane %v492, 1
    %v545 = vsel %vm528, %v529, 0.0
    %v546 = vsel %vm528, %v530, 0.0
    %v547 = vsel %vm528, %v531, 0.0
    %v548 = vsel %vm528, %v532, 0.0
    %v549 = vsel %vm528, %v533, 0.0
    %v550 = vsel %vm528, %v534, 0.0
    %v551 = vsel %vm528, %v535, 0.0
    %v552 = vsel %vm528, %v536, 0.0
    %v553 = vsel %vm528, %v537, 0.0
    %v554 = vsel %vm528, %v538, 0.0
    %v555 = vsel %vm528, %v539, 0.0
    %v556 = vsel %vm528, %v540, 0.0
    %v557 = vsel %vm528, %v541, 0.0
    %v558 = vsel %vm528, %v542, 0.0
    %v559 = vsel %vm528, %v543, 0.0
    %v560 = vsel %vm528, %v544, 0.0
    %561 = vst [vmem:[#allocation2] sm:$0xff] 0
    %562 = vst [vmem:[#allocation2 + $0x8] sm:$0xf] 0
    %563 = vst [vmem:[#allocation2 + $0x78] sm:$0xff] 0
    %564 = vst [vmem:[#allocation2 + $0x80] sm:$0xf] 0
    %s565 = scalar_lea.vmem [#allocation2], 108
    %566 = vst [vmem:[%s565] sm:$0xff] 0
    %567 = vst [vmem:[%s565 + $0x8] sm:$0xf] 0
    %568 = vst [vmem:[%s565 + $0x78] sm:$0xff] 0
    %569 = vst [vmem:[%s565 + $0x80] sm:$0xf] 0
    %v570 = vpack.c.bf16 %v512, %v512
    %v571 = vpack.c.bf16 %v513, %v513
    %v572 = vpack.c.bf16 %v514, %v514
    %v573 = vpack.c.bf16 %v515, %v515
    %v574 = vpack.c.bf16 %v516, %v516
    %v575 = vpack.c.bf16 %v517, %v517
    %v576 = vpack.c.bf16 %v518, %v518
    %v577 = vpack.c.bf16 %v519, %v519
    %v578 = vpack.c.bf16 %v520, %v520
    %v579 = vpack.c.bf16 %v521, %v521
    %v580 = vpack.c.bf16 %v522, %v522
    %v581 = vpack.c.bf16 %v523, %v523
    %v582 = vpack.c.bf16 %v524, %v524
    %v583 = vpack.c.bf16 %v525, %v525
    %v584 = vpack.c.bf16 %v526, %v526
    %v585 = vpack.c.bf16 %v527, %v527
    %s586 = scalar_lea.vmem [#allocation2], 12
    %587 = vst [vmem:[%s586] sm:$0xf] %v570
    %588 = vst [vmem:[%s586 + $0xc] sm:$0xf] %v571
    %589 = vst [vmem:[%s586 + $0x18] sm:$0xf] %v572
    %590 = vst [vmem:[%s586 + $0x24] sm:$0xf] %v573
    %591 = vst [vmem:[%s586 + $0x30] sm:$0xf] %v574
    %592 = vst [vmem:[%s586 + $0x3c] sm:$0xf] %v575
    %593 = vst [vmem:[%s586 + $0x48] sm:$0xf] %v576
    %594 = vst [vmem:[%s586 + $0x54] sm:$0xf] %v577
    %595 = vst [vmem:[%s586 + $0x78] sm:$0xf] %v578
    %596 = vst [vmem:[%s586 + $0x84] sm:$0xf] %v579
    %597 = vst [vmem:[%s586 + $0x90] sm:$0xf] %v580
    %598 = vst [vmem:[%s586 + $0x9c] sm:$0xf] %v581
    %599 = vst [vmem:[%s586 + $0xa8] sm:$0xf] %v582
    %600 = vst [vmem:[%s586 + $0xb4] sm:$0xf] %v583
    %601 = vst [vmem:[%s586 + $0xc0] sm:$0xf] %v584
    %602 = vst [vmem:[%s586 + $0xcc] sm:$0xf] %v585
    %v603 = vpack.c.bf16 %v477, %v477
    %v604 = vpack.c.bf16 %v478, %v478
    %v605 = vpack.c.bf16 %v479, %v479
    %v606 = vpack.c.bf16 %v480, %v480
    %v607 = vpack.c.bf16 %v481, %v481
    %v608 = vpack.c.bf16 %v482, %v482
    %v609 = vpack.c.bf16 %v483, %v483
    %v610 = vpack.c.bf16 %v484, %v484
    %v611 = vpack.c.bf16 %v485, %v485
    %v612 = vpack.c.bf16 %v486, %v486
    %v613 = vpack.c.bf16 %v487, %v487
    %v614 = vpack.c.bf16 %v488, %v488
    %v615 = vpack.c.bf16 %v489, %v489
    %v616 = vpack.c.bf16 %v490, %v490
    %v617 = vpack.c.bf16 %v491, %v491
    %v618 = vpack.c.bf16 %v492, %v492
    %619 = vst [vmem:[%s586 + $0x4] sm:$0xf] %v603
    %620 = vst [vmem:[%s586 + $0x10] sm:$0xf] %v604
    %621 = vst [vmem:[%s586 + $0x1c] sm:$0xf] %v605
    %622 = vst [vmem:[%s586 + $0x28] sm:$0xf] %v606
    %623 = vst [vmem:[%s586 + $0x34] sm:$0xf] %v607
    %624 = vst [vmem:[%s586 + $0x40] sm:$0xf] %v608
    %625 = vst [vmem:[%s586 + $0x4c] sm:$0xf] %v609
    %626 = vst [vmem:[%s586 + $0x58] sm:$0xf] %v610
    %627 = vst [vmem:[%s586 + $0x7c] sm:$0xf] %v611
    %628 = vst [vmem:[%s586 + $0x88] sm:$0xf] %v612
    %629 = vst [vmem:[%s586 + $0x94] sm:$0xf] %v613
    %630 = vst [vmem:[%s586 + $0xa0] sm:$0xf] %v614
    %631 = vst [vmem:[%s586 + $0xac] sm:$0xf] %v615
    %632 = vst [vmem:[%s586 + $0xb8] sm:$0xf] %v616
    %633 = vst [vmem:[%s586 + $0xc4] sm:$0xf] %v617
    %634 = vst [vmem:[%s586 + $0xd0] sm:$0xf] %v618
    %v635 = vpack.c.bf16 %v545, %v545
    %v636 = vpack.c.bf16 %v546, %v546
    %v637 = vpack.c.bf16 %v547, %v547
    %v638 = vpack.c.bf16 %v548, %v548
    %v639 = vpack.c.bf16 %v549, %v549
    %v640 = vpack.c.bf16 %v550, %v550
    %v641 = vpack.c.bf16 %v551, %v551
    %v642 = vpack.c.bf16 %v552, %v552
    %v643 = vpack.c.bf16 %v553, %v553
    %v644 = vpack.c.bf16 %v554, %v554
    %v645 = vpack.c.bf16 %v555, %v555
    %v646 = vpack.c.bf16 %v556, %v556
    %v647 = vpack.c.bf16 %v557, %v557
    %v648 = vpack.c.bf16 %v558, %v558
    %v649 = vpack.c.bf16 %v559, %v559
    %v650 = vpack.c.bf16 %v560, %v560
    %651 = vst [vmem:[%s586 + $0x8] sm:$0xf] %v635
    %652 = vst [vmem:[%s586 + $0x14] sm:$0xf] %v636
    %653 = vst [vmem:[%s586 + $0x20] sm:$0xf] %v637
    %654 = vst [vmem:[%s586 + $0x2c] sm:$0xf] %v638
    %655 = vst [vmem:[%s586 + $0x38] sm:$0xf] %v639
    %656 = vst [vmem:[%s586 + $0x44] sm:$0xf] %v640
    %657 = vst [vmem:[%s586 + $0x50] sm:$0xf] %v641
    %658 = vst [vmem:[%s586 + $0x5c] sm:$0xf] %v642
    %659 = vst [vmem:[%s586 + $0x80] sm:$0xf] %v643
    %660 = vst [vmem:[%s586 + $0x8c] sm:$0xf] %v644
    %661 = vst [vmem:[%s586 + $0x98] sm:$0xf] %v645
    %662 = vst [vmem:[%s586 + $0xa4] sm:$0xf] %v646
    %663 = vst [vmem:[%s586 + $0xb0] sm:$0xf] %v647
    %664 = vst [vmem:[%s586 + $0xbc] sm:$0xf] %v648
    %665 = vst [vmem:[%s586 + $0xc8] sm:$0xf] %v649
    %666 = vst [vmem:[%s586 + $0xd4] sm:$0xf] %v650
    %v667 = vld [vmem:[#allocation2] sm:$0xff]
    %v668 = vld [vmem:[#allocation2 + $0x8] sm:$0xf]
    %v669 = vld [vmem:[#allocation2 + $0xc] sm:$0xff]
    %v670 = vld [vmem:[#allocation2 + $0x14] sm:$0xf]
    %v671 = vld [vmem:[#allocation2 + $0x18] sm:$0xff]
    %v672 = vld [vmem:[#allocation2 + $0x20] sm:$0xf]
    %v673 = vld [vmem:[#allocation2 + $0x24] sm:$0xff]
    %v674 = vld [vmem:[#allocation2 + $0x2c] sm:$0xf]
    %v675 = vld [vmem:[#allocation2 + $0x30] sm:$0xff]
    %v676 = vld [vmem:[#allocation2 + $0x38] sm:$0xf]
    %v677 = vld [vmem:[#allocation2 + $0x3c] sm:$0xff]
    %v678 = vld [vmem:[#allocation2 + $0x44] sm:$0xf]
    %v679 = vld [vmem:[#allocation2 + $0x48] sm:$0xff]
    %v680 = vld [vmem:[#allocation2 + $0x50] sm:$0xf]
    %v681 = vld [vmem:[#allocation2 + $0x54] sm:$0xff]
    %v682 = vld [vmem:[#allocation2 + $0x5c] sm:$0xf]
    %v683 = vld [vmem:[#allocation2 + $0x78] sm:$0xff]
    %v684 = vld [vmem:[#allocation2 + $0x80] sm:$0xf]
    %v685 = vld [vmem:[#allocation2 + $0x84] sm:$0xff]
    %v686 = vld [vmem:[#allocation2 + $0x8c] sm:$0xf]
    %v687 = vld [vmem:[#allocation2 + $0x90] sm:$0xff]
    %v688 = vld [vmem:[#allocation2 + $0x98] sm:$0xf]
    %v689 = vld [vmem:[#allocation2 + $0x9c] sm:$0xff]
    %v690 = vld [vmem:[#allocation2 + $0xa4] sm:$0xf]
    %v691 = vld [vmem:[#allocation2 + $0xa8] sm:$0xff]
    %v692 = vld [vmem:[#allocation2 + $0xb0] sm:$0xf]
    %v693 = vld [vmem:[#allocation2 + $0xb4] sm:$0xff]
    %v694 = vld [vmem:[#allocation2 + $0xbc] sm:$0xf]
    %v695 = vld [vmem:[#allocation2 + $0xc0] sm:$0xff]
    %v696 = vld [vmem:[#allocation2 + $0xc8] sm:$0xf]
    %v697 = vld [vmem:[#allocation2 + $0xcc] sm:$0xff]
    %v698 = vld [vmem:[#allocation2 + $0xd4] sm:$0xf]
    %v699 = vld [vmem:[#allocation8] sm:$0xf]
    %v700 = vld [vmem:[#allocation8 + $0x4] sm:$0xf]
    %v701 = vld [vmem:[#allocation8 + $0x8] sm:$0xf]
    %v702 = vld [vmem:[#allocation8 + $0xc] sm:$0xf]
    %v703 = vld [vmem:[#allocation8 + $0x10] sm:$0xf]
    %v704 = vld [vmem:[#allocation8 + $0x14] sm:$0xf]
    %v705 = vld [vmem:[#allocation8 + $0x18] sm:$0xf]
    %v706 = vld [vmem:[#allocation8 + $0x1c] sm:$0xf]
    %v707 = vld [vmem:[#allocation8 + $0x20] sm:$0xf]
    %v708 = vld [vmem:[#allocation8 + $0x24] sm:$0xf]
    %v709 = vld [vmem:[#allocation8 + $0x28] sm:$0xf]
    %v710 = vld [vmem:[#allocation8 + $0x2c] sm:$0xf]
    %v711 = vld [vmem:[#allocation8 + $0x30] sm:$0xf]
    %v712 = vld [vmem:[#allocation8 + $0x34] sm:$0xf]
    %v713 = vld [vmem:[#allocation8 + $0x38] sm:$0xf]
    %v714 = vld [vmem:[#allocation8 + $0x3c] sm:$0xf]
    %v715 = vld [vmem:[#allocation8 + $0x40] sm:$0xf]
    %v716 = vld [vmem:[#allocation8 + $0x44] sm:$0xf]
    %v717 = vld [vmem:[#allocation8 + $0x48] sm:$0xf]
    %v718 = vld [vmem:[#allocation8 + $0x4c] sm:$0xf]
    %v719 = vld [vmem:[#allocation8 + $0x50] sm:$0xf]
    %v720 = vld [vmem:[#allocation8 + $0x54] sm:$0xf]
    %v721 = vld [vmem:[#allocation8 + $0x58] sm:$0xf]
    %v722 = vld [vmem:[#allocation8 + $0x5c] sm:$0xf]
    %v723 = vld [vmem:[#allocation8 + $0x60] sm:$0xf]
    %v724 = vld [vmem:[#allocation8 + $0x64] sm:$0xf]
    %v725 = vld [vmem:[#allocation8 + $0x68] sm:$0xf]
    %v726 = vld [vmem:[#allocation8 + $0x6c] sm:$0xf]
    %v727 = vld [vmem:[#allocation8 + $0x70] sm:$0xf]
    %v728 = vld [vmem:[#allocation8 + $0x74] sm:$0xf]
    %v729 = vld [vmem:[#allocation8 + $0x78] sm:$0xf]
    %v730 = vld [vmem:[#allocation8 + $0x7c] sm:$0xf]
    %v731 = vld [vmem:[#allocation8 + $0x80] sm:$0xf]
    %v732 = vld [vmem:[#allocation8 + $0x84] sm:$0xf]
    %v733 = vld [vmem:[#allocation8 + $0x88] sm:$0xf]
    %v734 = vld [vmem:[#allocation8 + $0x8c] sm:$0xf]
    %v735 = vld [vmem:[#allocation8 + $0x90] sm:$0xf]
    %v736 = vld [vmem:[#allocation8 + $0x94] sm:$0xf]
    %v737 = vld [vmem:[#allocation8 + $0x98] sm:$0xf]
    %v738 = vld [vmem:[#allocation8 + $0x9c] sm:$0xf]
    %v739 = vld [vmem:[#allocation8 + $0xa0] sm:$0xf]
    %v740 = vld [vmem:[#allocation8 + $0xa4] sm:$0xf]
    %v741 = vld [vmem:[#allocation8 + $0xa8] sm:$0xf]
    %v742 = vld [vmem:[#allocation8 + $0xac] sm:$0xf]
    %v743 = vld [vmem:[#allocation8 + $0xb0] sm:$0xf]
    %v744 = vld [vmem:[#allocation8 + $0xb4] sm:$0xf]
    %v745 = vld [vmem:[#allocation8 + $0xb8] sm:$0xf]
    %v746 = vld [vmem:[#allocation8 + $0xbc] sm:$0xf]
    %v747 = vld [vmem:[%s586] sm:$0xff]
    %v748 = vld [vmem:[%s586 + $0x8] sm:$0xf]
    %v749 = vld [vmem:[%s586 + $0xc] sm:$0xff]
    %v750 = vld [vmem:[%s586 + $0x14] sm:$0xf]
    %v751 = vld [vmem:[%s586 + $0x18] sm:$0xff]
    %v752 = vld [vmem:[%s586 + $0x20] sm:$0xf]
    %v753 = vld [vmem:[%s586 + $0x24] sm:$0xff]
    %v754 = vld [vmem:[%s586 + $0x2c] sm:$0xf]
    %v755 = vld [vmem:[%s586 + $0x30] sm:$0xff]
    %v756 = vld [vmem:[%s586 + $0x38] sm:$0xf]
    %v757 = vld [vmem:[%s586 + $0x3c] sm:$0xff]
    %v758 = vld [vmem:[%s586 + $0x44] sm:$0xf]
    %v759 = vld [vmem:[%s586 + $0x48] sm:$0xff]
    %v760 = vld [vmem:[%s586 + $0x50] sm:$0xf]
    %v761 = vld [vmem:[%s586 + $0x54] sm:$0xff]
    %v762 = vld [vmem:[%s586 + $0x5c] sm:$0xf]
    %v763 = vld [vmem:[%s586 + $0x78] sm:$0xff]
    %v764 = vld [vmem:[%s586 + $0x80] sm:$0xf]
    %v765 = vld [vmem:[%s586 + $0x84] sm:$0xff]
    %v766 = vld [vmem:[%s586 + $0x8c] sm:$0xf]
    %v767 = vld [vmem:[%s586 + $0x90] sm:$0xff]
    %v768 = vld [vmem:[%s586 + $0x98] sm:$0xf]
    %v769 = vld [vmem:[%s586 + $0x9c] sm:$0xff]
    %v770 = vld [vmem:[%s586 + $0xa4] sm:$0xf]
    %v771 = vld [vmem:[%s586 + $0xa8] sm:$0xff]
    %v772 = vld [vmem:[%s586 + $0xb0] sm:$0xf]
    %v773 = vld [vmem:[%s586 + $0xb4] sm:$0xff]
    %v774 = vld [vmem:[%s586 + $0xbc] sm:$0xf]
    %v775 = vld [vmem:[%s586 + $0xc0] sm:$0xff]
    %v776 = vld [vmem:[%s586 + $0xc8] sm:$0xf]
    %v777 = vld [vmem:[%s586 + $0xcc] sm:$0xff]
    %v778 = vld [vmem:[%s586 + $0xd4] sm:$0xf]
    %s779 = scalar_lea.vmem [#allocation8], 192
    %v780 = vld [vmem:[%s779] sm:$0xf]
    %v781 = vld [vmem:[%s779 + $0x4] sm:$0xf]
    %v782 = vld [vmem:[%s779 + $0x8] sm:$0xf]
    %v783 = vld [vmem:[%s779 + $0xc] sm:$0xf]
    %v784 = vld [vmem:[%s779 + $0x10] sm:$0xf]
    %v785 = vld [vmem:[%s779 + $0x14] sm:$0xf]
    %v786 = vld [vmem:[%s779 + $0x18] sm:$0xf]
    %v787 = vld [vmem:[%s779 + $0x1c] sm:$0xf]
    %v788 = vld [vmem:[%s779 + $0x20] sm:$0xf]
    %v789 = vld [vmem:[%s779 + $0x24] sm:$0xf]
    %v790 = vld [vmem:[%s779 + $0x28] sm:$0xf]
    %v791 = vld [vmem:[%s779 + $0x2c] sm:$0xf]
    %v792 = vld [vmem:[%s779 + $0x30] sm:$0xf]
    %v793 = vld [vmem:[%s779 + $0x34] sm:$0xf]
    %v794 = vld [vmem:[%s779 + $0x38] sm:$0xf]
    %v795 = vld [vmem:[%s779 + $0x3c] sm:$0xf]
    %v796 = vld [vmem:[%s779 + $0x40] sm:$0xf]
    %v797 = vld [vmem:[%s779 + $0x44] sm:$0xf]
    %v798 = vld [vmem:[%s779 + $0x48] sm:$0xf]
    %v799 = vld [vmem:[%s779 + $0x4c] sm:$0xf]
    %v800 = vld [vmem:[%s779 + $0x50] sm:$0xf]
    %v801 = vld [vmem:[%s779 + $0x54] sm:$0xf]
    %v802 = vld [vmem:[%s779 + $0x58] sm:$0xf]
    %v803 = vld [vmem:[%s779 + $0x5c] sm:$0xf]
    %v804 = vld [vmem:[%s779 + $0x60] sm:$0xf]
    %v805 = vld [vmem:[%s779 + $0x64] sm:$0xf]
    %v806 = vld [vmem:[%s779 + $0x68] sm:$0xf]
    %v807 = vld [vmem:[%s779 + $0x6c] sm:$0xf]
    %v808 = vld [vmem:[%s779 + $0x70] sm:$0xf]
    %v809 = vld [vmem:[%s779 + $0x74] sm:$0xf]
    %v810 = vld [vmem:[%s779 + $0x78] sm:$0xf]
    %v811 = vld [vmem:[%s779 + $0x7c] sm:$0xf]
    %v812 = vld [vmem:[%s779 + $0x80] sm:$0xf]
    %v813 = vld [vmem:[%s779 + $0x84] sm:$0xf]
    %v814 = vld [vmem:[%s779 + $0x88] sm:$0xf]
    %v815 = vld [vmem:[%s779 + $0x8c] sm:$0xf]
    %v816 = vld [vmem:[%s779 + $0x90] sm:$0xf]
    %v817 = vld [vmem:[%s779 + $0x94] sm:$0xf]
    %v818 = vld [vmem:[%s779 + $0x98] sm:$0xf]
    %v819 = vld [vmem:[%s779 + $0x9c] sm:$0xf]
    %v820 = vld [vmem:[%s779 + $0xa0] sm:$0xf]
    %v821 = vld [vmem:[%s779 + $0xa4] sm:$0xf]
    %v822 = vld [vmem:[%s779 + $0xa8] sm:$0xf]
    %v823 = vld [vmem:[%s779 + $0xac] sm:$0xf]
    %v824 = vld [vmem:[%s779 + $0xb0] sm:$0xf]
    %v825 = vld [vmem:[%s779 + $0xb4] sm:$0xf]
    %v826 = vld [vmem:[%s779 + $0xb8] sm:$0xf]
    %v827 = vld [vmem:[%s779 + $0xbc] sm:$0xf]
    %v860 = vunpack.c.l.b16 %v747
    %v861 = vunpack.c.h.b16 %v747
    %v862 = vunpack.c.l.b16 %v748
    %v863 = vunpack.c.l.b16 %v749
    %v864 = vunpack.c.h.b16 %v749
    %v865 = vunpack.c.l.b16 %v750
    %v866 = vunpack.c.l.b16 %v751
    %v867 = vunpack.c.h.b16 %v751
    %v868 = vunpack.c.l.b16 %v752
    %v869 = vunpack.c.l.b16 %v753
    %v870 = vunpack.c.h.b16 %v753
    %v871 = vunpack.c.l.b16 %v754
    %v872 = vunpack.c.l.b16 %v755
    %v873 = vunpack.c.h.b16 %v755
    %v874 = vunpack.c.l.b16 %v756
    %v875 = vunpack.c.l.b16 %v757
    %v876 = vunpack.c.h.b16 %v757
    %v877 = vunpack.c.l.b16 %v758
    %v878 = vunpack.c.l.b16 %v759
    %v879 = vunpack.c.h.b16 %v759
    %v880 = vunpack.c.l.b16 %v760
    %v881 = vunpack.c.l.b16 %v761
    %v882 = vunpack.c.h.b16 %v761
    %v883 = vunpack.c.l.b16 %v762
    %v884 = vunpack.c.l.b16 %v763
    %v885 = vunpack.c.h.b16 %v763
    %v886 = vunpack.c.l.b16 %v764
    %v887 = vunpack.c.l.b16 %v765
    %v888 = vunpack.c.h.b16 %v765
    %v889 = vunpack.c.l.b16 %v766
    %v890 = vunpack.c.l.b16 %v767
    %v891 = vunpack.c.h.b16 %v767
    %v892 = vunpack.c.l.b16 %v768
    %v893 = vunpack.c.l.b16 %v769
    %v894 = vunpack.c.h.b16 %v769
    %v895 = vunpack.c.l.b16 %v770
    %v896 = vunpack.c.l.b16 %v771
    %v897 = vunpack.c.h.b16 %v771
    %v898 = vunpack.c.l.b16 %v772
    %v899 = vunpack.c.l.b16 %v773
    %v900 = vunpack.c.h.b16 %v773
    %v901 = vunpack.c.l.b16 %v774
    %v902 = vunpack.c.l.b16 %v775
    %v903 = vunpack.c.h.b16 %v775
    %v904 = vunpack.c.l.b16 %v776
    %v905 = vunpack.c.l.b16 %v777
    %v906 = vunpack.c.h.b16 %v777
    %v907 = vunpack.c.l.b16 %v778
    %v908 = vpack.c.b16 %v863, %v860
    %v909 = vpack.c.b16 %v864, %v861
    %v910 = vpack.c.b16 %v865, %v862
    %v911 = vpack.c.b16 %v869, %v866
    %v912 = vpack.c.b16 %v870, %v867
    %v913 = vpack.c.b16 %v871, %v868
    %v914 = vpack.c.b16 %v875, %v872
    %v915 = vpack.c.b16 %v876, %v873
    %v916 = vpack.c.b16 %v877, %v874
    %v917 = vpack.c.b16 %v881, %v878
    %v918 = vpack.c.b16 %v882, %v879
    %v919 = vpack.c.b16 %v883, %v880
    %v920 = vpack.c.b16 %v887, %v884
    %v921 = vpack.c.b16 %v888, %v885
    %v922 = vpack.c.b16 %v889, %v886
    %v923 = vpack.c.b16 %v893, %v890
    %v924 = vpack.c.b16 %v894, %v891
    %v925 = vpack.c.b16 %v895, %v892
    %v926 = vpack.c.b16 %v899, %v896
    %v927 = vpack.c.b16 %v900, %v897
    %v928 = vpack.c.b16 %v901, %v898
    %v929 = vpack.c.b16 %v905, %v902
    %v930 = vpack.c.b16 %v906, %v903
    %v931 = vpack.c.b16 %v907, %v904
    %v1004 = vunpack.c.l.b16 %v780
    %v1005 = vunpack.c.l.b16 %v781
    %v1006 = vunpack.c.l.b16 %v782
    %v1007 = vunpack.c.l.b16 %v783
    %v1008 = vunpack.c.l.b16 %v784
    %v1009 = vunpack.c.l.b16 %v785
    %v1010 = vunpack.c.l.b16 %v786
    %v1011 = vunpack.c.l.b16 %v787
    %v1012 = vunpack.c.l.b16 %v788
    %v1013 = vunpack.c.l.b16 %v789
    %v1014 = vunpack.c.l.b16 %v790
    %v1015 = vunpack.c.l.b16 %v791
    %v1016 = vunpack.c.l.b16 %v792
    %v1017 = vunpack.c.l.b16 %v793
    %v1018 = vunpack.c.l.b16 %v794
    %v1019 = vunpack.c.l.b16 %v795
    %v1020 = vunpack.c.l.b16 %v796
    %v1021 = vunpack.c.l.b16 %v797
    %v1022 = vunpack.c.l.b16 %v798
    %v1023 = vunpack.c.l.b16 %v799
    %v1024 = vunpack.c.l.b16 %v800
    %v1025 = vunpack.c.l.b16 %v801
    %v1026 = vunpack.c.l.b16 %v802
    %v1027 = vunpack.c.l.b16 %v803
    %v1028 = vunpack.c.l.b16 %v804
    %v1029 = vunpack.c.l.b16 %v805
    %v1030 = vunpack.c.l.b16 %v806
    %v1031 = vunpack.c.l.b16 %v807
    %v1032 = vunpack.c.l.b16 %v808
    %v1033 = vunpack.c.l.b16 %v809
    %v1034 = vunpack.c.l.b16 %v810
    %v1035 = vunpack.c.l.b16 %v811
    %v1036 = vunpack.c.l.b16 %v812
    %v1037 = vunpack.c.l.b16 %v813
    %v1038 = vunpack.c.l.b16 %v814
    %v1039 = vunpack.c.l.b16 %v815
    %v1040 = vunpack.c.l.b16 %v816
    %v1041 = vunpack.c.l.b16 %v817
    %v1042 = vunpack.c.l.b16 %v818
    %v1043 = vunpack.c.l.b16 %v819
    %v1044 = vunpack.c.l.b16 %v820
    %v1045 = vunpack.c.l.b16 %v821
    %v1046 = vunpack.c.l.b16 %v822
    %v1047 = vunpack.c.l.b16 %v823
    %v1048 = vunpack.c.l.b16 %v824
    %v1049 = vunpack.c.l.b16 %v825
    %v1050 = vunpack.c.l.b16 %v826
    %v1051 = vunpack.c.l.b16 %v827
    %v1052 = vpack.c.b16 %v1005, %v1004
    %v1053 = vpack.c.b16 %v1007, %v1006
    %v1054 = vpack.c.b16 %v1009, %v1008
    %v1055 = vpack.c.b16 %v1011, %v1010
    %v1056 = vpack.c.b16 %v1013, %v1012
    %v1057 = vpack.c.b16 %v1015, %v1014
    %v1058 = vpack.c.b16 %v1017, %v1016
    %v1059 = vpack.c.b16 %v1019, %v1018
    %v1060 = vpack.c.b16 %v1021, %v1020
    %v1061 = vpack.c.b16 %v1023, %v1022
    %v1062 = vpack.c.b16 %v1025, %v1024
    %v1063 = vpack.c.b16 %v1027, %v1026
    %v1064 = vpack.c.b16 %v1029, %v1028
    %v1065 = vpack.c.b16 %v1031, %v1030
    %v1066 = vpack.c.b16 %v1033, %v1032
    %v1067 = vpack.c.b16 %v1035, %v1034
    %v1068 = vpack.c.b16 %v1037, %v1036
    %v1069 = vpack.c.b16 %v1039, %v1038
    %v1070 = vpack.c.b16 %v1041, %v1040
    %v1071 = vpack.c.b16 %v1043, %v1042
    %v1072 = vpack.c.b16 %v1045, %v1044
    %v1073 = vpack.c.b16 %v1047, %v1046
    %v1074 = vpack.c.b16 %v1049, %v1048
    %v1075 = vpack.c.b16 %v1051, %v1050
    %1100 = vmatprep.subr.bf16.mxu0 0
    %1101 = vmatpush1.bf16.msra.mxu0 %v1052
    %1102 = vmatprep.subr.bf16.mxu0 0
    %1103 = vmatpush1.bf16.msra.mxu0 %v1053
    %1104 = vmatprep.subr.bf16.mxu0 0
    %1105 = vmatpush1.bf16.msra.mxu0 %v1054
    %1106 = vmatprep.subr.bf16.mxu0 0
    %1107 = vmatpush1.bf16.msra.mxu0 %v1055
    %1108 = vmatprep.subr.bf16.mxu0 0
    %1109 = vmatpush1.bf16.msra.mxu0 %v1056
    %1110 = vmatprep.subr.bf16.mxu0 0
    %1111 = vmatpush1.bf16.msra.mxu0 %v1057
    %1112 = vmatprep.subr.bf16.mxu0 0
    %1113 = vmatpush1.bf16.msra.mxu0 %v1058
    %1114 = vmatprep.subr.bf16.mxu0 0
    %1115 = vmatpush1.bf16.msra.mxu0 %v1059
    %1116 = vmatprep.subr.bf16.mxu0 0
    %1117 = vmatpush1.bf16.msra.mxu0 %v1060
    %1118 = vmatprep.subr.bf16.mxu0 0
    %1119 = vmatpush1.bf16.msra.mxu0 %v1061
    %1120 = vmatprep.subr.bf16.mxu0 0
    %1121 = vmatpush1.bf16.msra.mxu0 %v1062
    %1122 = vmatprep.subr.bf16.mxu0 0
    %1123 = vmatpush1.bf16.msra.mxu0 %v1063
    %1124 = vmatprep.subr.bf16.mxu0 0
    %1125 = vmatpush1.bf16.msra.mxu0 %v1064
    %1126 = vmatprep.subr.bf16.mxu0 0
    %1127 = vmatpush1.bf16.msra.mxu0 %v1065
    %1128 = vmatprep.subr.bf16.mxu0 0
    %1129 = vmatpush1.bf16.msra.mxu0 %v1066
    %1130 = vmatprep.subr.bf16.mxu0 0
    %1131 = vmatpush1.bf16.msra.mxu0 %v1067
    %1132 = vmatprep.mubr.bf16.mxu0 %v909
    %1133 = vmatmul.mubr.bf16.gmra.mrb[0].mxu0 %v908
    %v1134 = vpop.f32.mrb[0].mxu0
    %v1135 = vadd.f32 0.0, %v1134
    %v1136 = vpop.f32.mrb[0].mxu0
    %v1137 = vpop.f32.mrb[0].mxu0
    %v1138 = vadd.f32 0.0, %v1137
    %v1139 = vpop.f32.mrb[0].mxu0
    %1140 = vmatprep.mubr.bf16.mxu0 %v912
    %1141 = vmatmul.mubr.bf16.gmra.mrb[0].mxu0 %v911
    %v1142 = vpop.f32.mrb[0].mxu0
    %v1143 = vadd.f32 0.0, %v1142
    %v1144 = vpop.f32.mrb[0].mxu0
    %v1145 = vpop.f32.mrb[0].mxu0
    %v1146 = vadd.f32 0.0, %v1145
    %v1147 = vpop.f32.mrb[0].mxu0
    %1148 = vmatprep.mubr.bf16.mxu0 %v915
    %1149 = vmatmul.mubr.bf16.gmra.mrb[0].mxu0 %v914
    %v1150 = vpop.f32.mrb[0].mxu0
    %v1151 = vadd.f32 0.0, %v1150
    %v1152 = vpop.f32.mrb[0].mxu0
    %v1153 = vpop.f32.mrb[0].mxu0
    %v1154 = vadd.f32 0.0, %v1153
    %v1155 = vpop.f32.mrb[0].mxu0
    %1156 = vmatprep.mubr.bf16.mxu0 %v918
    %1157 = vmatmul.mubr.bf16.gmra.mrb[0].mxu0 %v917
    %v1158 = vpop.f32.mrb[0].mxu0
    %v1159 = vadd.f32 0.0, %v1158
    %v1160 = vpop.f32.mrb[0].mxu0
    %v1161 = vpop.f32.mrb[0].mxu0
    %v1162 = vadd.f32 0.0, %v1161
    %v1163 = vpop.f32.mrb[0].mxu0
    %1164 = vmatprep.mubr.bf16.mxu0 %v921
    %1165 = vmatmul.mubr.bf16.gmra.mrb[0].mxu0 %v920
    %v1166 = vpop.f32.mrb[0].mxu0
    %v1167 = vadd.f32 0.0, %v1166
    %v1168 = vpop.f32.mrb[0].mxu0
    %v1169 = vpop.f32.mrb[0].mxu0
    %v1170 = vadd.f32 0.0, %v1169
    %v1171 = vpop.f32.mrb[0].mxu0
    %1172 = vmatprep.mubr.bf16.mxu0 %v924
    %1173 = vmatmul.mubr.bf16.gmra.mrb[0].mxu0 %v923
    %v1174 = vpop.f32.mrb[0].mxu0
    %v1175 = vadd.f32 0.0, %v1174
    %v1176 = vpop.f32.mrb[0].mxu0
    %v1177 = vpop.f32.mrb[0].mxu0
    %v1178 = vadd.f32 0.0, %v1177
    %v1179 = vpop.f32.mrb[0].mxu0
    %1180 = vmatprep.mubr.bf16.mxu0 %v927
    %1181 = vmatmul.mubr.bf16.gmra.mrb[0].mxu0 %v926
    %v1182 = vpop.f32.mrb[0].mxu0
    %v1183 = vadd.f32 0.0, %v1182
    %v1184 = vpop.f32.mrb[0].mxu0
    %v1185 = vpop.f32.mrb[0].mxu0
    %v1186 = vadd.f32 0.0, %v1185
    %v1187 = vpop.f32.mrb[0].mxu0
    %1188 = vmatprep.mubr.bf16.mxu0 %v930
    %1189 = vmatmul.mubr.bf16.gmra.mrb[0].mxu0 %v929
    %v1190 = vpop.f32.mrb[0].mxu0
    %v1191 = vadd.f32 0.0, %v1190
    %v1192 = vpop.f32.mrb[0].mxu0
    %v1193 = vpop.f32.mrb[0].mxu0
    %v1194 = vadd.f32 0.0, %v1193
    %v1195 = vpop.f32.mrb[0].mxu0
    %1196 = vdwg.mxu0
    %1197 = vmatprep.subr.bf16.mxu0 0
    %1198 = vmatpush1.bf16.msra.mxu0 %v1068
    %1199 = vmatprep.subr.bf16.mxu0 0
    %1200 = vmatpush1.bf16.msra.mxu0 %v1069
    %1201 = vmatprep.subr.bf16.mxu0 0
    %1202 = vmatpush1.bf16.msra.mxu0 %v1070
    %1203 = vmatprep.subr.bf16.mxu0 0
    %1204 = vmatpush1.bf16.msra.mxu0 %v1071
    %1205 = vmatprep.subr.bf16.mxu0 0
    %1206 = vmatpush1.bf16.msra.mxu0 %v1072
    %1207 = vmatprep.subr.bf16.mxu0 0
    %1208 = vmatpush1.bf16.msra.mxu0 %v1073
    %1209 = vmatprep.subr.bf16.mxu0 0
    %1210 = vmatpush1.bf16.msra.mxu0 %v1074
    %1211 = vmatprep.subr.bf16.mxu0 0
    %1212 = vmatpush1.bf16.msra.mxu0 %v1075
    %1213 = vmatprep.subr.bf16.mxu0 0
    %1214 = vmatpush1.bf16.msra.mxu0 0
    %1215 = vmatprep.subr.bf16.mxu0 0
    %1216 = vmatpush1.bf16.msra.mxu0 0
    %1217 = vmatprep.subr.bf16.mxu0 0
    %1218 = vmatpush1.bf16.msra.mxu0 0
    %1219 = vmatprep.subr.bf16.mxu0 0
    %1220 = vmatpush1.bf16.msra.mxu0 0
    %1221 = vmatprep.subr.bf16.mxu0 0
    %1222 = vmatpush1.bf16.msra.mxu0 0
    %1223 = vmatprep.subr.bf16.mxu0 0
    %1224 = vmatpush1.bf16.msra.mxu0 0
    %1225 = vmatprep.subr.bf16.mxu0 0
    %1226 = vmatpush1.bf16.msra.mxu0 0
    %1227 = vmatprep.subr.bf16.mxu0 0
    %1228 = vmatpush1.bf16.msra.mxu0 0
    %1229 = vmatprep.mubr.bf16.mxu0 0
    %1230 = vmatmul.mubr.bf16.gmra.mrb[0].mxu0 %v910
    %v1231 = vpop.f32.mrb[0].mxu0
    %v1232 = vadd.f32 %v1135, %v1231
    %v1233 = vpop.f32.mrb[0].mxu0
    %v1234 = vpop.f32.mrb[0].mxu0
    %v1235 = vadd.f32 %v1138, %v1234
    %v1236 = vpop.f32.mrb[0].mxu0
    %1237 = vmatprep.mubr.bf16.mxu0 0
    %1238 = vmatmul.mubr.bf16.gmra.mrb[0].mxu0 %v913
    %v1239 = vpop.f32.mrb[0].mxu0
    %v1240 = vadd.f32 %v1143, %v1239
    %v1241 = vpop.f32.mrb[0].mxu0
    %v1242 = vpop.f32.mrb[0].mxu0
    %v1243 = vadd.f32 %v1146, %v1242
    %v1244 = vpop.f32.mrb[0].mxu0
    %1245 = vmatprep.mubr.bf16.mxu0 0
    %1246 = vmatmul.mubr.bf16.gmra.mrb[0].mxu0 %v916
    %v1247 = vpop.f32.mrb[0].mxu0
    %v1248 = vadd.f32 %v1151, %v1247
    %v1249 = vpop.f32.mrb[0].mxu0
    %v1250 = vpop.f32.mrb[0].mxu0
    %v1251 = vadd.f32 %v1154, %v1250
    %v1252 = vpop.f32.mrb[0].mxu0
    %1253 = vmatprep.mubr.bf16.mxu0 0
    %1254 = vmatmul.mubr.bf16.gmra.mrb[0].mxu0 %v919
    %v1255 = vpop.f32.mrb[0].mxu0
    %v1256 = vadd.f32 %v1159, %v1255
    %v1257 = vpop.f32.mrb[0].mxu0
    %v1258 = vpop.f32.mrb[0].mxu0
    %v1259 = vadd.f32 %v1162, %v1258
    %v1260 = vpop.f32.mrb[0].mxu0
    %1261 = vmatprep.mubr.bf16.mxu0 0
    %1262 = vmatmul.mubr.bf16.gmra.mrb[0].mxu0 %v922
    %v1263 = vpop.f32.mrb[0].mxu0
    %v1264 = vadd.f32 %v1167, %v1263
    %v1265 = vpop.f32.mrb[0].mxu0
    %v1266 = vpop.f32.mrb[0].mxu0
    %v1267 = vadd.f32 %v1170, %v1266
    %v1268 = vpop.f32.mrb[0].mxu0
    %1269 = vmatprep.mubr.bf16.mxu0 0
    %1270 = vmatmul.mubr.bf16.gmra.mrb[0].mxu0 %v925
    %v1271 = vpop.f32.mrb[0].mxu0
    %v1272 = vadd.f32 %v1175, %v1271
    %v1273 = vpop.f32.mrb[0].mxu0
    %v1274 = vpop.f32.mrb[0].mxu0
    %v1275 = vadd.f32 %v1178, %v1274
    %v1276 = vpop.f32.mrb[0].mxu0
    %1277 = vmatprep.mubr.bf16.mxu0 0
    %1278 = vmatmul.mubr.bf16.gmra.mrb[0].mxu0 %v928
    %v1279 = vpop.f32.mrb[0].mxu0
    %v1280 = vadd.f32 %v1183, %v1279
    %v1281 = vpop.f32.mrb[0].mxu0
    %v1282 = vpop.f32.mrb[0].mxu0
    %v1283 = vadd.f32 %v1186, %v1282
    %v1284 = vpop.f32.mrb[0].mxu0
    %1285 = vmatprep.mubr.bf16.mxu0 0
    %1286 = vmatmul.mubr.bf16.gmra.mrb[0].mxu0 %v931
    %v1287 = vpop.f32.mrb[0].mxu0
    %v1288 = vadd.f32 %v1191, %v1287
    %v1289 = vpop.f32.mrb[0].mxu0
    %v1290 = vpop.f32.mrb[0].mxu0
    %v1291 = vadd.f32 %v1194, %v1290
    %v1292 = vpop.f32.mrb[0].mxu0
    %1293 = vdwg.mxu0
    %v1326 = vunpack.c.l.b16 %v667
    %v1327 = vunpack.c.h.b16 %v667
    %v1328 = vunpack.c.l.b16 %v668
    %v1329 = vunpack.c.l.b16 %v669
    %v1330 = vunpack.c.h.b16 %v669
    %v1331 = vunpack.c.l.b16 %v670
    %v1332 = vunpack.c.l.b16 %v671
    %v1333 = vunpack.c.h.b16 %v671
    %v1334 = vunpack.c.l.b16 %v672
    %v1335 = vunpack.c.l.b16 %v673
    %v1336 = vunpack.c.h.b16 %v673
    %v1337 = vunpack.c.l.b16 %v674
    %v1338 = vunpack.c.l.b16 %v675
    %v1339 = vunpack.c.h.b16 %v675
    %v1340 = vunpack.c.l.b16 %v676
    %v1341 = vunpack.c.l.b16 %v677
    %v1342 = vunpack.c.h.b16 %v677
    %v1343 = vunpack.c.l.b16 %v678
    %v1344 = vunpack.c.l.b16 %v679
    %v1345 = vunpack.c.h.b16 %v679
    %v1346 = vunpack.c.l.b16 %v680
    %v1347 = vunpack.c.l.b16 %v681
    %v1348 = vunpack.c.h.b16 %v681
    %v1349 = vunpack.c.l.b16 %v682
    %v1350 = vunpack.c.l.b16 %v683
    %v1351 = vunpack.c.h.b16 %v683
    %v1352 = vunpack.c.l.b16 %v684
    %v1353 = vunpack.c.l.b16 %v685
    %v1354 = vunpack.c.h.b16 %v685
    %v1355 = vunpack.c.l.b16 %v686
    %v1356 = vunpack.c.l.b16 %v687
    %v1357 = vunpack.c.h.b16 %v687
    %v1358 = vunpack.c.l.b16 %v688
    %v1359 = vunpack.c.l.b16 %v689
    %v1360 = vunpack.c.h.b16 %v689
    %v1361 = vunpack.c.l.b16 %v690
    %v1362 = vunpack.c.l.b16 %v691
    %v1363 = vunpack.c.h.b16 %v691
    %v1364 = vunpack.c.l.b16 %v692
    %v1365 = vunpack.c.l.b16 %v693
    %v1366 = vunpack.c.h.b16 %v693
    %v1367 = vunpack.c.l.b16 %v694
    %v1368 = vunpack.c.l.b16 %v695
    %v1369 = vunpack.c.h.b16 %v695
    %v1370 = vunpack.c.l.b16 %v696
    %v1371 = vunpack.c.l.b16 %v697
    %v1372 = vunpack.c.h.b16 %v697
    %v1373 = vunpack.c.l.b16 %v698
    %v1374 = vpack.c.b16 %v1329, %v1326
    %v1375 = vpack.c.b16 %v1330, %v1327
    %v1376 = vpack.c.b16 %v1331, %v1328
    %v1377 = vpack.c.b16 %v1335, %v1332
    %v1378 = vpack.c.b16 %v1336, %v1333
    %v1379 = vpack.c.b16 %v1337, %v1334
    %v1380 = vpack.c.b16 %v1341, %v1338
    %v1381 = vpack.c.b16 %v1342, %v1339
    %v1382 = vpack.c.b16 %v1343, %v1340
    %v1383 = vpack.c.b16 %v1347, %v1344
    %v1384 = vpack.c.b16 %v1348, %v1345
    %v1385 = vpack.c.b16 %v1349, %v1346
    %v1386 = vpack.c.b16 %v1353, %v1350
    %v1387 = vpack.c.b16 %v1354, %v1351
    %v1388 = vpack.c.b16 %v1355, %v1352
    %v1389 = vpack.c.b16 %v1359, %v1356
    %v1390 = vpack.c.b16 %v1360, %v1357
    %v1391 = vpack.c.b16 %v1361, %v1358
    %v1392 = vpack.c.b16 %v1365, %v1362
    %v1393 = vpack.c.b16 %v1366, %v1363
    %v1394 = vpack.c.b16 %v1367, %v1364
    %v1395 = vpack.c.b16 %v1371, %v1368
    %v1396 = vpack.c.b16 %v1372, %v1369
    %v1397 = vpack.c.b16 %v1373, %v1370
    %v1470 = vunpack.c.l.b16 %v699
    %v1471 = vunpack.c.l.b16 %v700
    %v1472 = vunpack.c.l.b16 %v701
    %v1473 = vunpack.c.l.b16 %v702
    %v1474 = vunpack.c.l.b16 %v703
    %v1475 = vunpack.c.l.b16 %v704
    %v1476 = vunpack.c.l.b16 %v705
    %v1477 = vunpack.c.l.b16 %v706
    %v1478 = vunpack.c.l.b16 %v707
    %v1479 = vunpack.c.l.b16 %v708
    %v1480 = vunpack.c.l.b16 %v709
    %v1481 = vunpack.c.l.b16 %v710
    %v1482 = vunpack.c.l.b16 %v711
    %v1483 = vunpack.c.l.b16 %v712
    %v1484 = vunpack.c.l.b16 %v713
    %v1485 = vunpack.c.l.b16 %v714
    %v1486 = vunpack.c.l.b16 %v715
    %v1487 = vunpack.c.l.b16 %v716
    %v1488 = vunpack.c.l.b16 %v717
    %v1489 = vunpack.c.l.b16 %v718
    %v1490 = vunpack.c.l.b16 %v719
    %v1491 = vunpack.c.l.b16 %v720
    %v1492 = vunpack.c.l.b16 %v721
    %v1493 = vunpack.c.l.b16 %v722
    %v1494 = vunpack.c.l.b16 %v723
    %v1495 = vunpack.c.l.b16 %v724
    %v1496 = vunpack.c.l.b16 %v725
    %v1497 = vunpack.c.l.b16 %v726
    %v1498 = vunpack.c.l.b16 %v727
    %v1499 = vunpack.c.l.b16 %v728
    %v1500 = vunpack.c.l.b16 %v729
    %v1501 = vunpack.c.l.b16 %v730
    %v1502 = vunpack.c.l.b16 %v731
    %v1503 = vunpack.c.l.b16 %v732
    %v1504 = vunpack.c.l.b16 %v733
    %v1505 = vunpack.c.l.b16 %v734
    %v1506 = vunpack.c.l.b16 %v735
    %v1507 = vunpack.c.l.b16 %v736
    %v1508 = vunpack.c.l.b16 %v737
    %v1509 = vunpack.c.l.b16 %v738
    %v1510 = vunpack.c.l.b16 %v739
    %v1511 = vunpack.c.l.b16 %v740
    %v1512 = vunpack.c.l.b16 %v741
    %v1513 = vunpack.c.l.b16 %v742
    %v1514 = vunpack.c.l.b16 %v743
    %v1515 = vunpack.c.l.b16 %v744
    %v1516 = vunpack.c.l.b16 %v745
    %v1517 = vunpack.c.l.b16 %v746
    %v1518 = vpack.c.b16 %v1471, %v1470
    %v1519 = vpack.c.b16 %v1473, %v1472
    %v1520 = vpack.c.b16 %v1475, %v1474
    %v1521 = vpack.c.b16 %v1477, %v1476
    %v1522 = vpack.c.b16 %v1479, %v1478
    %v1523 = vpack.c.b16 %v1481, %v1480
    %v1524 = vpack.c.b16 %v1483, %v1482
    %v1525 = vpack.c.b16 %v1485, %v1484
    %v1526 = vpack.c.b16 %v1487, %v1486
    %v1527 = vpack.c.b16 %v1489, %v1488
    %v1528 = vpack.c.b16 %v1491, %v1490
    %v1529 = vpack.c.b16 %v1493, %v1492
    %v1530 = vpack.c.b16 %v1495, %v1494
    %v1531 = vpack.c.b16 %v1497, %v1496
    %v1532 = vpack.c.b16 %v1499, %v1498
    %v1533 = vpack.c.b16 %v1501, %v1500
    %v1534 = vpack.c.b16 %v1503, %v1502
    %v1535 = vpack.c.b16 %v1505, %v1504
    %v1536 = vpack.c.b16 %v1507, %v1506
    %v1537 = vpack.c.b16 %v1509, %v1508
    %v1538 = vpack.c.b16 %v1511, %v1510
    %v1539 = vpack.c.b16 %v1513, %v1512
    %v1540 = vpack.c.b16 %v1515, %v1514
    %v1541 = vpack.c.b16 %v1517, %v1516
    %1566 = vmatprep.subr.bf16.mxu0 0
    %1567 = vmatpush1.bf16.msra.mxu0 %v1518
    %1568 = vmatprep.subr.bf16.mxu0 0
    %1569 = vmatpush1.bf16.msra.mxu0 %v1519
    %1570 = vmatprep.subr.bf16.mxu0 0
    %1571 = vmatpush1.bf16.msra.mxu0 %v1520
    %1572 = vmatprep.subr.bf16.mxu0 0
    %1573 = vmatpush1.bf16.msra.mxu0 %v1521
    %1574 = vmatprep.subr.bf16.mxu0 0
    %1575 = vmatpush1.bf16.msra.mxu0 %v1522
    %1576 = vmatprep.subr.bf16.mxu0 0
    %1577 = vmatpush1.bf16.msra.mxu0 %v1523
    %1578 = vmatprep.subr.bf16.mxu0 0
    %1579 = vmatpush1.bf16.msra.mxu0 %v1524
    %1580 = vmatprep.subr.bf16.mxu0 0
    %1581 = vmatpush1.bf16.msra.mxu0 %v1525
    %1582 = vmatprep.subr.bf16.mxu0 0
    %1583 = vmatpush1.bf16.msra.mxu0 %v1526
    %1584 = vmatprep.subr.bf16.mxu0 0
    %1585 = vmatpush1.bf16.msra.mxu0 %v1527
    %1586 = vmatprep.subr.bf16.mxu0 0
    %1587 = vmatpush1.bf16.msra.mxu0 %v1528
    %1588 = vmatprep.subr.bf16.mxu0 0
    %1589 = vmatpush1.bf16.msra.mxu0 %v1529
    %1590 = vmatprep.subr.bf16.mxu0 0
    %1591 = vmatpush1.bf16.msra.mxu0 %v1530
    %1592 = vmatprep.subr.bf16.mxu0 0
    %1593 = vmatpush1.bf16.msra.mxu0 %v1531
    %1594 = vmatprep.subr.bf16.mxu0 0
    %1595 = vmatpush1.bf16.msra.mxu0 %v1532
    %1596 = vmatprep.subr.bf16.mxu0 0
    %1597 = vmatpush1.bf16.msra.mxu0 %v1533
    %1598 = vmatprep.mubr.bf16.mxu0 %v1375
    %1599 = vmatmul.mubr.bf16.gmra.mrb[0].mxu0 %v1374
    %v1600 = vpop.f32.mrb[0].mxu0
    %v1601 = vadd.f32 %v1232, %v1600
    %v1602 = vpop.f32.mrb[0].mxu0
    %v1603 = vpop.f32.mrb[0].mxu0
    %v1604 = vadd.f32 %v1235, %v1603
    %v1605 = vpop.f32.mrb[0].mxu0
    %1606 = vmatprep.mubr.bf16.mxu0 %v1378
    %1607 = vmatmul.mubr.bf16.gmra.mrb[0].mxu0 %v1377
    %v1608 = vpop.f32.mrb[0].mxu0
    %v1609 = vadd.f32 %v1240, %v1608
    %v1610 = vpop.f32.mrb[0].mxu0
    %v1611 = vpop.f32.mrb[0].mxu0
    %v1612 = vadd.f32 %v1243, %v1611
    %v1613 = vpop.f32.mrb[0].mxu0
    %1614 = vmatprep.mubr.bf16.mxu0 %v1381
    %1615 = vmatmul.mubr.bf16.gmra.mrb[0].mxu0 %v1380
    %v1616 = vpop.f32.mrb[0].mxu0
    %v1617 = vadd.f32 %v1248, %v1616
    %v1618 = vpop.f32.mrb[0].mxu0
    %v1619 = vpop.f32.mrb[0].mxu0
    %v1620 = vadd.f32 %v1251, %v1619
    %v1621 = vpop.f32.mrb[0].mxu0
    %1622 = vmatprep.mubr.bf16.mxu0 %v1384
    %1623 = vmatmul.mubr.bf16.gmra.mrb[0].mxu0 %v1383
    %v1624 = vpop.f32.mrb[0].mxu0
    %v1625 = vadd.f32 %v1256, %v1624
    %v1626 = vpop.f32.mrb[0].mxu0
    %v1627 = vpop.f32.mrb[0].mxu0
    %v1628 = vadd.f32 %v1259, %v1627
    %v1629 = vpop.f32.mrb[0].mxu0
    %1630 = vmatprep.mubr.bf16.mxu0 %v1387
    %1631 = vmatmul.mubr.bf16.gmra.mrb[0].mxu0 %v1386
    %v1632 = vpop.f32.mrb[0].mxu0
    %v1633 = vadd.f32 %v1264, %v1632
    %v1634 = vpop.f32.mrb[0].mxu0
    %v1635 = vpop.f32.mrb[0].mxu0
    %v1636 = vadd.f32 %v1267, %v1635
    %v1637 = vpop.f32.mrb[0].mxu0
    %1638 = vmatprep.mubr.bf16.mxu0 %v1390
    %1639 = vmatmul.mubr.bf16.gmra.mrb[0].mxu0 %v1389
    %v1640 = vpop.f32.mrb[0].mxu0
    %v1641 = vadd.f32 %v1272, %v1640
    %v1642 = vpop.f32.mrb[0].mxu0
    %v1643 = vpop.f32.mrb[0].mxu0
    %v1644 = vadd.f32 %v1275, %v1643
    %v1645 = vpop.f32.mrb[0].mxu0
    %1646 = vmatprep.mubr.bf16.mxu0 %v1393
    %1647 = vmatmul.mubr.bf16.gmra.mrb[0].mxu0 %v1392
    %v1648 = vpop.f32.mrb[0].mxu0
    %v1649 = vadd.f32 %v1280, %v1648
    %v1650 = vpop.f32.mrb[0].mxu0
    %v1651 = vpop.f32.mrb[0].mxu0
    %v1652 = vadd.f32 %v1283, %v1651
    %v1653 = vpop.f32.mrb[0].mxu0
    %1654 = vmatprep.mubr.bf16.mxu0 %v1396
    %1655 = vmatmul.mubr.bf16.gmra.mrb[0].mxu0 %v1395
    %v1656 = vpop.f32.mrb[0].mxu0
    %v1657 = vadd.f32 %v1288, %v1656
    %v1658 = vpop.f32.mrb[0].mxu0
    %v1659 = vpop.f32.mrb[0].mxu0
    %v1660 = vadd.f32 %v1291, %v1659
    %v1661 = vpop.f32.mrb[0].mxu0
    %1662 = vdwg.mxu0
    %1663 = vmatprep.subr.bf16.mxu0 0
    %1664 = vmatpush1.bf16.msra.mxu0 %v1534
    %1665 = vmatprep.subr.bf16.mxu0 0
    %1666 = vmatpush1.bf16.msra.mxu0 %v1535
    %1667 = vmatprep.subr.bf16.mxu0 0
    %1668 = vmatpush1.bf16.msra.mxu0 %v1536
    %1669 = vmatprep.subr.bf16.mxu0 0
    %1670 = vmatpush1.bf16.msra.mxu0 %v1537
    %1671 = vmatprep.subr.bf16.mxu0 0
    %1672 = vmatpush1.bf16.msra.mxu0 %v1538
    %1673 = vmatprep.subr.bf16.mxu0 0
    %1674 = vmatpush1.bf16.msra.mxu0 %v1539
    %1675 = vmatprep.subr.bf16.mxu0 0
    %1676 = vmatpush1.bf16.msra.mxu0 %v1540
    %1677 = vmatprep.subr.bf16.mxu0 0
    %1678 = vmatpush1.bf16.msra.mxu0 %v1541
    %1679 = vmatprep.subr.bf16.mxu0 0
    %1680 = vmatpush1.bf16.msra.mxu0 0
    %1681 = vmatprep.subr.bf16.mxu0 0
    %1682 = vmatpush1.bf16.msra.mxu0 0
    %1683 = vmatprep.subr.bf16.mxu0 0
    %1684 = vmatpush1.bf16.msra.mxu0 0
    %1685 = vmatprep.subr.bf16.mxu0 0
    %1686 = vmatpush1.bf16.msra.mxu0 0
    %1687 = vmatprep.subr.bf16.mxu0 0
    %1688 = vmatpush1.bf16.msra.mxu0 0
    %1689 = vmatprep.subr.bf16.mxu0 0
    %1690 = vmatpush1.bf16.msra.mxu0 0
    %1691 = vmatprep.subr.bf16.mxu0 0
    %1692 = vmatpush1.bf16.msra.mxu0 0
    %1693 = vmatprep.subr.bf16.mxu0 0
    %1694 = vmatpush1.bf16.msra.mxu0 0
    %1695 = vmatprep.mubr.bf16.mxu0 0
    %1696 = vmatmul.mubr.bf16.gmra.mrb[0].mxu0 %v1376
    %v1697 = vpop.f32.mrb[0].mxu0
    %v1698 = vadd.f32 %v1601, %v1697
    %v1699 = vpop.f32.mrb[0].mxu0
    %v1700 = vpop.f32.mrb[0].mxu0
    %v1701 = vadd.f32 %v1604, %v1700
    %v1702 = vpop.f32.mrb[0].mxu0
    %1703 = vmatprep.mubr.bf16.mxu0 0
    %1704 = vmatmul.mubr.bf16.gmra.mrb[0].mxu0 %v1379
    %v1705 = vpop.f32.mrb[0].mxu0
    %v1706 = vadd.f32 %v1609, %v1705
    %v1707 = vpop.f32.mrb[0].mxu0
    %v1708 = vpop.f32.mrb[0].mxu0
    %v1709 = vadd.f32 %v1612, %v1708
    %v1710 = vpop.f32.mrb[0].mxu0
    %1711 = vmatprep.mubr.bf16.mxu0 0
    %1712 = vmatmul.mubr.bf16.gmra.mrb[0].mxu0 %v1382
    %v1713 = vpop.f32.mrb[0].mxu0
    %v1714 = vadd.f32 %v1617, %v1713
    %v1715 = vpop.f32.mrb[0].mxu0
    %v1716 = vpop.f32.mrb[0].mxu0
    %v1717 = vadd.f32 %v1620, %v1716
    %v1718 = vpop.f32.mrb[0].mxu0
    %1719 = vmatprep.mubr.bf16.mxu0 0
    %1720 = vmatmul.mubr.bf16.gmra.mrb[0].mxu0 %v1385
    %v1721 = vpop.f32.mrb[0].mxu0
    %v1722 = vadd.f32 %v1625, %v1721
    %v1723 = vpop.f32.mrb[0].mxu0
    %v1724 = vpop.f32.mrb[0].mxu0
    %v1725 = vadd.f32 %v1628, %v1724
    %v1726 = vpop.f32.mrb[0].mxu0
    %1727 = vmatprep.mubr.bf16.mxu0 0
    %1728 = vmatmul.mubr.bf16.gmra.mrb[0].mxu0 %v1388
    %v1729 = vpop.f32.mrb[0].mxu0
    %v1730 = vadd.f32 %v1633, %v1729
    %v1731 = vpop.f32.mrb[0].mxu0
    %v1732 = vpop.f32.mrb[0].mxu0
    %v1733 = vadd.f32 %v1636, %v1732
    %v1734 = vpop.f32.mrb[0].mxu0
    %1735 = vmatprep.mubr.bf16.mxu0 0
    %1736 = vmatmul.mubr.bf16.gmra.mrb[0].mxu0 %v1391
    %v1737 = vpop.f32.mrb[0].mxu0
    %v1738 = vadd.f32 %v1641, %v1737
    %v1739 = vpop.f32.mrb[0].mxu0
    %v1740 = vpop.f32.mrb[0].mxu0
    %v1741 = vadd.f32 %v1644, %v1740
    %v1742 = vpop.f32.mrb[0].mxu0
    %1743 = vmatprep.mubr.bf16.mxu0 0
    %1744 = vmatmul.mubr.bf16.gmra.mrb[0].mxu0 %v1394
    %v1745 = vpop.f32.mrb[0].mxu0
    %v1746 = vadd.f32 %v1649, %v1745
    %v1747 = vpop.f32.mrb[0].mxu0
    %v1748 = vpop.f32.mrb[0].mxu0
    %v1749 = vadd.f32 %v1652, %v1748
    %v1750 = vpop.f32.mrb[0].mxu0
    %1751 = vmatprep.mubr.bf16.mxu0 0
    %1752 = vmatmul.mubr.bf16.gmra.mrb[0].mxu0 %v1397
    %v1753 = vpop.f32.mrb[0].mxu0
    %v1754 = vadd.f32 %v1657, %v1753
    %v1755 = vpop.f32.mrb[0].mxu0
    %v1756 = vpop.f32.mrb[0].mxu0
    %v1757 = vadd.f32 %v1660, %v1756
    %v1758 = vpop.f32.mrb[0].mxu0
    %1759 = vdwg.mxu0
    %s1760 = scalar_lea.vmem [#allocation2], 24
    %v1761 = vld [vmem:[%s1760] sm:$0xff]
    %v1762 = vld [vmem:[%s1760 + $0x8] sm:$0xf]
    %v1763 = vld [vmem:[%s1760 + $0xc] sm:$0xff]
    %v1764 = vld [vmem:[%s1760 + $0x14] sm:$0xf]
    %v1765 = vld [vmem:[%s1760 + $0x18] sm:$0xff]
    %v1766 = vld [vmem:[%s1760 + $0x20] sm:$0xf]
    %v1767 = vld [vmem:[%s1760 + $0x24] sm:$0xff]
    %v1768 = vld [vmem:[%s1760 + $0x2c] sm:$0xf]
    %v1769 = vld [vmem:[%s1760 + $0x30] sm:$0xff]
    %v1770 = vld [vmem:[%s1760 + $0x38] sm:$0xf]
    %v1771 = vld [vmem:[%s1760 + $0x3c] sm:$0xff]
    %v1772 = vld [vmem:[%s1760 + $0x44] sm:$0xf]
    %v1773 = vld [vmem:[%s1760 + $0x48] sm:$0xff]
    %v1774 = vld [vmem:[%s1760 + $0x50] sm:$0xf]
    %v1775 = vld [vmem:[%s1760 + $0x54] sm:$0xff]
    %v1776 = vld [vmem:[%s1760 + $0x5c] sm:$0xf]
    %v1777 = vld [vmem:[%s1760 + $0x78] sm:$0xff]
    %v1778 = vld [vmem:[%s1760 + $0x80] sm:$0xf]
    %v1779 = vld [vmem:[%s1760 + $0x84] sm:$0xff]
    %v1780 = vld [vmem:[%s1760 + $0x8c] sm:$0xf]
    %v1781 = vld [vmem:[%s1760 + $0x90] sm:$0xff]
    %v1782 = vld [vmem:[%s1760 + $0x98] sm:$0xf]
    %v1783 = vld [vmem:[%s1760 + $0x9c] sm:$0xff]
    %v1784 = vld [vmem:[%s1760 + $0xa4] sm:$0xf]
    %v1785 = vld [vmem:[%s1760 + $0xa8] sm:$0xff]
    %v1786 = vld [vmem:[%s1760 + $0xb0] sm:$0xf]
    %v1787 = vld [vmem:[%s1760 + $0xb4] sm:$0xff]
    %v1788 = vld [vmem:[%s1760 + $0xbc] sm:$0xf]
    %v1789 = vld [vmem:[%s1760 + $0xc0] sm:$0xff]
    %v1790 = vld [vmem:[%s1760 + $0xc8] sm:$0xf]
    %v1791 = vld [vmem:[%s1760 + $0xcc] sm:$0xff]
    %v1792 = vld [vmem:[%s1760 + $0xd4] sm:$0xf]
    %s1793 = scalar_lea.vmem [#allocation8], 384
    %v1794 = vld [vmem:[%s1793] sm:$0xf]
    %v1795 = vld [vmem:[%s1793 + $0x4] sm:$0xf]
    %v1796 = vld [vmem:[%s1793 + $0x8] sm:$0xf]
    %v1797 = vld [vmem:[%s1793 + $0xc] sm:$0xf]
    %v1798 = vld [vmem:[%s1793 + $0x10] sm:$0xf]
    %v1799 = vld [vmem:[%s1793 + $0x14] sm:$0xf]
    %v1800 = vld [vmem:[%s1793 + $0x18] sm:$0xf]
    %v1801 = vld [vmem:[%s1793 + $0x1c] sm:$0xf]
    %v1802 = vld [vmem:[%s1793 + $0x20] sm:$0xf]
    %v1803 = vld [vmem:[%s1793 + $0x24] sm:$0xf]
    %v1804 = vld [vmem:[%s1793 + $0x28] sm:$0xf]
    %v1805 = vld [vmem:[%s1793 + $0x2c] sm:$0xf]
    %v1806 = vld [vmem:[%s1793 + $0x30] sm:$0xf]
    %v1807 = vld [vmem:[%s1793 + $0x34] sm:$0xf]
    %v1808 = vld [vmem:[%s1793 + $0x38] sm:$0xf]
    %v1809 = vld [vmem:[%s1793 + $0x3c] sm:$0xf]
    %v1810 = vld [vmem:[%s1793 + $0x40] sm:$0xf]
    %v1811 = vld [vmem:[%s1793 + $0x44] sm:$0xf]
    %v1812 = vld [vmem:[%s1793 + $0x48] sm:$0xf]
    %v1813 = vld [vmem:[%s1793 + $0x4c] sm:$0xf]
    %v1814 = vld [vmem:[%s1793 + $0x50] sm:$0xf]
    %v1815 = vld [vmem:[%s1793 + $0x54] sm:$0xf]
    %v1816 = vld [vmem:[%s1793 + $0x58] sm:$0xf]
    %v1817 = vld [vmem:[%s1793 + $0x5c] sm:$0xf]
    %v1818 = vld [vmem:[%s1793 + $0x60] sm:$0xf]
    %v1819 = vld [vmem:[%s1793 + $0x64] sm:$0xf]
    %v1820 = vld [vmem:[%s1793 + $0x68] sm:$0xf]
    %v1821 = vld [vmem:[%s1793 + $0x6c] sm:$0xf]
    %v1822 = vld [vmem:[%s1793 + $0x70] sm:$0xf]
    %v1823 = vld [vmem:[%s1793 + $0x74] sm:$0xf]
    %v1824 = vld [vmem:[%s1793 + $0x78] sm:$0xf]
    %v1825 = vld [vmem:[%s1793 + $0x7c] sm:$0xf]
    %v1826 = vld [vmem:[%s1793 + $0x80] sm:$0xf]
    %v1827 = vld [vmem:[%s1793 + $0x84] sm:$0xf]
    %v1828 = vld [vmem:[%s1793 + $0x88] sm:$0xf]
    %v1829 = vld [vmem:[%s1793 + $0x8c] sm:$0xf]
    %v1830 = vld [vmem:[%s1793 + $0x90] sm:$0xf]
    %v1831 = vld [vmem:[%s1793 + $0x94] sm:$0xf]
    %v1832 = vld [vmem:[%s1793 + $0x98] sm:$0xf]
    %v1833 = vld [vmem:[%s1793 + $0x9c] sm:$0xf]
    %v1834 = vld [vmem:[%s1793 + $0xa0] sm:$0xf]
    %v1835 = vld [vmem:[%s1793 + $0xa4] sm:$0xf]
    %v1836 = vld [vmem:[%s1793 + $0xa8] sm:$0xf]
    %v1837 = vld [vmem:[%s1793 + $0xac] sm:$0xf]
    %v1838 = vld [vmem:[%s1793 + $0xb0] sm:$0xf]
    %v1839 = vld [vmem:[%s1793 + $0xb4] sm:$0xf]
    %v1840 = vld [vmem:[%s1793 + $0xb8] sm:$0xf]
    %v1841 = vld [vmem:[%s1793 + $0xbc] sm:$0xf]
    %v1874 = vunpack.c.l.b16 %v1761
    %v1875 = vunpack.c.h.b16 %v1761
    %v1876 = vunpack.c.l.b16 %v1762
    %v1877 = vunpack.c.l.b16 %v1763
    %v1878 = vunpack.c.h.b16 %v1763
    %v1879 = vunpack.c.l.b16 %v1764
    %v1880 = vunpack.c.l.b16 %v1765
    %v1881 = vunpack.c.h.b16 %v1765
    %v1882 = vunpack.c.l.b16 %v1766
    %v1883 = vunpack.c.l.b16 %v1767
    %v1884 = vunpack.c.h.b16 %v1767
    %v1885 = vunpack.c.l.b16 %v1768
    %v1886 = vunpack.c.l.b16 %v1769
    %v1887 = vunpack.c.h.b16 %v1769
    %v1888 = vunpack.c.l.b16 %v1770
    %v1889 = vunpack.c.l.b16 %v1771
    %v1890 = vunpack.c.h.b16 %v1771
    %v1891 = vunpack.c.l.b16 %v1772
    %v1892 = vunpack.c.l.b16 %v1773
    %v1893 = vunpack.c.h.b16 %v1773
    %v1894 = vunpack.c.l.b16 %v1774
    %v1895 = vunpack.c.l.b16 %v1775
    %v1896 = vunpack.c.h.b16 %v1775
    %v1897 = vunpack.c.l.b16 %v1776
    %v1898 = vunpack.c.l.b16 %v1777
    %v1899 = vunpack.c.h.b16 %v1777
    %v1900 = vunpack.c.l.b16 %v1778
    %v1901 = vunpack.c.l.b16 %v1779
    %v1902 = vunpack.c.h.b16 %v1779
    %v1903 = vunpack.c.l.b16 %v1780
    %v1904 = vunpack.c.l.b16 %v1781
    %v1905 = vunpack.c.h.b16 %v1781
    %v1906 = vunpack.c.l.b16 %v1782
    %v1907 = vunpack.c.l.b16 %v1783
    %v1908 = vunpack.c.h.b16 %v1783
    %v1909 = vunpack.c.l.b16 %v1784
    %v1910 = vunpack.c.l.b16 %v1785
    %v1911 = vunpack.c.h.b16 %v1785
    %v1912 = vunpack.c.l.b16 %v1786
    %v1913 = vunpack.c.l.b16 %v1787
    %v1914 = vunpack.c.h.b16 %v1787
    %v1915 = vunpack.c.l.b16 %v1788
    %v1916 = vunpack.c.l.b16 %v1789
    %v1917 = vunpack.c.h.b16 %v1789
    %v1918 = vunpack.c.l.b16 %v1790
    %v1919 = vunpack.c.l.b16 %v1791
    %v1920 = vunpack.c.h.b16 %v1791
    %v1921 = vunpack.c.l.b16 %v1792
    %v1922 = vpack.c.b16 %v1877, %v1874
    %v1923 = vpack.c.b16 %v1878, %v1875
    %v1924 = vpack.c.b16 %v1879, %v1876
    %v1925 = vpack.c.b16 %v1883, %v1880
    %v1926 = vpack.c.b16 %v1884, %v1881
    %v1927 = vpack.c.b16 %v1885, %v1882
    %v1928 = vpack.c.b16 %v1889, %v1886
    %v1929 = vpack.c.b16 %v1890, %v1887
    %v1930 = vpack.c.b16 %v1891, %v1888
    %v1931 = vpack.c.b16 %v1895, %v1892
    %v1932 = vpack.c.b16 %v1896, %v1893
    %v1933 = vpack.c.b16 %v1897, %v1894
    %v1934 = vpack.c.b16 %v1901, %v1898
    %v1935 = vpack.c.b16 %v1902, %v1899
    %v1936 = vpack.c.b16 %v1903, %v1900
    %v1937 = vpack.c.b16 %v1907, %v1904
    %v1938 = vpack.c.b16 %v1908, %v1905
    %v1939 = vpack.c.b16 %v1909, %v1906
    %v1940 = vpack.c.b16 %v1913, %v1910
    %v1941 = vpack.c.b16 %v1914, %v1911
    %v1942 = vpack.c.b16 %v1915, %v1912
    %v1943 = vpack.c.b16 %v1919, %v1916
    %v1944 = vpack.c.b16 %v1920, %v1917
    %v1945 = vpack.c.b16 %v1921, %v1918
    %v2018 = vunpack.c.l.b16 %v1794
    %v2019 = vunpack.c.l.b16 %v1795
    %v2020 = vunpack.c.l.b16 %v1796
    %v2021 = vunpack.c.l.b16 %v1797
    %v2022 = vunpack.c.l.b16 %v1798
    %v2023 = vunpack.c.l.b16 %v1799
    %v2024 = vunpack.c.l.b16 %v1800
    %v2025 = vunpack.c.l.b16 %v1801
    %v2026 = vunpack.c.l.b16 %v1802
    %v2027 = vunpack.c.l.b16 %v1803
    %v2028 = vunpack.c.l.b16 %v1804
    %v2029 = vunpack.c.l.b16 %v1805
    %v2030 = vunpack.c.l.b16 %v1806
    %v2031 = vunpack.c.l.b16 %v1807
    %v2032 = vunpack.c.l.b16 %v1808
    %v2033 = vunpack.c.l.b16 %v1809
    %v2034 = vunpack.c.l.b16 %v1810
    %v2035 = vunpack.c.l.b16 %v1811
    %v2036 = vunpack.c.l.b16 %v1812
    %v2037 = vunpack.c.l.b16 %v1813
    %v2038 = vunpack.c.l.b16 %v1814
    %v2039 = vunpack.c.l.b16 %v1815
    %v2040 = vunpack.c.l.b16 %v1816
    %v2041 = vunpack.c.l.b16 %v1817
    %v2042 = vunpack.c.l.b16 %v1818
    %v2043 = vunpack.c.l.b16 %v1819
    %v2044 = vunpack.c.l.b16 %v1820
    %v2045 = vunpack.c.l.b16 %v1821
    %v2046 = vunpack.c.l.b16 %v1822
    %v2047 = vunpack.c.l.b16 %v1823
    %v2048 = vunpack.c.l.b16 %v1824
    %v2049 = vunpack.c.l.b16 %v1825
    %v2050 = vunpack.c.l.b16 %v1826
    %v2051 = vunpack.c.l.b16 %v1827
    %v2052 = vunpack.c.l.b16 %v1828
    %v2053 = vunpack.c.l.b16 %v1829
    %v2054 = vunpack.c.l.b16 %v1830
    %v2055 = vunpack.c.l.b16 %v1831
    %v2056 = vunpack.c.l.b16 %v1832
    %v2057 = vunpack.c.l.b16 %v1833
    %v2058 = vunpack.c.l.b16 %v1834
    %v2059 = vunpack.c.l.b16 %v1835
    %v2060 = vunpack.c.l.b16 %v1836
    %v2061 = vunpack.c.l.b16 %v1837
    %v2062 = vunpack.c.l.b16 %v1838
    %v2063 = vunpack.c.l.b16 %v1839
    %v2064 = vunpack.c.l.b16 %v1840
    %v2065 = vunpack.c.l.b16 %v1841
    %v2066 = vpack.c.b16 %v2019, %v2018
    %v2067 = vpack.c.b16 %v2021, %v2020
    %v2068 = vpack.c.b16 %v2023, %v2022
    %v2069 = vpack.c.b16 %v2025, %v2024
    %v2070 = vpack.c.b16 %v2027, %v2026
    %v2071 = vpack.c.b16 %v2029, %v2028
    %v2072 = vpack.c.b16 %v2031, %v2030
    %v2073 = vpack.c.b16 %v2033, %v2032
    %v2074 = vpack.c.b16 %v2035, %v2034
    %v2075 = vpack.c.b16 %v2037, %v2036
    %v2076 = vpack.c.b16 %v2039, %v2038
    %v2077 = vpack.c.b16 %v2041, %v2040
    %v2078 = vpack.c.b16 %v2043, %v2042
    %v2079 = vpack.c.b16 %v2045, %v2044
    %v2080 = vpack.c.b16 %v2047, %v2046
    %v2081 = vpack.c.b16 %v2049, %v2048
    %v2082 = vpack.c.b16 %v2051, %v2050
    %v2083 = vpack.c.b16 %v2053, %v2052
    %v2084 = vpack.c.b16 %v2055, %v2054
    %v2085 = vpack.c.b16 %v2057, %v2056
    %v2086 = vpack.c.b16 %v2059, %v2058
    %v2087 = vpack.c.b16 %v2061, %v2060
    %v2088 = vpack.c.b16 %v2063, %v2062
    %v2089 = vpack.c.b16 %v2065, %v2064
    %2114 = vmatprep.subr.bf16.mxu0 0
    %2115 = vmatpush1.bf16.msra.mxu0 %v2066
    %2116 = vmatprep.subr.bf16.mxu0 0
    %2117 = vmatpush1.bf16.msra.mxu0 %v2067
    %2118 = vmatprep.subr.bf16.mxu0 0
    %2119 = vmatpush1.bf16.msra.mxu0 %v2068
    %2120 = vmatprep.subr.bf16.mxu0 0
    %2121 = vmatpush1.bf16.msra.mxu0 %v2069
    %2122 = vmatprep.subr.bf16.mxu0 0
    %2123 = vmatpush1.bf16.msra.mxu0 %v2070
    %2124 = vmatprep.subr.bf16.mxu0 0
    %2125 = vmatpush1.bf16.msra.mxu0 %v2071
    %2126 = vmatprep.subr.bf16.mxu0 0
    %2127 = vmatpush1.bf16.msra.mxu0 %v2072
    %2128 = vmatprep.subr.bf16.mxu0 0
    %2129 = vmatpush1.bf16.msra.mxu0 %v2073
    %2130 = vmatprep.subr.bf16.mxu0 0
    %2131 = vmatpush1.bf16.msra.mxu0 %v2074
    %2132 = vmatprep.subr.bf16.mxu0 0
    %2133 = vmatpush1.bf16.msra.mxu0 %v2075
    %2134 = vmatprep.subr.bf16.mxu0 0
    %2135 = vmatpush1.bf16.msra.mxu0 %v2076
    %2136 = vmatprep.subr.bf16.mxu0 0
    %2137 = vmatpush1.bf16.msra.mxu0 %v2077
    %2138 = vmatprep.subr.bf16.mxu0 0
    %2139 = vmatpush1.bf16.msra.mxu0 %v2078
    %2140 = vmatprep.subr.bf16.mxu0 0
    %2141 = vmatpush1.bf16.msra.mxu0 %v2079
    %2142 = vmatprep.subr.bf16.mxu0 0
    %2143 = vmatpush1.bf16.msra.mxu0 %v2080
    %2144 = vmatprep.subr.bf16.mxu0 0
    %2145 = vmatpush1.bf16.msra.mxu0 %v2081
    %2146 = vmatprep.mubr.bf16.mxu0 %v1923
    %2147 = vmatmul.mubr.bf16.gmra.mrb[0].mxu0 %v1922
    %v2148 = vpop.f32.mrb[0].mxu0
    %v2149 = vadd.f32 0.0, %v2148
    %v2150 = vpop.f32.mrb[0].mxu0
    %v2151 = vpop.f32.mrb[0].mxu0
    %v2152 = vadd.f32 0.0, %v2151
    %v2153 = vpop.f32.mrb[0].mxu0
    %2154 = vmatprep.mubr.bf16.mxu0 %v1926
    %2155 = vmatmul.mubr.bf16.gmra.mrb[0].mxu0 %v1925
    %v2156 = vpop.f32.mrb[0].mxu0
    %v2157 = vadd.f32 0.0, %v2156
    %v2158 = vpop.f32.mrb[0].mxu0
    %v2159 = vpop.f32.mrb[0].mxu0
    %v2160 = vadd.f32 0.0, %v2159
    %v2161 = vpop.f32.mrb[0].mxu0
    %2162 = vmatprep.mubr.bf16.mxu0 %v1929
    %2163 = vmatmul.mubr.bf16.gmra.mrb[0].mxu0 %v1928
    %v2164 = vpop.f32.mrb[0].mxu0
    %v2165 = vadd.f32 0.0, %v2164
    %v2166 = vpop.f32.mrb[0].mxu0
    %v2167 = vpop.f32.mrb[0].mxu0
    %v2168 = vadd.f32 0.0, %v2167
    %v2169 = vpop.f32.mrb[0].mxu0
    %2170 = vmatprep.mubr.bf16.mxu0 %v1932
    %2171 = vmatmul.mubr.bf16.gmra.mrb[0].mxu0 %v1931
    %v2172 = vpop.f32.mrb[0].mxu0
    %v2173 = vadd.f32 0.0, %v2172
    %v2174 = vpop.f32.mrb[0].mxu0
    %v2175 = vpop.f32.mrb[0].mxu0
    %v2176 = vadd.f32 0.0, %v2175
    %v2177 = vpop.f32.mrb[0].mxu0
    %2178 = vmatprep.mubr.bf16.mxu0 %v1935
    %2179 = vmatmul.mubr.bf16.gmra.mrb[0].mxu0 %v1934
    %v2180 = vpop.f32.mrb[0].mxu0
    %v2181 = vadd.f32 0.0, %v2180
    %v2182 = vpop.f32.mrb[0].mxu0
    %v2183 = vpop.f32.mrb[0].mxu0
    %v2184 = vadd.f32 0.0, %v2183
    %v2185 = vpop.f32.mrb[0].mxu0
    %2186 = vmatprep.mubr.bf16.mxu0 %v1938
    %2187 = vmatmul.mubr.bf16.gmra.mrb[0].mxu0 %v1937
    %v2188 = vpop.f32.mrb[0].mxu0
    %v2189 = vadd.f32 0.0, %v2188
    %v2190 = vpop.f32.mrb[0].mxu0
    %v2191 = vpop.f32.mrb[0].mxu0
    %v2192 = vadd.f32 0.0, %v2191
    %v2193 = vpop.f32.mrb[0].mxu0
    %2194 = vmatprep.mubr.bf16.mxu0 %v1941
    %2195 = vmatmul.mubr.bf16.gmra.mrb[0].mxu0 %v1940
    %v2196 = vpop.f32.mrb[0].mxu0
    %v2197 = vadd.f32 0.0, %v2196
    %v2198 = vpop.f32.mrb[0].mxu0
    %v2199 = vpop.f32.mrb[0].mxu0
    %v2200 = vadd.f32 0.0, %v2199
    %v2201 = vpop.f32.mrb[0].mxu0
    %2202 = vmatprep.mubr.bf16.mxu0 %v1944
    %2203 = vmatmul.mubr.bf16.gmra.mrb[0].mxu0 %v1943
    %v2204 = vpop.f32.mrb[0].mxu0
    %v2205 = vadd.f32 0.0, %v2204
    %v2206 = vpop.f32.mrb[0].mxu0
    %v2207 = vpop.f32.mrb[0].mxu0
    %v2208 = vadd.f32 0.0, %v2207
    %v2209 = vpop.f32.mrb[0].mxu0
    %2210 = vdwg.mxu0
    %2211 = vmatprep.subr.bf16.mxu0 0
    %2212 = vmatpush1.bf16.msra.mxu0 %v2082
    %2213 = vmatprep.subr.bf16.mxu0 0
    %2214 = vmatpush1.bf16.msra.mxu0 %v2083
    %2215 = vmatprep.subr.bf16.mxu0 0
    %2216 = vmatpush1.bf16.msra.mxu0 %v2084
    %2217 = vmatprep.subr.bf16.mxu0 0
    %2218 = vmatpush1.bf16.msra.mxu0 %v2085
    %2219 = vmatprep.subr.bf16.mxu0 0
    %2220 = vmatpush1.bf16.msra.mxu0 %v2086
    %2221 = vmatprep.subr.bf16.mxu0 0
    %2222 = vmatpush1.bf16.msra.mxu0 %v2087
    %2223 = vmatprep.subr.bf16.mxu0 0
    %2224 = vmatpush1.bf16.msra.mxu0 %v2088
    %2225 = vmatprep.subr.bf16.mxu0 0
    %2226 = vmatpush1.bf16.msra.mxu0 %v2089
    %2227 = vmatprep.subr.bf16.mxu0 0
    %2228 = vmatpush1.bf16.msra.mxu0 0
    %2229 = vmatprep.subr.bf16.mxu0 0
    %2230 = vmatpush1.bf16.msra.mxu0 0
    %2231 = vmatprep.subr.bf16.mxu0 0
    %2232 = vmatpush1.bf16.msra.mxu0 0
    %2233 = vmatprep.subr.bf16.mxu0 0
    %2234 = vmatpush1.bf16.msra.mxu0 0
    %2235 = vmatprep.subr.bf16.mxu0 0
    %2236 = vmatpush1.bf16.msra.mxu0 0
    %2237 = vmatprep.subr.bf16.mxu0 0
    %2238 = vmatpush1.bf16.msra.mxu0 0
    %2239 = vmatprep.subr.bf16.mxu0 0
    %2240 = vmatpush1.bf16.msra.mxu0 0
    %2241 = vmatprep.subr.bf16.mxu0 0
    %2242 = vmatpush1.bf16.msra.mxu0 0
    %2243 = vmatprep.mubr.bf16.mxu0 0
    %2244 = vmatmul.mubr.bf16.gmra.mrb[0].mxu0 %v1924
    %v2245 = vpop.f32.mrb[0].mxu0
    %v2246 = vadd.f32 %v2149, %v2245
    %v2247 = vpop.f32.mrb[0].mxu0
    %v2248 = vpop.f32.mrb[0].mxu0
    %v2249 = vadd.f32 %v2152, %v2248
    %v2250 = vpop.f32.mrb[0].mxu0
    %2251 = vmatprep.mubr.bf16.mxu0 0
    %2252 = vmatmul.mubr.bf16.gmra.mrb[0].mxu0 %v1927
    %v2253 = vpop.f32.mrb[0].mxu0
    %v2254 = vadd.f32 %v2157, %v2253
    %v2255 = vpop.f32.mrb[0].mxu0
    %v2256 = vpop.f32.mrb[0].mxu0
    %v2257 = vadd.f32 %v2160, %v2256
    %v2258 = vpop.f32.mrb[0].mxu0
    %2259 = vmatprep.mubr.bf16.mxu0 0
    %2260 = vmatmul.mubr.bf16.gmra.mrb[0].mxu0 %v1930
    %v2261 = vpop.f32.mrb[0].mxu0
    %v2262 = vadd.f32 %v2165, %v2261
    %v2263 = vpop.f32.mrb[0].mxu0
    %v2264 = vpop.f32.mrb[0].mxu0
    %v2265 = vadd.f32 %v2168, %v2264
    %v2266 = vpop.f32.mrb[0].mxu0
    %2267 = vmatprep.mubr.bf16.mxu0 0
    %2268 = vmatmul.mubr.bf16.gmra.mrb[0].mxu0 %v1933
    %v2269 = vpop.f32.mrb[0].mxu0
    %v2270 = vadd.f32 %v2173, %v2269
    %v2271 = vpop.f32.mrb[0].mxu0
    %v2272 = vpop.f32.mrb[0].mxu0
    %v2273 = vadd.f32 %v2176, %v2272
    %v2274 = vpop.f32.mrb[0].mxu0
    %2275 = vmatprep.mubr.bf16.mxu0 0
    %2276 = vmatmul.mubr.bf16.gmra.mrb[0].mxu0 %v1936
    %v2277 = vpop.f32.mrb[0].mxu0
    %v2278 = vadd.f32 %v2181, %v2277
    %v2279 = vpop.f32.mrb[0].mxu0
    %v2280 = vpop.f32.mrb[0].mxu0
    %v2281 = vadd.f32 %v2184, %v2280
    %v2282 = vpop.f32.mrb[0].mxu0
    %2283 = vmatprep.mubr.bf16.mxu0 0
    %2284 = vmatmul.mubr.bf16.gmra.mrb[0].mxu0 %v1939
    %v2285 = vpop.f32.mrb[0].mxu0
    %v2286 = vadd.f32 %v2189, %v2285
    %v2287 = vpop.f32.mrb[0].mxu0
    %v2288 = vpop.f32.mrb[0].mxu0
    %v2289 = vadd.f32 %v2192, %v2288
    %v2290 = vpop.f32.mrb[0].mxu0
    %2291 = vmatprep.mubr.bf16.mxu0 0
    %2292 = vmatmul.mubr.bf16.gmra.mrb[0].mxu0 %v1942
    %v2293 = vpop.f32.mrb[0].mxu0
    %v2294 = vadd.f32 %v2197, %v2293
    %v2295 = vpop.f32.mrb[0].mxu0
    %v2296 = vpop.f32.mrb[0].mxu0
    %v2297 = vadd.f32 %v2200, %v2296
    %v2298 = vpop.f32.mrb[0].mxu0
    %2299 = vmatprep.mubr.bf16.mxu0 0
    %2300 = vmatmul.mubr.bf16.gmra.mrb[0].mxu0 %v1945
    %v2301 = vpop.f32.mrb[0].mxu0
    %v2302 = vadd.f32 %v2205, %v2301
    %v2303 = vpop.f32.mrb[0].mxu0
    %v2304 = vpop.f32.mrb[0].mxu0
    %v2305 = vadd.f32 %v2208, %v2304
    %v2306 = vpop.f32.mrb[0].mxu0
    %2307 = vdwg.mxu0
    %v2308 = vadd.f32 %v1698, %v2246
    %v2309 = vadd.f32 %v1701, %v2249
    %v2310 = vadd.f32 %v1706, %v2254
    %v2311 = vadd.f32 %v1709, %v2257
    %v2312 = vadd.f32 %v1714, %v2262
    %v2313 = vadd.f32 %v1717, %v2265
    %v2314 = vadd.f32 %v1722, %v2270
    %v2315 = vadd.f32 %v1725, %v2273
    %v2316 = vadd.f32 %v1730, %v2278
    %v2317 = vadd.f32 %v1733, %v2281
    %v2318 = vadd.f32 %v1738, %v2286
    %v2319 = vadd.f32 %v1741, %v2289
    %v2320 = vadd.f32 %v1746, %v2294
    %v2321 = vadd.f32 %v1749, %v2297
    %v2322 = vadd.f32 %v1754, %v2302
    %v2323 = vadd.f32 %v1757, %v2305
    %v2324 = vld [vmem:[#allocation15] sm:$0x1]
    %v2326 = vlaneseq
    %v2327 = vshrl.u32 %v2326, 7
    %v2328 = vsub.s32 0, %v2327
    %v2329 = vrot.slane %v2324, %v2328
    %v2331 = vmul.f32 %v2308, %v2329
    %v2332 = vmul.f32 %v2309, %v2329
    %v2333 = vmul.f32 %v2310, %v2329
    %v2334 = vmul.f32 %v2311, %v2329
    %v2335 = vmul.f32 %v2312, %v2329
    %v2336 = vmul.f32 %v2313, %v2329
    %v2337 = vmul.f32 %v2314, %v2329
    %v2338 = vmul.f32 %v2315, %v2329
    %v2339 = vmul.f32 %v2316, %v2329
    %v2340 = vmul.f32 %v2317, %v2329
    %v2341 = vmul.f32 %v2318, %v2329
    %v2342 = vmul.f32 %v2319, %v2329
    %v2343 = vmul.f32 %v2320, %v2329
    %v2344 = vmul.f32 %v2321, %v2329
    %v2345 = vmul.f32 %v2322, %v2329
    %v2346 = vmul.f32 %v2323, %v2329
    %v2347 = vld [vmem:[#allocation17] sm:$0x1]
    %v2349 = vlaneseq
    %v2350 = vshrl.u32 %v2349, 7
    %v2351 = vsub.s32 0, %v2350
    %v2352 = vrot.slane %v2347, %v2351
    %v2354 = vadd.f32 %v2331, %v2352
    %v2355 = vadd.f32 %v2332, %v2352
    %v2356 = vadd.f32 %v2333, %v2352
    %v2357 = vadd.f32 %v2334, %v2352
    %v2358 = vadd.f32 %v2335, %v2352
    %v2359 = vadd.f32 %v2336, %v2352
    %v2360 = vadd.f32 %v2337, %v2352
    %v2361 = vadd.f32 %v2338, %v2352
    %v2362 = vadd.f32 %v2339, %v2352
    %v2363 = vadd.f32 %v2340, %v2352
    %v2364 = vadd.f32 %v2341, %v2352
    %v2365 = vadd.f32 %v2342, %v2352
    %v2366 = vadd.f32 %v2343, %v2352
    %v2367 = vadd.f32 %v2344, %v2352
    %v2368 = vadd.f32 %v2345, %v2352
    %v2369 = vadd.f32 %v2346, %v2352
    %v2370 = vmax.f32 %v2354, 0.0
    %v2371 = vmax.f32 %v2355, 0.0
    %v2372 = vmax.f32 %v2356, 0.0
    %v2373 = vmax.f32 %v2357, 0.0
    %v2374 = vmax.f32 %v2358, 0.0
    %v2375 = vmax.f32 %v2359, 0.0
    %v2376 = vmax.f32 %v2360, 0.0
    %v2377 = vmax.f32 %v2361, 0.0
    %v2378 = vmax.f32 %v2362, 0.0
    %v2379 = vmax.f32 %v2363, 0.0
    %v2380 = vmax.f32 %v2364, 0.0
    %v2381 = vmax.f32 %v2365, 0.0
    %v2382 = vmax.f32 %v2366, 0.0
    %v2383 = vmax.f32 %v2367, 0.0
    %v2384 = vmax.f32 %v2368, 0.0
    %v2385 = vmax.f32 %v2369, 0.0
    %v2386 = vpack.c.bf16 %v2371, %v2370
    %v2387 = vpack.c.bf16 %v2373, %v2372
    %v2388 = vpack.c.bf16 %v2375, %v2374
    %v2389 = vpack.c.bf16 %v2377, %v2376
    %v2390 = vpack.c.bf16 %v2379, %v2378
    %v2391 = vpack.c.bf16 %v2381, %v2380
    %v2392 = vpack.c.bf16 %v2383, %v2382
    %v2393 = vpack.c.bf16 %v2385, %v2384
    %v2394 = vld [vmem:[#allocation9] sm:$0xf]
    %v2395 = vld [vmem:[#allocation9 + $0x4] sm:$0xf]
    %v2396 = vld [vmem:[#allocation9 + $0x8] sm:$0xf]
    %v2397 = vld [vmem:[#allocation9 + $0xc] sm:$0xf]
    %v2398 = vld [vmem:[#allocation9 + $0x10] sm:$0xf]
    %v2399 = vld [vmem:[#allocation9 + $0x14] sm:$0xf]
    %v2400 = vld [vmem:[#allocation9 + $0x18] sm:$0xf]
    %v2401 = vld [vmem:[#allocation9 + $0x1c] sm:$0xf]
    %v2402 = vld [vmem:[#allocation9 + $0x20] sm:$0xf]
    %v2403 = vld [vmem:[#allocation9 + $0x24] sm:$0xf]
    %v2404 = vld [vmem:[#allocation9 + $0x28] sm:$0xf]
    %v2405 = vld [vmem:[#allocation9 + $0x2c] sm:$0xf]
    %v2406 = vld [vmem:[#allocation9 + $0x30] sm:$0xf]
    %v2407 = vld [vmem:[#allocation9 + $0x34] sm:$0xf]
    %v2408 = vld [vmem:[#allocation9 + $0x38] sm:$0xf]
    %v2409 = vld [vmem:[#allocation9 + $0x3c] sm:$0xf]
    %v2426 = vunpack.c.l.b16 %v2394
    %v2427 = vunpack.c.l.b16 %v2395
    %v2428 = vunpack.c.l.b16 %v2396
    %v2429 = vunpack.c.l.b16 %v2397
    %v2430 = vunpack.c.l.b16 %v2398
    %v2431 = vunpack.c.l.b16 %v2399
    %v2432 = vunpack.c.l.b16 %v2400
    %v2433 = vunpack.c.l.b16 %v2401
    %v2434 = vunpack.c.l.b16 %v2402
    %v2435 = vunpack.c.l.b16 %v2403
    %v2436 = vunpack.c.l.b16 %v2404
    %v2437 = vunpack.c.l.b16 %v2405
    %v2438 = vunpack.c.l.b16 %v2406
    %v2439 = vunpack.c.l.b16 %v2407
    %v2440 = vunpack.c.l.b16 %v2408
    %v2441 = vunpack.c.l.b16 %v2409
    %v2442 = vpack.c.b16 %v2427, %v2426
    %v2443 = vpack.c.b16 %v2429, %v2428
    %v2444 = vpack.c.b16 %v2431, %v2430
    %v2445 = vpack.c.b16 %v2433, %v2432
    %v2446 = vpack.c.b16 %v2435, %v2434
    %v2447 = vpack.c.b16 %v2437, %v2436
    %v2448 = vpack.c.b16 %v2439, %v2438
    %v2449 = vpack.c.b16 %v2441, %v2440
    %2458 = vmatprep.subr.bf16.mxu0 0
    %2459 = vmatpush1.bf16.msra.mxu0 %v2442
    %2460 = vmatprep.subr.bf16.mxu0 0
    %2461 = vmatpush1.bf16.msra.mxu0 %v2443
    %2462 = vmatprep.subr.bf16.mxu0 0
    %2463 = vmatpush1.bf16.msra.mxu0 %v2444
    %2464 = vmatprep.subr.bf16.mxu0 0
    %2465 = vmatpush1.bf16.msra.mxu0 %v2445
    %2466 = vmatprep.subr.bf16.mxu0 0
    %2467 = vmatpush1.bf16.msra.mxu0 %v2446
    %2468 = vmatprep.subr.bf16.mxu0 0
    %2469 = vmatpush1.bf16.msra.mxu0 %v2447
    %2470 = vmatprep.subr.bf16.mxu0 0
    %2471 = vmatpush1.bf16.msra.mxu0 %v2448
    %2472 = vmatprep.subr.bf16.mxu0 0
    %2473 = vmatpush1.bf16.msra.mxu0 %v2449
    %2474 = vmatprep.subr.bf16.mxu0 0
    %2475 = vmatpush1.bf16.msra.mxu0 0
    %2476 = vmatprep.subr.bf16.mxu0 0
    %2477 = vmatpush1.bf16.msra.mxu0 0
    %2478 = vmatprep.subr.bf16.mxu0 0
    %2479 = vmatpush1.bf16.msra.mxu0 0
    %2480 = vmatprep.subr.bf16.mxu0 0
    %2481 = vmatpush1.bf16.msra.mxu0 0
    %2482 = vmatprep.subr.bf16.mxu0 0
    %2483 = vmatpush1.bf16.msra.mxu0 0
    %2484 = vmatprep.subr.bf16.mxu0 0
    %2485 = vmatpush1.bf16.msra.mxu0 0
    %2486 = vmatprep.subr.bf16.mxu0 0
    %2487 = vmatpush1.bf16.msra.mxu0 0
    %2488 = vmatprep.subr.bf16.mxu0 0
    %2489 = vmatpush1.bf16.msra.mxu0 0
    %2490 = vmatprep.mubr.bf16.mxu0 0
    %2491 = vmatmul.mubr.bf16.gmra.mrb[0].mxu0 %v2386
    %v2492 = vpop.f32.mrb[0].mxu0
    %v2493 = vadd.f32 0.0, %v2492
    %v2494 = vpop.f32.mrb[0].mxu0
    %v2495 = vpop.f32.mrb[0].mxu0
    %v2496 = vadd.f32 0.0, %v2495
    %v2497 = vpop.f32.mrb[0].mxu0
    %2498 = vmatprep.mubr.bf16.mxu0 0
    %2499 = vmatmul.mubr.bf16.gmra.mrb[0].mxu0 %v2387
    %v2500 = vpop.f32.mrb[0].mxu0
    %v2501 = vadd.f32 0.0, %v2500
    %v2502 = vpop.f32.mrb[0].mxu0
    %v2503 = vpop.f32.mrb[0].mxu0
    %v2504 = vadd.f32 0.0, %v2503
    %v2505 = vpop.f32.mrb[0].mxu0
    %2506 = vmatprep.mubr.bf16.mxu0 0
    %2507 = vmatmul.mubr.bf16.gmra.mrb[0].mxu0 %v2388
    %v2508 = vpop.f32.mrb[0].mxu0
    %v2509 = vadd.f32 0.0, %v2508
    %v2510 = vpop.f32.mrb[0].mxu0
    %v2511 = vpop.f32.mrb[0].mxu0
    %v2512 = vadd.f32 0.0, %v2511
    %v2513 = vpop.f32.mrb[0].mxu0
    %2514 = vmatprep.mubr.bf16.mxu0 0
    %2515 = vmatmul.mubr.bf16.gmra.mrb[0].mxu0 %v2389
    %v2516 = vpop.f32.mrb[0].mxu0
    %v2517 = vadd.f32 0.0, %v2516
    %v2518 = vpop.f32.mrb[0].mxu0
    %v2519 = vpop.f32.mrb[0].mxu0
    %v2520 = vadd.f32 0.0, %v2519
    %v2521 = vpop.f32.mrb[0].mxu0
    %2522 = vmatprep.mubr.bf16.mxu0 0
    %2523 = vmatmul.mubr.bf16.gmra.mrb[0].mxu0 %v2390
    %v2524 = vpop.f32.mrb[0].mxu0
    %v2525 = vadd.f32 0.0, %v2524
    %v2526 = vpop.f32.mrb[0].mxu0
    %v2527 = vpop.f32.mrb[0].mxu0
    %v2528 = vadd.f32 0.0, %v2527
    %v2529 = vpop.f32.mrb[0].mxu0
    %2530 = vmatprep.mubr.bf16.mxu0 0
    %2531 = vmatmul.mubr.bf16.gmra.mrb[0].mxu0 %v2391
    %v2532 = vpop.f32.mrb[0].mxu0
    %v2533 = vadd.f32 0.0, %v2532
    %v2534 = vpop.f32.mrb[0].mxu0
    %v2535 = vpop.f32.mrb[0].mxu0
    %v2536 = vadd.f32 0.0, %v2535
    %v2537 = vpop.f32.mrb[0].mxu0
    %2538 = vmatprep.mubr.bf16.mxu0 0
    %2539 = vmatmul.mubr.bf16.gmra.mrb[0].mxu0 %v2392
    %v2540 = vpop.f32.mrb[0].mxu0
    %v2541 = vadd.f32 0.0, %v2540
    %v2542 = vpop.f32.mrb[0].mxu0
    %v2543 = vpop.f32.mrb[0].mxu0
    %v2544 = vadd.f32 0.0, %v2543
    %v2545 = vpop.f32.mrb[0].mxu0
    %2546 = vmatprep.mubr.bf16.mxu0 0
    %2547 = vmatmul.mubr.bf16.gmra.mrb[0].mxu0 %v2393
    %v2548 = vpop.f32.mrb[0].mxu0
    %v2549 = vadd.f32 0.0, %v2548
    %v2550 = vpop.f32.mrb[0].mxu0
    %v2551 = vpop.f32.mrb[0].mxu0
    %v2552 = vadd.f32 0.0, %v2551
    %v2553 = vpop.f32.mrb[0].mxu0
    %2554 = vdwg.mxu0
    %v2555 = vld [vmem:[#allocation18] sm:$0x1]
    %v2557 = vlaneseq
    %v2558 = vshrl.u32 %v2557, 7
    %v2559 = vsub.s32 0, %v2558
    %v2560 = vrot.slane %v2555, %v2559
    %v2562 = vmul.f32 %v2493, %v2560
    %v2563 = vmul.f32 %v2496, %v2560
    %v2564 = vmul.f32 %v2501, %v2560
    %v2565 = vmul.f32 %v2504, %v2560
    %v2566 = vmul.f32 %v2509, %v2560
    %v2567 = vmul.f32 %v2512, %v2560
    %v2568 = vmul.f32 %v2517, %v2560
    %v2569 = vmul.f32 %v2520, %v2560
    %v2570 = vmul.f32 %v2525, %v2560
    %v2571 = vmul.f32 %v2528, %v2560
    %v2572 = vmul.f32 %v2533, %v2560
    %v2573 = vmul.f32 %v2536, %v2560
    %v2574 = vmul.f32 %v2541, %v2560
    %v2575 = vmul.f32 %v2544, %v2560
    %v2576 = vmul.f32 %v2549, %v2560
    %v2577 = vmul.f32 %v2552, %v2560
    %v2578 = vld [vmem:[#allocation20] sm:$0x1]
    %v2580 = vlaneseq
    %v2581 = vshrl.u32 %v2580, 7
    %v2582 = vsub.s32 0, %v2581
    %v2583 = vrot.slane %v2578, %v2582
    %v2585 = vadd.f32 %v2562, %v2583
    %v2586 = vadd.f32 %v2563, %v2583
    %v2587 = vadd.f32 %v2564, %v2583
    %v2588 = vadd.f32 %v2565, %v2583
    %v2589 = vadd.f32 %v2566, %v2583
    %v2590 = vadd.f32 %v2567, %v2583
    %v2591 = vadd.f32 %v2568, %v2583
    %v2592 = vadd.f32 %v2569, %v2583
    %v2593 = vadd.f32 %v2570, %v2583
    %v2594 = vadd.f32 %v2571, %v2583
    %v2595 = vadd.f32 %v2572, %v2583
    %v2596 = vadd.f32 %v2573, %v2583
    %v2597 = vadd.f32 %v2574, %v2583
    %v2598 = vadd.f32 %v2575, %v2583
    %v2599 = vadd.f32 %v2576, %v2583
    %v2600 = vadd.f32 %v2577, %v2583
    %v2601 = vld [vmem:[#allocation11] sm:$0xf]
    %v2602 = vld [vmem:[#allocation11 + $0x4] sm:$0xf]
    %v2603 = vld [vmem:[#allocation11 + $0x8] sm:$0xf]
    %v2604 = vld [vmem:[#allocation11 + $0xc] sm:$0xf]
    %v2605 = vld [vmem:[#allocation11 + $0x10] sm:$0xf]
    %v2606 = vld [vmem:[#allocation11 + $0x14] sm:$0xf]
    %v2607 = vld [vmem:[#allocation11 + $0x18] sm:$0xf]
    %v2608 = vld [vmem:[#allocation11 + $0x1c] sm:$0xf]
    %v2609 = vld [vmem:[#allocation11 + $0x20] sm:$0xf]
    %v2610 = vld [vmem:[#allocation11 + $0x24] sm:$0xf]
    %v2611 = vld [vmem:[#allocation11 + $0x28] sm:$0xf]
    %v2612 = vld [vmem:[#allocation11 + $0x2c] sm:$0xf]
    %v2613 = vld [vmem:[#allocation11 + $0x30] sm:$0xf]
    %v2614 = vld [vmem:[#allocation11 + $0x34] sm:$0xf]
    %v2615 = vld [vmem:[#allocation11 + $0x38] sm:$0xf]
    %v2616 = vld [vmem:[#allocation11 + $0x3c] sm:$0xf]
    %v2633 = vunpack.c.l.b16 %v2601
    %v2634 = vunpack.c.l.b16 %v2602
    %v2635 = vunpack.c.l.b16 %v2603
    %v2636 = vunpack.c.l.b16 %v2604
    %v2637 = vunpack.c.l.b16 %v2605
    %v2638 = vunpack.c.l.b16 %v2606
    %v2639 = vunpack.c.l.b16 %v2607
    %v2640 = vunpack.c.l.b16 %v2608
    %v2641 = vunpack.c.l.b16 %v2609
    %v2642 = vunpack.c.l.b16 %v2610
    %v2643 = vunpack.c.l.b16 %v2611
    %v2644 = vunpack.c.l.b16 %v2612
    %v2645 = vunpack.c.l.b16 %v2613
    %v2646 = vunpack.c.l.b16 %v2614
    %v2647 = vunpack.c.l.b16 %v2615
    %v2648 = vunpack.c.l.b16 %v2616
    %v2649 = vpack.c.b16 %v2634, %v2633
    %v2650 = vpack.c.b16 %v2636, %v2635
    %v2651 = vpack.c.b16 %v2638, %v2637
    %v2652 = vpack.c.b16 %v2640, %v2639
    %v2653 = vpack.c.b16 %v2642, %v2641
    %v2654 = vpack.c.b16 %v2644, %v2643
    %v2655 = vpack.c.b16 %v2646, %v2645
    %v2656 = vpack.c.b16 %v2648, %v2647
    %2665 = vmatprep.subr.bf16.mxu0 0
    %2666 = vmatpush1.bf16.msra.mxu0 %v2649
    %2667 = vmatprep.subr.bf16.mxu0 0
    %2668 = vmatpush1.bf16.msra.mxu0 %v2650
    %2669 = vmatprep.subr.bf16.mxu0 0
    %2670 = vmatpush1.bf16.msra.mxu0 %v2651
    %2671 = vmatprep.subr.bf16.mxu0 0
    %2672 = vmatpush1.bf16.msra.mxu0 %v2652
    %2673 = vmatprep.subr.bf16.mxu0 0
    %2674 = vmatpush1.bf16.msra.mxu0 %v2653
    %2675 = vmatprep.subr.bf16.mxu0 0
    %2676 = vmatpush1.bf16.msra.mxu0 %v2654
    %2677 = vmatprep.subr.bf16.mxu0 0
    %2678 = vmatpush1.bf16.msra.mxu0 %v2655
    %2679 = vmatprep.subr.bf16.mxu0 0
    %2680 = vmatpush1.bf16.msra.mxu0 %v2656
    %2681 = vmatprep.subr.bf16.mxu0 0
    %2682 = vmatpush1.bf16.msra.mxu0 0
    %2683 = vmatprep.subr.bf16.mxu0 0
    %2684 = vmatpush1.bf16.msra.mxu0 0
    %2685 = vmatprep.subr.bf16.mxu0 0
    %2686 = vmatpush1.bf16.msra.mxu0 0
    %2687 = vmatprep.subr.bf16.mxu0 0
    %2688 = vmatpush1.bf16.msra.mxu0 0
    %2689 = vmatprep.subr.bf16.mxu0 0
    %2690 = vmatpush1.bf16.msra.mxu0 0
    %2691 = vmatprep.subr.bf16.mxu0 0
    %2692 = vmatpush1.bf16.msra.mxu0 0
    %2693 = vmatprep.subr.bf16.mxu0 0
    %2694 = vmatpush1.bf16.msra.mxu0 0
    %2695 = vmatprep.subr.bf16.mxu0 0
    %2696 = vmatpush1.bf16.msra.mxu0 0
    %2697 = vmatprep.mubr.bf16.mxu0 0
    %2698 = vmatmul.mubr.bf16.gmra.mrb[0].mxu0 %v270
    %v2699 = vpop.f32.mrb[0].mxu0
    %v2700 = vadd.f32 0.0, %v2699
    %v2701 = vpop.f32.mrb[0].mxu0
    %v2702 = vpop.f32.mrb[0].mxu0
    %v2703 = vadd.f32 0.0, %v2702
    %v2704 = vpop.f32.mrb[0].mxu0
    %2705 = vmatprep.mubr.bf16.mxu0 0
    %2706 = vmatmul.mubr.bf16.gmra.mrb[0].mxu0 %v271
    %v2707 = vpop.f32.mrb[0].mxu0
    %v2708 = vadd.f32 0.0, %v2707
    %v2709 = vpop.f32.mrb[0].mxu0
    %v2710 = vpop.f32.mrb[0].mxu0
    %v2711 = vadd.f32 0.0, %v2710
    %v2712 = vpop.f32.mrb[0].mxu0
    %2713 = vmatprep.mubr.bf16.mxu0 0
    %2714 = vmatmul.mubr.bf16.gmra.mrb[0].mxu0 %v272
    %v2715 = vpop.f32.mrb[0].mxu0
    %v2716 = vadd.f32 0.0, %v2715
    %v2717 = vpop.f32.mrb[0].mxu0
    %v2718 = vpop.f32.mrb[0].mxu0
    %v2719 = vadd.f32 0.0, %v2718
    %v2720 = vpop.f32.mrb[0].mxu0
    %2721 = vmatprep.mubr.bf16.mxu0 0
    %2722 = vmatmul.mubr.bf16.gmra.mrb[0].mxu0 %v273
    %v2723 = vpop.f32.mrb[0].mxu0
    %v2724 = vadd.f32 0.0, %v2723
    %v2725 = vpop.f32.mrb[0].mxu0
    %v2726 = vpop.f32.mrb[0].mxu0
    %v2727 = vadd.f32 0.0, %v2726
    %v2728 = vpop.f32.mrb[0].mxu0
    %2729 = vmatprep.mubr.bf16.mxu0 0
    %2730 = vmatmul.mubr.bf16.gmra.mrb[0].mxu0 %v274
    %v2731 = vpop.f32.mrb[0].mxu0
    %v2732 = vadd.f32 0.0, %v2731
    %v2733 = vpop.f32.mrb[0].mxu0
    %v2734 = vpop.f32.mrb[0].mxu0
    %v2735 = vadd.f32 0.0, %v2734
    %v2736 = vpop.f32.mrb[0].mxu0
    %2737 = vmatprep.mubr.bf16.mxu0 0
    %2738 = vmatmul.mubr.bf16.gmra.mrb[0].mxu0 %v275
    %v2739 = vpop.f32.mrb[0].mxu0
    %v2740 = vadd.f32 0.0, %v2739
    %v2741 = vpop.f32.mrb[0].mxu0
    %v2742 = vpop.f32.mrb[0].mxu0
    %v2743 = vadd.f32 0.0, %v2742
    %v2744 = vpop.f32.mrb[0].mxu0
    %2745 = vmatprep.mubr.bf16.mxu0 0
    %2746 = vmatmul.mubr.bf16.gmra.mrb[0].mxu0 %v276
    %v2747 = vpop.f32.mrb[0].mxu0
    %v2748 = vadd.f32 0.0, %v2747
    %v2749 = vpop.f32.mrb[0].mxu0
    %v2750 = vpop.f32.mrb[0].mxu0
    %v2751 = vadd.f32 0.0, %v2750
    %v2752 = vpop.f32.mrb[0].mxu0
    %2753 = vmatprep.mubr.bf16.mxu0 0
    %2754 = vmatmul.mubr.bf16.gmra.mrb[0].mxu0 %v277
    %v2755 = vpop.f32.mrb[0].mxu0
    %v2756 = vadd.f32 0.0, %v2755
    %v2757 = vpop.f32.mrb[0].mxu0
    %v2758 = vpop.f32.mrb[0].mxu0
    %v2759 = vadd.f32 0.0, %v2758
    %v2760 = vpop.f32.mrb[0].mxu0
    %2761 = vdwg.mxu0
    %v2762 = vld [vmem:[#allocation21] sm:$0x1]
    %v2764 = vlaneseq
    %v2765 = vshrl.u32 %v2764, 7
    %v2766 = vsub.s32 0, %v2765
    %v2767 = vrot.slane %v2762, %v2766
    %v2769 = vmul.f32 %v2700, %v2767
    %v2770 = vmul.f32 %v2703, %v2767
    %v2771 = vmul.f32 %v2708, %v2767
    %v2772 = vmul.f32 %v2711, %v2767
    %v2773 = vmul.f32 %v2716, %v2767
    %v2774 = vmul.f32 %v2719, %v2767
    %v2775 = vmul.f32 %v2724, %v2767
    %v2776 = vmul.f32 %v2727, %v2767
    %v2777 = vmul.f32 %v2732, %v2767
    %v2778 = vmul.f32 %v2735, %v2767
    %v2779 = vmul.f32 %v2740, %v2767
    %v2780 = vmul.f32 %v2743, %v2767
    %v2781 = vmul.f32 %v2748, %v2767
    %v2782 = vmul.f32 %v2751, %v2767
    %v2783 = vmul.f32 %v2756, %v2767
    %v2784 = vmul.f32 %v2759, %v2767
    %v2785 = vld [vmem:[#allocation23] sm:$0x1]
    %v2787 = vlaneseq
    %v2788 = vshrl.u32 %v2787, 7
    %v2789 = vsub.s32 0, %v2788
    %v2790 = vrot.slane %v2785, %v2789
    %v2792 = vadd.f32 %v2769, %v2790
    %v2793 = vadd.f32 %v2770, %v2790
    %v2794 = vadd.f32 %v2771, %v2790
    %v2795 = vadd.f32 %v2772, %v2790
    %v2796 = vadd.f32 %v2773, %v2790
    %v2797 = vadd.f32 %v2774, %v2790
    %v2798 = vadd.f32 %v2775, %v2790
    %v2799 = vadd.f32 %v2776, %v2790
    %v2800 = vadd.f32 %v2777, %v2790
    %v2801 = vadd.f32 %v2778, %v2790
    %v2802 = vadd.f32 %v2779, %v2790
    %v2803 = vadd.f32 %v2780, %v2790
    %v2804 = vadd.f32 %v2781, %v2790
    %v2805 = vadd.f32 %v2782, %v2790
    %v2806 = vadd.f32 %v2783, %v2790
    %v2807 = vadd.f32 %v2784, %v2790
    %v2808 = vadd.f32 %v2585, %v2792
    %v2809 = vadd.f32 %v2586, %v2793
    %v2810 = vadd.f32 %v2587, %v2794
    %v2811 = vadd.f32 %v2588, %v2795
    %v2812 = vadd.f32 %v2589, %v2796
    %v2813 = vadd.f32 %v2590, %v2797
    %v2814 = vadd.f32 %v2591, %v2798
    %v2815 = vadd.f32 %v2592, %v2799
    %v2816 = vadd.f32 %v2593, %v2800
    %v2817 = vadd.f32 %v2594, %v2801
    %v2818 = vadd.f32 %v2595, %v2802
    %v2819 = vadd.f32 %v2596, %v2803
    %v2820 = vadd.f32 %v2597, %v2804
    %v2821 = vadd.f32 %v2598, %v2805
    %v2822 = vadd.f32 %v2599, %v2806
    %v2823 = vadd.f32 %v2600, %v2807
    %v2824 = vmax.f32 %v2808, 0.0
    %v2825 = vmax.f32 %v2809, 0.0
    %v2826 = vmax.f32 %v2810, 0.0
    %v2827 = vmax.f32 %v2811, 0.0
    %v2828 = vmax.f32 %v2812, 0.0
    %v2829 = vmax.f32 %v2813, 0.0
    %v2830 = vmax.f32 %v2814, 0.0
    %v2831 = vmax.f32 %v2815, 0.0
    %v2832 = vmax.f32 %v2816, 0.0
    %v2833 = vmax.f32 %v2817, 0.0
    %v2834 = vmax.f32 %v2818, 0.0
    %v2835 = vmax.f32 %v2819, 0.0
    %v2836 = vmax.f32 %v2820, 0.0
    %v2837 = vmax.f32 %v2821, 0.0
    %v2838 = vmax.f32 %v2822, 0.0
    %v2839 = vmax.f32 %v2823, 0.0
    %v2840 = vpack.c.bf16 %v2825, %v2824
    %v2841 = vpack.c.bf16 %v2827, %v2826
    %v2842 = vpack.c.bf16 %v2829, %v2828
    %v2843 = vpack.c.bf16 %v2831, %v2830
    %v2844 = vpack.c.bf16 %v2833, %v2832
    %v2845 = vpack.c.bf16 %v2835, %v2834
    %v2846 = vpack.c.bf16 %v2837, %v2836
    %v2847 = vpack.c.bf16 %v2839, %v2838
    %v2856 = vunpack.c.l.b16 %v2840
    %v2857 = vunpack.c.h.b16 %v2840
    %v2858 = vunpack.c.l.b16 %v2841
    %v2859 = vunpack.c.h.b16 %v2841
    %v2860 = vunpack.c.l.b16 %v2842
    %v2861 = vunpack.c.h.b16 %v2842
    %v2862 = vunpack.c.l.b16 %v2843
    %v2863 = vunpack.c.h.b16 %v2843
    %v2864 = vunpack.c.l.b16 %v2844
    %v2865 = vunpack.c.h.b16 %v2844
    %v2866 = vunpack.c.l.b16 %v2845
    %v2867 = vunpack.c.h.b16 %v2845
    %v2868 = vunpack.c.l.b16 %v2846
    %v2869 = vunpack.c.h.b16 %v2846
    %v2870 = vunpack.c.l.b16 %v2847
    %v2871 = vunpack.c.h.b16 %v2847
    %v2872 = vpack.c.b16 %v2856, %v2856
    %v2873 = vpack.c.b16 %v2857, %v2857
    %v2874 = vpack.c.b16 %v2858, %v2858
    %v2875 = vpack.c.b16 %v2859, %v2859
    %v2876 = vpack.c.b16 %v2860, %v2860
    %v2877 = vpack.c.b16 %v2861, %v2861
    %v2878 = vpack.c.b16 %v2862, %v2862
    %v2879 = vpack.c.b16 %v2863, %v2863
    %v2880 = vpack.c.b16 %v2864, %v2864
    %v2881 = vpack.c.b16 %v2865, %v2865
    %v2882 = vpack.c.b16 %v2866, %v2866
    %v2883 = vpack.c.b16 %v2867, %v2867
    %v2884 = vpack.c.b16 %v2868, %v2868
    %v2885 = vpack.c.b16 %v2869, %v2869
    %v2886 = vpack.c.b16 %v2870, %v2870
    %v2887 = vpack.c.b16 %v2871, %v2871
    %2904 = vst [vmem:[#allocation24] sm:$0xf] %v2872
    %2905 = vst [vmem:[#allocation24 + $0x4] sm:$0xf] %v2873
    %2906 = vst [vmem:[#allocation24 + $0x8] sm:$0xf] %v2874
    %2907 = vst [vmem:[#allocation24 + $0xc] sm:$0xf] %v2875
    %2908 = vst [vmem:[#allocation24 + $0x10] sm:$0xf] %v2876
    %2909 = vst [vmem:[#allocation24 + $0x14] sm:$0xf] %v2877
    %2910 = vst [vmem:[#allocation24 + $0x18] sm:$0xf] %v2878
    %2911 = vst [vmem:[#allocation24 + $0x1c] sm:$0xf] %v2879
    %2912 = vst [vmem:[#allocation24 + $0x20] sm:$0xf] %v2880
    %2913 = vst [vmem:[#allocation24 + $0x24] sm:$0xf] %v2881
    %2914 = vst [vmem:[#allocation24 + $0x28] sm:$0xf] %v2882
    %2915 = vst [vmem:[#allocation24 + $0x2c] sm:$0xf] %v2883
    %2916 = vst [vmem:[#allocation24 + $0x30] sm:$0xf] %v2884
    %2917 = vst [vmem:[#allocation24 + $0x34] sm:$0xf] %v2885
    %2918 = vst [vmem:[#allocation24 + $0x38] sm:$0xf] %v2886
    %2919 = vst [vmem:[#allocation24 + $0x3c] sm:$0xf] %v2887
    // Predicated region
    $region106: #{tpu_custom_call.1} parent=1 // pred_check
      _
    $region107: #{tpu_custom_call.1} parent=1 // pred_check_branch
      %2921 = sbr.rel (0) target = $region109
    $region108: #{tpu_custom_call.1} parent=1 // pred_region
      %s2923 = ssub.s32 1024, 1024
      %2924 = vsyncadd [#allocation5], %s2923
      %s2925 = sshll.u32 [#allocation24], 4
      %s2926 = int_to_ptr.vmem [resolvable:$true] %s2925
      %2931 = dma.vmem_to_hbm [thread:$0]  %s2926, 1024, %s13, [#allocation5], 64, 64, 4
    $region109: #{tpu_custom_call.1} parent=1 // pred_fallthru
      _
    // Predicated region
    $region110: #{tpu_custom_call.1} parent=1 // pred_check
      _
    $region111: #{tpu_custom_call.1} parent=1 // pred_check_branch
      %2933 = sbr.rel (0) target = $region113
    $region112: #{tpu_custom_call.1} parent=1 // pred_region
      %2934 = dma.done [#allocation5], 1024
    $region113: #{tpu_custom_call.1} parent=1 // pred_fallthru
      _
    %2935 = vsyncpa [#allocation4], 1
    %2936 = vsyncpa [#allocation7], 1
    %2937 = vsyncpa [#allocation10], 1
    %2938 = vsyncpa [#allocation13], 1
    %2939 = vsyncpa [#allocation16], 1
    %2940 = vsyncpa [#allocation19], 1
    %2941 = vsyncpa [#allocation22], 1
    %2942 = vsyncpa [#allocation5], 1

// kernel: tpu_custom_call.1
$region0: #{tpu_custom_call.1}
  #allocation0 [shape = 'u32[]', space=smem, size = 0x4, offset = 0x4, fixed_abs, tag = 'smem constant byte address 0x4 - core index']
  #allocation1 [shape = 'u32[144,128]{1,0:T(1,128)}', space=vmem, size = 0x12000, scoped, tag = 'internal scratch']
  #allocation2 [shape = 'bf16[2,10,8,384]{3,2,1,0:T(8,128)(2,1)}', space=vmem, size = 0x1e000, scoped, tag = 'scratch operand']
  %s0 = inlined_call_operand.hbm [shape: bf16[2,64,128], index: 0, kind: input, shape index: {}]
  %s1 = inlined_call_operand.hbm [shape: bf16[128,128], index: 1, kind: input, shape index: {}]
  %s2 = inlined_call_operand.hbm [shape: bf16[3,384,128], index: 2, kind: input, shape index: {}]
  %s3 = inlined_call_operand.hbm [shape: bf16[128,128], index: 3, kind: input, shape index: {}]
  %s4 = inlined_call_operand.hbm [shape: bf16[128,128], index: 4, kind: input, shape index: {}]
  %s5 = inlined_call_operand.hbm [shape: f32[1,128], index: 5, kind: input, shape index: {}]
  %s6 = inlined_call_operand.hbm [shape: f32[1,128], index: 6, kind: input, shape index: {}]
  %s7 = inlined_call_operand.hbm [shape: f32[1,128], index: 7, kind: input, shape index: {}]
  %s8 = inlined_call_operand.hbm [shape: f32[1,128], index: 8, kind: input, shape index: {}]
  %s9 = inlined_call_operand.hbm [shape: f32[1,128], index: 9, kind: input, shape index: {}]
  %s10 = inlined_call_operand.hbm [shape: f32[1,128], index: 10, kind: input, shape index: {}]
  %s11 = inlined_call_operand.hbm [shape: f32[1,128], index: 11, kind: input, shape index: {}]
  %s12 = inlined_call_operand.hbm [shape: f32[1,128], index: 12, kind: input, shape index: {}]
  %s13 = inlined_call_operand.hbm [shape: bf16[2,64,128], index: 13, kind: output, shape index: {}]
  %s14 = sld [smem:[#allocation0]]
  $region114: #{tpu_custom_call.1} parent=0
    _
  %s16 = ssub.s32 1, %s14
  %s17 = scalar_select 0, %s16, %s14
  $region1: #{tpu_custom_call.1} parent=0
    #allocation3 [shape = 'u8[32768]{0}', space=vmem, size = 0x8000, scoped, tag = 'input window, operand 0, single buffered']
    #allocation4 [shape = 's32[1]{0}', space=sflag, size = 0x4, scoped, tag = 'scoped memory for tpu_custom_call.1']
    #allocation5 [shape = 's32[1]{0}', space=sflag, size = 0x4, scoped, tag = 'scoped memory for tpu_custom_call.1']
    #allocation6 [shape = 'u8[32768]{0}', space=vmem, size = 0x8000, scoped, tag = 'input window, operand 1, single buffered']
    #allocation7 [shape = 's32[1]{0}', space=sflag, size = 0x4, scoped, tag = 'scoped memory for tpu_custom_call.1']
    #allocation8 [shape = 'u8[294912]{0}', space=vmem, size = 0x48000, scoped, tag = 'input window, operand 2, single buffered']
    #allocation9 [shape = 'u8[32768]{0}', space=vmem, size = 0x8000, scoped, tag = 'input window, operand 3, single buffered']
    #allocation10 [shape = 's32[1]{0}', space=sflag, size = 0x4, scoped, tag = 'scoped memory for tpu_custom_call.1']
    #allocation11 [shape = 'u8[32768]{0}', space=vmem, size = 0x8000, scoped, tag = 'input window, operand 4, single buffered']
    #allocation12 [shape = 'u8[512]{0}', space=vmem, size = 0x400, scoped, tag = 'input window, operand 5, single buffered']
    #allocation13 [shape = 's32[1]{0}', space=sflag, size = 0x4, scoped, tag = 'scoped memory for tpu_custom_call.1']
    #allocation14 [shape = 'u8[512]{0}', space=vmem, size = 0x400, scoped, tag = 'input window, operand 6, single buffered']
    #allocation15 [shape = 'u8[512]{0}', space=vmem, size = 0x400, scoped, tag = 'input window, operand 7, single buffered']
    #allocation16 [shape = 's32[1]{0}', space=sflag, size = 0x4, scoped, tag = 'scoped memory for tpu_custom_call.1']
    #allocation17 [shape = 'u8[512]{0}', space=vmem, size = 0x400, scoped, tag = 'input window, operand 8, single buffered']
    #allocation18 [shape = 'u8[512]{0}', space=vmem, size = 0x400, scoped, tag = 'input window, operand 9, single buffered']
    #allocation19 [shape = 's32[1]{0}', space=sflag, size = 0x4, scoped, tag = 'scoped memory for tpu_custom_call.1']
    #allocation20 [shape = 'u8[512]{0}', space=vmem, size = 0x400, scoped, tag = 'input window, operand 10, single buffered']
    #allocation21 [shape = 'u8[512]{0}', space=vmem, size = 0x400, scoped, tag = 'input window, operand 11, single buffered']
    #allocation22 [shape = 's32[1]{0}', space=sflag, size = 0x4, scoped, tag = 'scoped memory for tpu_custom_call.1']
    #allocation23 [shape = 'u8[512]{0}', space=vmem, size = 0x400, scoped, tag = 'input window, operand 12, single buffered']
    #allocation24 [shape = 'u8[32768]{0}', space=vmem, size = 0x8000, scoped, tag = 'output window, operand 0, single buffered']
    %18 = vsyncpa [#allocation4], 0
    %19 = vsyncpa [#allocation7], 0
    %20 = vsyncpa [#allocation10], 0
    %21 = vsyncpa [#allocation13], 0
    %22 = vsyncpa [#allocation16], 0
    %23 = vsyncpa [#allocation19], 0
    %24 = vsyncpa [#allocation22], 0
    %25 = vsyncpa [#allocation5], 0
    // Predicated region
    $region2: #{tpu_custom_call.1} parent=1 // pred_check
      _
    $region3: #{tpu_custom_call.1} parent=1 // pred_check_branch
      %27 = sbr.rel (0) target = $region5
    $region4: #{tpu_custom_call.1} parent=1 // pred_region
      %s29 = ssub.s32 1024, 1024
      %30 = vsyncadd [#allocation4], %s29
      %s31 = sshll.u32 [#allocation3], 4
      %s32 = int_to_ptr.vmem [resolvable:$true] %s31
      %37 = dma.hbm_to_vmem [thread:$0]  %s0, 1024, %s32, [#allocation4], 64, 64, 4
    $region5: #{tpu_custom_call.1} parent=1 // pred_fallthru
      _
    // Predicated region
    $region6: #{tpu_custom_call.1} parent=1 // pred_check
      _
    $region7: #{tpu_custom_call.1} parent=1 // pred_check_branch
      %39 = sbr.rel (0) target = $region9
    $region8: #{tpu_custom_call.1} parent=1 // pred_region
      %s41 = ssub.s32 1024, 1024
      %42 = vsyncadd [#allocation7], %s41
      %s43 = sshll.u32 [#allocation6], 4
      %s44 = int_to_ptr.vmem [resolvable:$true] %s43
      %49 = dma.hbm_to_vmem [thread:$0]  %s1, 1024, %s44, [#allocation7], 64, 64, 4
    $region9: #{tpu_custom_call.1} parent=1 // pred_fallthru
      _
    // Predicated region
    $region10: #{tpu_custom_call.1} parent=1 // pred_check
      _
    $region11: #{tpu_custom_call.1} parent=1 // pred_check_branch
      %51 = sbr.rel (0) target = $region13
    $region12: #{tpu_custom_call.1} parent=1 // pred_region
      %s53 = ssub.s32 9216, 9216
      %54 = vsyncadd [#allocation7], %s53
      %s55 = sshll.u32 [#allocation8], 4
      %s56 = int_to_ptr.vmem [resolvable:$true] %s55
      %61 = dma.hbm_to_vmem [thread:$0]  %s2, 9216, %s56, [#allocation7], 64, 64, 4
    $region13: #{tpu_custom_call.1} parent=1 // pred_fallthru
      _
    // Predicated region
    $region14: #{tpu_custom_call.1} parent=1 // pred_check
      _
    $region15: #{tpu_custom_call.1} parent=1 // pred_check_branch
      %63 = sbr.rel (0) target = $region17
    $region16: #{tpu_custom_call.1} parent=1 // pred_region
      %s65 = ssub.s32 1024, 1024
      %66 = vsyncadd [#allocation10], %s65
      %s67 = sshll.u32 [#allocation9], 4
      %s68 = int_to_ptr.vmem [resolvable:$true] %s67
      %73 = dma.hbm_to_vmem [thread:$0]  %s3, 1024, %s68, [#allocation10], 64, 64, 4
    $region17: #{tpu_custom_call.1} parent=1 // pred_fallthru
      _
    // Predicated region
    $region18: #{tpu_custom_call.1} parent=1 // pred_check
      _
    $region19: #{tpu_custom_call.1} parent=1 // pred_check_branch
      %75 = sbr.rel (0) target = $region21
    $region20: #{tpu_custom_call.1} parent=1 // pred_region
      %s77 = ssub.s32 1024, 1024
      %78 = vsyncadd [#allocation10], %s77
      %s79 = sshll.u32 [#allocation11], 4
      %s80 = int_to_ptr.vmem [resolvable:$true] %s79
      %85 = dma.hbm_to_vmem [thread:$0]  %s4, 1024, %s80, [#allocation10], 64, 64, 4
    $region21: #{tpu_custom_call.1} parent=1 // pred_fallthru
      _
    // Predicated region
    $region22: #{tpu_custom_call.1} parent=1 // pred_check
      _
    $region23: #{tpu_custom_call.1} parent=1 // pred_check_branch
      %87 = sbr.rel (0) target = $region25
    $region24: #{tpu_custom_call.1} parent=1 // pred_region
      %s89 = ssub.s32 16, 16
      %90 = vsyncadd [#allocation13], %s89
      %s92 = sshll.u32 [#allocation12], 4
      %s93 = int_to_ptr.vmem [resolvable:$true] %s92
      %95 = dma.hbm_to_vmem [thread:$0]  %s5, 16, %s93, [#allocation13]
    $region25: #{tpu_custom_call.1} parent=1 // pred_fallthru
      _
    // Predicated region
    $region26: #{tpu_custom_call.1} parent=1 // pred_check
      _
    $region27: #{tpu_custom_call.1} parent=1 // pred_check_branch
      %97 = sbr.rel (0) target = $region29
    $region28: #{tpu_custom_call.1} parent=1 // pred_region
      %s99 = ssub.s32 16, 16
      %100 = vsyncadd [#allocation13], %s99
      %s102 = sshll.u32 [#allocation14], 4
      %s103 = int_to_ptr.vmem [resolvable:$true] %s102
      %105 = dma.hbm_to_vmem [thread:$0]  %s6, 16, %s103, [#allocation13]
    $region29: #{tpu_custom_call.1} parent=1 // pred_fallthru
      _
    // Predicated region
    $region30: #{tpu_custom_call.1} parent=1 // pred_check
      _
    $region31: #{tpu_custom_call.1} parent=1 // pred_check_branch
      %107 = sbr.rel (0) target = $region33
    $region32: #{tpu_custom_call.1} parent=1 // pred_region
      %s109 = ssub.s32 16, 16
      %110 = vsyncadd [#allocation16], %s109
      %s112 = sshll.u32 [#allocation15], 4
      %s113 = int_to_ptr.vmem [resolvable:$true] %s112
      %115 = dma.hbm_to_vmem [thread:$0]  %s7, 16, %s113, [#allocation16]
    $region33: #{tpu_custom_call.1} parent=1 // pred_fallthru
      _
    // Predicated region
    $region34: #{tpu_custom_call.1} parent=1 // pred_check
      _
    $region35: #{tpu_custom_call.1} parent=1 // pred_check_branch
      %117 = sbr.rel (0) target = $region37
    $region36: #{tpu_custom_call.1} parent=1 // pred_region
      %s119 = ssub.s32 16, 16
      %120 = vsyncadd [#allocation16], %s119
      %s122 = sshll.u32 [#allocation17], 4
      %s123 = int_to_ptr.vmem [resolvable:$true] %s122
      %125 = dma.hbm_to_vmem [thread:$0]  %s8, 16, %s123, [#allocation16]
    $region37: #{tpu_custom_call.1} parent=1 // pred_fallthru
      _
    // Predicated region
    $region38: #{tpu_custom_call.1} parent=1 // pred_check
      _
    $region39: #{tpu_custom_call.1} parent=1 // pred_check_branch
      %127 = sbr.rel (0) target = $region41
    $region40: #{tpu_custom_call.1} parent=1 // pred_region
      %s129 = ssub.s32 16, 16
      %130 = vsyncadd [#allocation19], %s129
      %s132 = sshll.u32 [#allocation18], 4
      %s133 = int_to_ptr.vmem [resolvable:$true] %s132
      %135 = dma.hbm_to_vmem [thread:$0]  %s9, 16, %s133, [#allocation19]
    $region41: #{tpu_custom_call.1} parent=1 // pred_fallthru
      _
    // Predicated region
    $region42: #{tpu_custom_call.1} parent=1 // pred_check
      _
    $region43: #{tpu_custom_call.1} parent=1 // pred_check_branch
      %137 = sbr.rel (0) target = $region45
    $region44: #{tpu_custom_call.1} parent=1 // pred_region
      %s139 = ssub.s32 16, 16
      %140 = vsyncadd [#allocation19], %s139
      %s142 = sshll.u32 [#allocation20], 4
      %s143 = int_to_ptr.vmem [resolvable:$true] %s142
      %145 = dma.hbm_to_vmem [thread:$0]  %s10, 16, %s143, [#allocation19]
    $region45: #{tpu_custom_call.1} parent=1 // pred_fallthru
      _
    // Predicated region
    $region46: #{tpu_custom_call.1} parent=1 // pred_check
      _
    $region47: #{tpu_custom_call.1} parent=1 // pred_check_branch
      %147 = sbr.rel (0) target = $region49
    $region48: #{tpu_custom_call.1} parent=1 // pred_region
      %s149 = ssub.s32 16, 16
      %150 = vsyncadd [#allocation22], %s149
      %s152 = sshll.u32 [#allocation21], 4
      %s153 = int_to_ptr.vmem [resolvable:$true] %s152
      %155 = dma.hbm_to_vmem [thread:$0]  %s11, 16, %s153, [#allocation22]
    $region49: #{tpu_custom_call.1} parent=1 // pred_fallthru
      _
    // Predicated region
    $region50: #{tpu_custom_call.1} parent=1 // pred_check
      _
    $region51: #{tpu_custom_call.1} parent=1 // pred_check_branch
      %157 = sbr.rel (0) target = $region53
    $region52: #{tpu_custom_call.1} parent=1 // pred_region
      %s159 = ssub.s32 16, 16
      %160 = vsyncadd [#allocation22], %s159
      %s162 = sshll.u32 [#allocation23], 4
      %s163 = int_to_ptr.vmem [resolvable:$true] %s162
      %165 = dma.hbm_to_vmem [thread:$0]  %s12, 16, %s163, [#allocation22]
    $region53: #{tpu_custom_call.1} parent=1 // pred_fallthru
      _
    // Predicated region
    $region54: #{tpu_custom_call.1} parent=1 // pred_check
      _
    $region55: #{tpu_custom_call.1} parent=1 // pred_check_branch
      %167 = sbr.rel (0) target = $region57
    $region56: #{tpu_custom_call.1} parent=1 // pred_region
      %168 = dma.done [#allocation4], 1024
    $region57: #{tpu_custom_call.1} parent=1 // pred_fallthru
      _
    // Predicated region
    $region58: #{tpu_custom_call.1} parent=1 // pred_check
      _
    $region59: #{tpu_custom_call.1} parent=1 // pred_check_branch
      %170 = sbr.rel (0) target = $region61
    $region60: #{tpu_custom_call.1} parent=1 // pred_region
      %171 = dma.done [#allocation7], 1024
    $region61: #{tpu_custom_call.1} parent=1 // pred_fallthru
      _
    // Predicated region
    $region62: #{tpu_custom_call.1} parent=1 // pred_check
      _
    $region63: #{tpu_custom_call.1} parent=1 // pred_check_branch
      %173 = sbr.rel (0) target = $region65
    $region64: #{tpu_custom_call.1} parent=1 // pred_region
      %174 = dma.done [#allocation7], 9216
    $region65: #{tpu_custom_call.1} parent=1 // pred_fallthru
      _
    // Predicated region
    $region66: #{tpu_custom_call.1} parent=1 // pred_check
      _
    $region67: #{tpu_custom_call.1} parent=1 // pred_check_branch
      %176 = sbr.rel (0) target = $region69
    $region68: #{tpu_custom_call.1} parent=1 // pred_region
      %177 = dma.done [#allocation10], 1024
    $region69: #{tpu_custom_call.1} parent=1 // pred_fallthru
      _
    // Predicated region
    $region70: #{tpu_custom_call.1} parent=1 // pred_check
      _
    $region71: #{tpu_custom_call.1} parent=1 // pred_check_branch
      %179 = sbr.rel (0) target = $region73
    $region72: #{tpu_custom_call.1} parent=1 // pred_region
      %180 = dma.done [#allocation10], 1024
    $region73: #{tpu_custom_call.1} parent=1 // pred_fallthru
      _
    // Predicated region
    $region74: #{tpu_custom_call.1} parent=1 // pred_check
      _
    $region75: #{tpu_custom_call.1} parent=1 // pred_check_branch
      %182 = sbr.rel (0) target = $region77
    $region76: #{tpu_custom_call.1} parent=1 // pred_region
      %183 = dma.done [#allocation13], 16
    $region77: #{tpu_custom_call.1} parent=1 // pred_fallthru
      _
    // Predicated region
    $region78: #{tpu_custom_call.1} parent=1 // pred_check
      _
    $region79: #{tpu_custom_call.1} parent=1 // pred_check_branch
      %185 = sbr.rel (0) target = $region81
    $region80: #{tpu_custom_call.1} parent=1 // pred_region
      %186 = dma.done [#allocation13], 16
    $region81: #{tpu_custom_call.1} parent=1 // pred_fallthru
      _
    // Predicated region
    $region82: #{tpu_custom_call.1} parent=1 // pred_check
      _
    $region83: #{tpu_custom_call.1} parent=1 // pred_check_branch
      %188 = sbr.rel (0) target = $region85
    $region84: #{tpu_custom_call.1} parent=1 // pred_region
      %189 = dma.done [#allocation16], 16
    $region85: #{tpu_custom_call.1} parent=1 // pred_fallthru
      _
    // Predicated region
    $region86: #{tpu_custom_call.1} parent=1 // pred_check
      _
    $region87: #{tpu_custom_call.1} parent=1 // pred_check_branch
      %191 = sbr.rel (0) target = $region89
    $region88: #{tpu_custom_call.1} parent=1 // pred_region
      %192 = dma.done [#allocation16], 16
    $region89: #{tpu_custom_call.1} parent=1 // pred_fallthru
      _
    // Predicated region
    $region90: #{tpu_custom_call.1} parent=1 // pred_check
      _
    $region91: #{tpu_custom_call.1} parent=1 // pred_check_branch
      %194 = sbr.rel (0) target = $region93
    $region92: #{tpu_custom_call.1} parent=1 // pred_region
      %195 = dma.done [#allocation19], 16
    $region93: #{tpu_custom_call.1} parent=1 // pred_fallthru
      _
    // Predicated region
    $region94: #{tpu_custom_call.1} parent=1 // pred_check
      _
    $region95: #{tpu_custom_call.1} parent=1 // pred_check_branch
      %197 = sbr.rel (0) target = $region97
    $region96: #{tpu_custom_call.1} parent=1 // pred_region
      %198 = dma.done [#allocation19], 16
    $region97: #{tpu_custom_call.1} parent=1 // pred_fallthru
      _
    // Predicated region
    $region98: #{tpu_custom_call.1} parent=1 // pred_check
      _
    $region99: #{tpu_custom_call.1} parent=1 // pred_check_branch
      %200 = sbr.rel (0) target = $region101
    $region100: #{tpu_custom_call.1} parent=1 // pred_region
      %201 = dma.done [#allocation22], 16
    $region101: #{tpu_custom_call.1} parent=1 // pred_fallthru
      _
    // Predicated region
    $region102: #{tpu_custom_call.1} parent=1 // pred_check
      _
    $region103: #{tpu_custom_call.1} parent=1 // pred_check_branch
      %203 = sbr.rel (0) target = $region105
    $region104: #{tpu_custom_call.1} parent=1 // pred_region
      %204 = dma.done [#allocation22], 16
    $region105: #{tpu_custom_call.1} parent=1 // pred_fallthru
      _
    %v206 = vld [vmem:[#allocation3] sm:$0xf]
    %v207 = vld [vmem:[#allocation3 + $0x4] sm:$0xf]
    %v208 = vld [vmem:[#allocation3 + $0x8] sm:$0xf]
    %v209 = vld [vmem:[#allocation3 + $0xc] sm:$0xf]
    %v210 = vld [vmem:[#allocation3 + $0x10] sm:$0xf]
    %v211 = vld [vmem:[#allocation3 + $0x14] sm:$0xf]
    %v212 = vld [vmem:[#allocation3 + $0x18] sm:$0xf]
    %v213 = vld [vmem:[#allocation3 + $0x1c] sm:$0xf]
    %v214 = vld [vmem:[#allocation3 + $0x20] sm:$0xf]
    %v215 = vld [vmem:[#allocation3 + $0x24] sm:$0xf]
    %v216 = vld [vmem:[#allocation3 + $0x28] sm:$0xf]
    %v217 = vld [vmem:[#allocation3 + $0x2c] sm:$0xf]
    %v218 = vld [vmem:[#allocation3 + $0x30] sm:$0xf]
    %v219 = vld [vmem:[#allocation3 + $0x34] sm:$0xf]
    %v220 = vld [vmem:[#allocation3 + $0x38] sm:$0xf]
    %v221 = vld [vmem:[#allocation3 + $0x3c] sm:$0xf]
    %v222 = vld [vmem:[#allocation6] sm:$0xf]
    %v223 = vld [vmem:[#allocation6 + $0x4] sm:$0xf]
    %v224 = vld [vmem:[#allocation6 + $0x8] sm:$0xf]
    %v225 = vld [vmem:[#allocation6 + $0xc] sm:$0xf]
    %v226 = vld [vmem:[#allocation6 + $0x10] sm:$0xf]
    %v227 = vld [vmem:[#allocation6 + $0x14] sm:$0xf]
    %v228 = vld [vmem:[#allocation6 + $0x18] sm:$0xf]
    %v229 = vld [vmem:[#allocation6 + $0x1c] sm:$0xf]
    %v230 = vld [vmem:[#allocation6 + $0x20] sm:$0xf]
    %v231 = vld [vmem:[#allocation6 + $0x24] sm:$0xf]
    %v232 = vld [vmem:[#allocation6 + $0x28] sm:$0xf]
    %v233 = vld [vmem:[#allocation6 + $0x2c] sm:$0xf]
    %v234 = vld [vmem:[#allocation6 + $0x30] sm:$0xf]
    %v235 = vld [vmem:[#allocation6 + $0x34] sm:$0xf]
    %v236 = vld [vmem:[#allocation6 + $0x38] sm:$0xf]
    %v237 = vld [vmem:[#allocation6 + $0x3c] sm:$0xf]
    %v254 = vunpack.c.l.b16 %v206
    %v255 = vunpack.c.l.b16 %v207
    %v256 = vunpack.c.l.b16 %v208
    %v257 = vunpack.c.l.b16 %v209
    %v258 = vunpack.c.l.b16 %v210
    %v259 = vunpack.c.l.b16 %v211
    %v260 = vunpack.c.l.b16 %v212
    %v261 = vunpack.c.l.b16 %v213
    %v262 = vunpack.c.l.b16 %v214
    %v263 = vunpack.c.l.b16 %v215
    %v264 = vunpack.c.l.b16 %v216
    %v265 = vunpack.c.l.b16 %v217
    %v266 = vunpack.c.l.b16 %v218
    %v267 = vunpack.c.l.b16 %v219
    %v268 = vunpack.c.l.b16 %v220
    %v269 = vunpack.c.l.b16 %v221
    %v270 = vpack.c.b16 %v255, %v254
    %v271 = vpack.c.b16 %v257, %v256
    %v272 = vpack.c.b16 %v259, %v258
    %v273 = vpack.c.b16 %v261, %v260
    %v274 = vpack.c.b16 %v263, %v262
    %v275 = vpack.c.b16 %v265, %v264
    %v276 = vpack.c.b16 %v267, %v266
    %v277 = vpack.c.b16 %v269, %v268
    %v302 = vunpack.c.l.b16 %v222
    %v303 = vunpack.c.l.b16 %v223
    %v304 = vunpack.c.l.b16 %v224
    %v305 = vunpack.c.l.b16 %v225
    %v306 = vunpack.c.l.b16 %v226
    %v307 = vunpack.c.l.b16 %v227
    %v308 = vunpack.c.l.b16 %v228
    %v309 = vunpack.c.l.b16 %v229
    %v310 = vunpack.c.l.b16 %v230
    %v311 = vunpack.c.l.b16 %v231
    %v312 = vunpack.c.l.b16 %v232
    %v313 = vunpack.c.l.b16 %v233
    %v314 = vunpack.c.l.b16 %v234
    %v315 = vunpack.c.l.b16 %v235
    %v316 = vunpack.c.l.b16 %v236
    %v317 = vunpack.c.l.b16 %v237
    %v318 = vpack.c.b16 %v303, %v302
    %v319 = vpack.c.b16 %v305, %v304
    %v320 = vpack.c.b16 %v307, %v306
    %v321 = vpack.c.b16 %v309, %v308
    %v322 = vpack.c.b16 %v311, %v310
    %v323 = vpack.c.b16 %v313, %v312
    %v324 = vpack.c.b16 %v315, %v314
    %v325 = vpack.c.b16 %v317, %v316
    %334 = vmatprep.subr.bf16.mxu0 0
    %335 = vmatpush1.bf16.msra.mxu0 %v318
    %336 = vmatprep.subr.bf16.mxu0 0
    %337 = vmatpush1.bf16.msra.mxu0 %v319
    %338 = vmatprep.subr.bf16.mxu0 0
    %339 = vmatpush1.bf16.msra.mxu0 %v320
    %340 = vmatprep.subr.bf16.mxu0 0
    %341 = vmatpush1.bf16.msra.mxu0 %v321
    %342 = vmatprep.subr.bf16.mxu0 0
    %343 = vmatpush1.bf16.msra.mxu0 %v322
    %344 = vmatprep.subr.bf16.mxu0 0
    %345 = vmatpush1.bf16.msra.mxu0 %v323
    %346 = vmatprep.subr.bf16.mxu0 0
    %347 = vmatpush1.bf16.msra.mxu0 %v324
    %348 = vmatprep.subr.bf16.mxu0 0
    %349 = vmatpush1.bf16.msra.mxu0 %v325
    %350 = vmatprep.subr.bf16.mxu0 0
    %351 = vmatpush1.bf16.msra.mxu0 0
    %352 = vmatprep.subr.bf16.mxu0 0
    %353 = vmatpush1.bf16.msra.mxu0 0
    %354 = vmatprep.subr.bf16.mxu0 0
    %355 = vmatpush1.bf16.msra.mxu0 0
    %356 = vmatprep.subr.bf16.mxu0 0
    %357 = vmatpush1.bf16.msra.mxu0 0
    %358 = vmatprep.subr.bf16.mxu0 0
    %359 = vmatpush1.bf16.msra.mxu0 0
    %360 = vmatprep.subr.bf16.mxu0 0
    %361 = vmatpush1.bf16.msra.mxu0 0
    %362 = vmatprep.subr.bf16.mxu0 0
    %363 = vmatpush1.bf16.msra.mxu0 0
    %364 = vmatprep.subr.bf16.mxu0 0
    %365 = vmatpush1.bf16.msra.mxu0 0
    %366 = vmatprep.mubr.bf16.mxu0 0
    %367 = vmatmul.mubr.bf16.gmra.mrb[0].mxu0 %v270
    %v368 = vpop.f32.mrb[0].mxu0
    %v369 = vadd.f32 0.0, %v368
    %v370 = vpop.f32.mrb[0].mxu0
    %v371 = vpop.f32.mrb[0].mxu0
    %v372 = vadd.f32 0.0, %v371
    %v373 = vpop.f32.mrb[0].mxu0
    %374 = vmatprep.mubr.bf16.mxu0 0
    %375 = vmatmul.mubr.bf16.gmra.mrb[0].mxu0 %v271
    %v376 = vpop.f32.mrb[0].mxu0
    %v377 = vadd.f32 0.0, %v376
    %v378 = vpop.f32.mrb[0].mxu0
    %v379 = vpop.f32.mrb[0].mxu0
    %v380 = vadd.f32 0.0, %v379
    %v381 = vpop.f32.mrb[0].mxu0
    %382 = vmatprep.mubr.bf16.mxu0 0
    %383 = vmatmul.mubr.bf16.gmra.mrb[0].mxu0 %v272
    %v384 = vpop.f32.mrb[0].mxu0
    %v385 = vadd.f32 0.0, %v384
    %v386 = vpop.f32.mrb[0].mxu0
    %v387 = vpop.f32.mrb[0].mxu0
    %v388 = vadd.f32 0.0, %v387
    %v389 = vpop.f32.mrb[0].mxu0
    %390 = vmatprep.mubr.bf16.mxu0 0
    %391 = vmatmul.mubr.bf16.gmra.mrb[0].mxu0 %v273
    %v392 = vpop.f32.mrb[0].mxu0
    %v393 = vadd.f32 0.0, %v392
    %v394 = vpop.f32.mrb[0].mxu0
    %v395 = vpop.f32.mrb[0].mxu0
    %v396 = vadd.f32 0.0, %v395
    %v397 = vpop.f32.mrb[0].mxu0
    %398 = vmatprep.mubr.bf16.mxu0 0
    %399 = vmatmul.mubr.bf16.gmra.mrb[0].mxu0 %v274
    %v400 = vpop.f32.mrb[0].mxu0
    %v401 = vadd.f32 0.0, %v400
    %v402 = vpop.f32.mrb[0].mxu0
    %v403 = vpop.f32.mrb[0].mxu0
    %v404 = vadd.f32 0.0, %v403
    %v405 = vpop.f32.mrb[0].mxu0
    %406 = vmatprep.mubr.bf16.mxu0 0
    %407 = vmatmul.mubr.bf16.gmra.mrb[0].mxu0 %v275
    %v408 = vpop.f32.mrb[0].mxu0
    %v409 = vadd.f32 0.0, %v408
    %v410 = vpop.f32.mrb[0].mxu0
    %v411 = vpop.f32.mrb[0].mxu0
    %v412 = vadd.f32 0.0, %v411
    %v413 = vpop.f32.mrb[0].mxu0
    %414 = vmatprep.mubr.bf16.mxu0 0
    %415 = vmatmul.mubr.bf16.gmra.mrb[0].mxu0 %v276
    %v416 = vpop.f32.mrb[0].mxu0
    %v417 = vadd.f32 0.0, %v416
    %v418 = vpop.f32.mrb[0].mxu0
    %v419 = vpop.f32.mrb[0].mxu0
    %v420 = vadd.f32 0.0, %v419
    %v421 = vpop.f32.mrb[0].mxu0
    %422 = vmatprep.mubr.bf16.mxu0 0
    %423 = vmatmul.mubr.bf16.gmra.mrb[0].mxu0 %v277
    %v424 = vpop.f32.mrb[0].mxu0
    %v425 = vadd.f32 0.0, %v424
    %v426 = vpop.f32.mrb[0].mxu0
    %v427 = vpop.f32.mrb[0].mxu0
    %v428 = vadd.f32 0.0, %v427
    %v429 = vpop.f32.mrb[0].mxu0
    %430 = vdwg.mxu0
    %v431 = vld [vmem:[#allocation12] sm:$0x1]
    %v433 = vlaneseq
    %v434 = vshrl.u32 %v433, 7
    %v435 = vsub.s32 0, %v434
    %v436 = vrot.slane %v431, %v435
    %v438 = vmul.f32 %v369, %v436
    %v439 = vmul.f32 %v372, %v436
    %v440 = vmul.f32 %v377, %v436
    %v441 = vmul.f32 %v380, %v436
    %v442 = vmul.f32 %v385, %v436
    %v443 = vmul.f32 %v388, %v436
    %v444 = vmul.f32 %v393, %v436
    %v445 = vmul.f32 %v396, %v436
    %v446 = vmul.f32 %v401, %v436
    %v447 = vmul.f32 %v404, %v436
    %v448 = vmul.f32 %v409, %v436
    %v449 = vmul.f32 %v412, %v436
    %v450 = vmul.f32 %v417, %v436
    %v451 = vmul.f32 %v420, %v436
    %v452 = vmul.f32 %v425, %v436
    %v453 = vmul.f32 %v428, %v436
    %v454 = vld [vmem:[#allocation14] sm:$0x1]
    %v456 = vlaneseq
    %v457 = vshrl.u32 %v456, 7
    %v458 = vsub.s32 0, %v457
    %v459 = vrot.slane %v454, %v458
    %v461 = vadd.f32 %v438, %v459
    %v462 = vadd.f32 %v439, %v459
    %v463 = vadd.f32 %v440, %v459
    %v464 = vadd.f32 %v441, %v459
    %v465 = vadd.f32 %v442, %v459
    %v466 = vadd.f32 %v443, %v459
    %v467 = vadd.f32 %v444, %v459
    %v468 = vadd.f32 %v445, %v459
    %v469 = vadd.f32 %v446, %v459
    %v470 = vadd.f32 %v447, %v459
    %v471 = vadd.f32 %v448, %v459
    %v472 = vadd.f32 %v449, %v459
    %v473 = vadd.f32 %v450, %v459
    %v474 = vadd.f32 %v451, %v459
    %v475 = vadd.f32 %v452, %v459
    %v476 = vadd.f32 %v453, %v459
    %v477 = vmax.f32 %v461, 0.0
    %v478 = vmax.f32 %v462, 0.0
    %v479 = vmax.f32 %v463, 0.0
    %v480 = vmax.f32 %v464, 0.0
    %v481 = vmax.f32 %v465, 0.0
    %v482 = vmax.f32 %v466, 0.0
    %v483 = vmax.f32 %v467, 0.0
    %v484 = vmax.f32 %v468, 0.0
    %v485 = vmax.f32 %v469, 0.0
    %v486 = vmax.f32 %v470, 0.0
    %v487 = vmax.f32 %v471, 0.0
    %v488 = vmax.f32 %v472, 0.0
    %v489 = vmax.f32 %v473, 0.0
    %v490 = vmax.f32 %v474, 0.0
    %v491 = vmax.f32 %v475, 0.0
    %v492 = vmax.f32 %v476, 0.0
    %v493 = vlaneseq
    %v494 = vshrl.u32 %v493, 7
    %vm495 = vcmp.gt.s32.totalorder %v494, 0
    %v496 = vrot.slane %v477, 7
    %v497 = vrot.slane %v478, 7
    %v498 = vrot.slane %v479, 7
    %v499 = vrot.slane %v480, 7
    %v500 = vrot.slane %v481, 7
    %v501 = vrot.slane %v482, 7
    %v502 = vrot.slane %v483, 7
    %v503 = vrot.slane %v484, 7
    %v504 = vrot.slane %v485, 7
    %v505 = vrot.slane %v486, 7
    %v506 = vrot.slane %v487, 7
    %v507 = vrot.slane %v488, 7
    %v508 = vrot.slane %v489, 7
    %v509 = vrot.slane %v490, 7
    %v510 = vrot.slane %v491, 7
    %v511 = vrot.slane %v492, 7
    %v512 = vsel %vm495, %v496, 0.0
    %v513 = vsel %vm495, %v497, 0.0
    %v514 = vsel %vm495, %v498, 0.0
    %v515 = vsel %vm495, %v499, 0.0
    %v516 = vsel %vm495, %v500, 0.0
    %v517 = vsel %vm495, %v501, 0.0
    %v518 = vsel %vm495, %v502, 0.0
    %v519 = vsel %vm495, %v503, 0.0
    %v520 = vsel %vm495, %v504, 0.0
    %v521 = vsel %vm495, %v505, 0.0
    %v522 = vsel %vm495, %v506, 0.0
    %v523 = vsel %vm495, %v507, 0.0
    %v524 = vsel %vm495, %v508, 0.0
    %v525 = vsel %vm495, %v509, 0.0
    %v526 = vsel %vm495, %v510, 0.0
    %v527 = vsel %vm495, %v511, 0.0
    %vm528 = vcmp.lt.s32.totalorder %v494, 7
    %v529 = vrot.slane %v477, 1
    %v530 = vrot.slane %v478, 1
    %v531 = vrot.slane %v479, 1
    %v532 = vrot.slane %v480, 1
    %v533 = vrot.slane %v481, 1
    %v534 = vrot.slane %v482, 1
    %v535 = vrot.slane %v483, 1
    %v536 = vrot.slane %v484, 1
    %v537 = vrot.slane %v485, 1
    %v538 = vrot.slane %v486, 1
    %v539 = vrot.slane %v487, 1
    %v540 = vrot.slane %v488, 1
    %v541 = vrot.slane %v489, 1
    %v542 = vrot.slane %v490, 1
    %v543 = vrot.slane %v491, 1
    %v544 = vrot.slane %v492, 1
    %v545 = vsel %vm528, %v529, 0.0
    %v546 = vsel %vm528, %v530, 0.0
    %v547 = vsel %vm528, %v531, 0.0
    %v548 = vsel %vm528, %v532, 0.0
    %v549 = vsel %vm528, %v533, 0.0
    %v550 = vsel %vm528, %v534, 0.0
    %v551 = vsel %vm528, %v535, 0.0
    %v552 = vsel %vm528, %v536, 0.0
    %v553 = vsel %vm528, %v537, 0.0
    %v554 = vsel %vm528, %v538, 0.0
    %v555 = vsel %vm528, %v539, 0.0
    %v556 = vsel %vm528, %v540, 0.0
    %v557 = vsel %vm528, %v541, 0.0
    %v558 = vsel %vm528, %v542, 0.0
    %v559 = vsel %vm528, %v543, 0.0
    %v560 = vsel %vm528, %v544, 0.0
    %561 = vst [vmem:[#allocation2] sm:$0xff] 0
    %562 = vst [vmem:[#allocation2 + $0x8] sm:$0xf] 0
    %563 = vst [vmem:[#allocation2 + $0x78] sm:$0xff] 0
    %564 = vst [vmem:[#allocation2 + $0x80] sm:$0xf] 0
    %s565 = scalar_lea.vmem [#allocation2], 108
    %566 = vst [vmem:[%s565] sm:$0xff] 0
    %567 = vst [vmem:[%s565 + $0x8] sm:$0xf] 0
    %568 = vst [vmem:[%s565 + $0x78] sm:$0xff] 0
    %569 = vst [vmem:[%s565 + $0x80] sm:$0xf] 0
    %v570 = vpack.c.bf16 %v512, %v512
    %v571 = vpack.c.bf16 %v513, %v513
    %v572 = vpack.c.bf16 %v514, %v514
    %v573 = vpack.c.bf16 %v515, %v515
    %v574 = vpack.c.bf16 %v516, %v516
    %v575 = vpack.c.bf16 %v517, %v517
    %v576 = vpack.c.bf16 %v518, %v518
    %v577 = vpack.c.bf16 %v519, %v519
    %v578 = vpack.c.bf16 %v520, %v520
    %v579 = vpack.c.bf16 %v521, %v521
    %v580 = vpack.c.bf16 %v522, %v522
    %v581 = vpack.c.bf16 %v523, %v523
    %v582 = vpack.c.bf16 %v524, %v524
    %v583 = vpack.c.bf16 %v525, %v525
    %v584 = vpack.c.bf16 %v526, %v526
    %v585 = vpack.c.bf16 %v527, %v527
    %s586 = scalar_lea.vmem [#allocation2], 12
    %587 = vst [vmem:[%s586] sm:$0xf] %v570
    %588 = vst [vmem:[%s586 + $0xc] sm:$0xf] %v571
    %589 = vst [vmem:[%s586 + $0x18] sm:$0xf] %v572
    %590 = vst [vmem:[%s586 + $0x24] sm:$0xf] %v573
    %591 = vst [vmem:[%s586 + $0x30] sm:$0xf] %v574
    %592 = vst [vmem:[%s586 + $0x3c] sm:$0xf] %v575
    %593 = vst [vmem:[%s586 + $0x48] sm:$0xf] %v576
    %594 = vst [vmem:[%s586 + $0x54] sm:$0xf] %v577
    %595 = vst [vmem:[%s586 + $0x78] sm:$0xf] %v578
    %596 = vst [vmem:[%s586 + $0x84] sm:$0xf] %v579
    %597 = vst [vmem:[%s586 + $0x90] sm:$0xf] %v580
    %598 = vst [vmem:[%s586 + $0x9c] sm:$0xf] %v581
    %599 = vst [vmem:[%s586 + $0xa8] sm:$0xf] %v582
    %600 = vst [vmem:[%s586 + $0xb4] sm:$0xf] %v583
    %601 = vst [vmem:[%s586 + $0xc0] sm:$0xf] %v584
    %602 = vst [vmem:[%s586 + $0xcc] sm:$0xf] %v585
    %v603 = vpack.c.bf16 %v477, %v477
    %v604 = vpack.c.bf16 %v478, %v478
    %v605 = vpack.c.bf16 %v479, %v479
    %v606 = vpack.c.bf16 %v480, %v480
    %v607 = vpack.c.bf16 %v481, %v481
    %v608 = vpack.c.bf16 %v482, %v482
    %v609 = vpack.c.bf16 %v483, %v483
    %v610 = vpack.c.bf16 %v484, %v484
    %v611 = vpack.c.bf16 %v485, %v485
    %v612 = vpack.c.bf16 %v486, %v486
    %v613 = vpack.c.bf16 %v487, %v487
    %v614 = vpack.c.bf16 %v488, %v488
    %v615 = vpack.c.bf16 %v489, %v489
    %v616 = vpack.c.bf16 %v490, %v490
    %v617 = vpack.c.bf16 %v491, %v491
    %v618 = vpack.c.bf16 %v492, %v492
    %619 = vst [vmem:[%s586 + $0x4] sm:$0xf] %v603
    %620 = vst [vmem:[%s586 + $0x10] sm:$0xf] %v604
    %621 = vst [vmem:[%s586 + $0x1c] sm:$0xf] %v605
    %622 = vst [vmem:[%s586 + $0x28] sm:$0xf] %v606
    %623 = vst [vmem:[%s586 + $0x34] sm:$0xf] %v607
    %624 = vst [vmem:[%s586 + $0x40] sm:$0xf] %v608
    %625 = vst [vmem:[%s586 + $0x4c] sm:$0xf] %v609
    %626 = vst [vmem:[%s586 + $0x58] sm:$0xf] %v610
    %627 = vst [vmem:[%s586 + $0x7c] sm:$0xf] %v611
    %628 = vst [vmem:[%s586 + $0x88] sm:$0xf] %v612
    %629 = vst [vmem:[%s586 + $0x94] sm:$0xf] %v613
    %630 = vst [vmem:[%s586 + $0xa0] sm:$0xf] %v614
    %631 = vst [vmem:[%s586 + $0xac] sm:$0xf] %v615
    %632 = vst [vmem:[%s586 + $0xb8] sm:$0xf] %v616
    %633 = vst [vmem:[%s586 + $0xc4] sm:$0xf] %v617
    %634 = vst [vmem:[%s586 + $0xd0] sm:$0xf] %v618
    %v635 = vpack.c.bf16 %v545, %v545
    %v636 = vpack.c.bf16 %v546, %v546
    %v637 = vpack.c.bf16 %v547, %v547
    %v638 = vpack.c.bf16 %v548, %v548
    %v639 = vpack.c.bf16 %v549, %v549
    %v640 = vpack.c.bf16 %v550, %v550
    %v641 = vpack.c.bf16 %v551, %v551
    %v642 = vpack.c.bf16 %v552, %v552
    %v643 = vpack.c.bf16 %v553, %v553
    %v644 = vpack.c.bf16 %v554, %v554
    %v645 = vpack.c.bf16 %v555, %v555
    %v646 = vpack.c.bf16 %v556, %v556
    %v647 = vpack.c.bf16 %v557, %v557
    %v648 = vpack.c.bf16 %v558, %v558
    %v649 = vpack.c.bf16 %v559, %v559
    %v650 = vpack.c.bf16 %v560, %v560
    %651 = vst [vmem:[%s586 + $0x8] sm:$0xf] %v635
    %652 = vst [vmem:[%s586 + $0x14] sm:$0xf] %v636
    %653 = vst [vmem:[%s586 + $0x20] sm:$0xf] %v637
    %654 = vst [vmem:[%s586 + $0x2c] sm:$0xf] %v638
    %655 = vst [vmem:[%s586 + $0x38] sm:$0xf] %v639
    %656 = vst [vmem:[%s586 + $0x44] sm:$0xf] %v640
    %657 = vst [vmem:[%s586 + $0x50] sm:$0xf] %v641
    %658 = vst [vmem:[%s586 + $0x5c] sm:$0xf] %v642
    %659 = vst [vmem:[%s586 + $0x80] sm:$0xf] %v643
    %660 = vst [vmem:[%s586 + $0x8c] sm:$0xf] %v644
    %661 = vst [vmem:[%s586 + $0x98] sm:$0xf] %v645
    %662 = vst [vmem:[%s586 + $0xa4] sm:$0xf] %v646
    %663 = vst [vmem:[%s586 + $0xb0] sm:$0xf] %v647
    %664 = vst [vmem:[%s586 + $0xbc] sm:$0xf] %v648
    %665 = vst [vmem:[%s586 + $0xc8] sm:$0xf] %v649
    %666 = vst [vmem:[%s586 + $0xd4] sm:$0xf] %v650
    %v667 = vld [vmem:[#allocation2] sm:$0xff]
    %v668 = vld [vmem:[#allocation2 + $0x8] sm:$0xf]
    %v669 = vld [vmem:[#allocation2 + $0xc] sm:$0xff]
    %v670 = vld [vmem:[#allocation2 + $0x14] sm:$0xf]
    %v671 = vld [vmem:[#allocation2 + $0x18] sm:$0xff]
    %v672 = vld [vmem:[#allocation2 + $0x20] sm:$0xf]
    %v673 = vld [vmem:[#allocation2 + $0x24] sm:$0xff]
    %v674 = vld [vmem:[#allocation2 + $0x2c] sm:$0xf]
    %v675 = vld [vmem:[#allocation2 + $0x30] sm:$0xff]
    %v676 = vld [vmem:[#allocation2 + $0x38] sm:$0xf]
    %v677 = vld [vmem:[#allocation2 + $0x3c] sm:$0xff]
    %v678 = vld [vmem:[#allocation2 + $0x44] sm:$0xf]
    %v679 = vld [vmem:[#allocation2 + $0x48] sm:$0xff]
    %v680 = vld [vmem:[#allocation2 + $0x50] sm:$0xf]
    %v681 = vld [vmem:[#allocation2 + $0x54] sm:$0xff]
    %v682 = vld [vmem:[#allocation2 + $0x5c] sm:$0xf]
    %v683 = vld [vmem:[#allocation2 + $0x78] sm:$0xff]
    %v684 = vld [vmem:[#allocation2 + $0x80] sm:$0xf]
    %v685 = vld [vmem:[#allocation2 + $0x84] sm:$0xff]
    %v686 = vld [vmem:[#allocation2 + $0x8c] sm:$0xf]
    %v687 = vld [vmem:[#allocation2 + $0x90] sm:$0xff]
    %v688 = vld [vmem:[#allocation2 + $0x98] sm:$0xf]
    %v689 = vld [vmem:[#allocation2 + $0x9c] sm:$0xff]
    %v690 = vld [vmem:[#allocation2 + $0xa4] sm:$0xf]
    %v691 = vld [vmem:[#allocation2 + $0xa8] sm:$0xff]
    %v692 = vld [vmem:[#allocation2 + $0xb0] sm:$0xf]
    %v693 = vld [vmem:[#allocation2 + $0xb4] sm:$0xff]
    %v694 = vld [vmem:[#allocation2 + $0xbc] sm:$0xf]
    %v695 = vld [vmem:[#allocation2 + $0xc0] sm:$0xff]
    %v696 = vld [vmem:[#allocation2 + $0xc8] sm:$0xf]
    %v697 = vld [vmem:[#allocation2 + $0xcc] sm:$0xff]
    %v698 = vld [vmem:[#allocation2 + $0xd4] sm:$0xf]
    %v699 = vld [vmem:[#allocation8] sm:$0xf]
    %v700 = vld [vmem:[#allocation8 + $0x4] sm:$0xf]
    %v701 = vld [vmem:[#allocation8 + $0x8] sm:$0xf]
    %v702 = vld [vmem:[#allocation8 + $0xc] sm:$0xf]
    %v703 = vld [vmem:[#allocation8 + $0x10] sm:$0xf]
    %v704 = vld [vmem:[#allocation8 + $0x14] sm:$0xf]
    %v705 = vld [vmem:[#allocation8 + $0x18] sm:$0xf]
    %v706 = vld [vmem:[#allocation8 + $0x1c] sm:$0xf]
    %v707 = vld [vmem:[#allocation8 + $0x20] sm:$0xf]
    %v708 = vld [vmem:[#allocation8 + $0x24] sm:$0xf]
    %v709 = vld [vmem:[#allocation8 + $0x28] sm:$0xf]
    %v710 = vld [vmem:[#allocation8 + $0x2c] sm:$0xf]
    %v711 = vld [vmem:[#allocation8 + $0x30] sm:$0xf]
    %v712 = vld [vmem:[#allocation8 + $0x34] sm:$0xf]
    %v713 = vld [vmem:[#allocation8 + $0x38] sm:$0xf]
    %v714 = vld [vmem:[#allocation8 + $0x3c] sm:$0xf]
    %v715 = vld [vmem:[#allocation8 + $0x40] sm:$0xf]
    %v716 = vld [vmem:[#allocation8 + $0x44] sm:$0xf]
    %v717 = vld [vmem:[#allocation8 + $0x48] sm:$0xf]
    %v718 = vld [vmem:[#allocation8 + $0x4c] sm:$0xf]
    %v719 = vld [vmem:[#allocation8 + $0x50] sm:$0xf]
    %v720 = vld [vmem:[#allocation8 + $0x54] sm:$0xf]
    %v721 = vld [vmem:[#allocation8 + $0x58] sm:$0xf]
    %v722 = vld [vmem:[#allocation8 + $0x5c] sm:$0xf]
    %v723 = vld [vmem:[#allocation8 + $0x60] sm:$0xf]
    %v724 = vld [vmem:[#allocation8 + $0x64] sm:$0xf]
    %v725 = vld [vmem:[#allocation8 + $0x68] sm:$0xf]
    %v726 = vld [vmem:[#allocation8 + $0x6c] sm:$0xf]
    %v727 = vld [vmem:[#allocation8 + $0x70] sm:$0xf]
    %v728 = vld [vmem:[#allocation8 + $0x74] sm:$0xf]
    %v729 = vld [vmem:[#allocation8 + $0x78] sm:$0xf]
    %v730 = vld [vmem:[#allocation8 + $0x7c] sm:$0xf]
    %v731 = vld [vmem:[#allocation8 + $0x80] sm:$0xf]
    %v732 = vld [vmem:[#allocation8 + $0x84] sm:$0xf]
    %v733 = vld [vmem:[#allocation8 + $0x88] sm:$0xf]
    %v734 = vld [vmem:[#allocation8 + $0x8c] sm:$0xf]
    %v735 = vld [vmem:[#allocation8 + $0x90] sm:$0xf]
    %v736 = vld [vmem:[#allocation8 + $0x94] sm:$0xf]
    %v737 = vld [vmem:[#allocation8 + $0x98] sm:$0xf]
    %v738 = vld [vmem:[#allocation8 + $0x9c] sm:$0xf]
    %v739 = vld [vmem:[#allocation8 + $0xa0] sm:$0xf]
    %v740 = vld [vmem:[#allocation8 + $0xa4] sm:$0xf]
    %v741 = vld [vmem:[#allocation8 + $0xa8] sm:$0xf]
    %v742 = vld [vmem:[#allocation8 + $0xac] sm:$0xf]
    %v743 = vld [vmem:[#allocation8 + $0xb0] sm:$0xf]
    %v744 = vld [vmem:[#allocation8 + $0xb4] sm:$0xf]
    %v745 = vld [vmem:[#allocation8 + $0xb8] sm:$0xf]
    %v746 = vld [vmem:[#allocation8 + $0xbc] sm:$0xf]
    %v747 = vld [vmem:[%s586] sm:$0xff]
    %v748 = vld [vmem:[%s586 + $0x8] sm:$0xf]
    %v749 = vld [vmem:[%s586 + $0xc] sm:$0xff]
    %v750 = vld [vmem:[%s586 + $0x14] sm:$0xf]
    %v751 = vld [vmem:[%s586 + $0x18] sm:$0xff]
    %v752 = vld [vmem:[%s586 + $0x20] sm:$0xf]
    %v753 = vld [vmem:[%s586 + $0x24] sm:$0xff]
    %v754 = vld [vmem:[%s586 + $0x2c] sm:$0xf]
    %v755 = vld [vmem:[%s586 + $0x30] sm:$0xff]
    %v756 = vld [vmem:[%s586 + $0x38] sm:$0xf]
    %v757 = vld [vmem:[%s586 + $0x3c] sm:$0xff]
    %v758 = vld [vmem:[%s586 + $0x44] sm:$0xf]
    %v759 = vld [vmem:[%s586 + $0x48] sm:$0xff]
    %v760 = vld [vmem:[%s586 + $0x50] sm:$0xf]
    %v761 = vld [vmem:[%s586 + $0x54] sm:$0xff]
    %v762 = vld [vmem:[%s586 + $0x5c] sm:$0xf]
    %v763 = vld [vmem:[%s586 + $0x78] sm:$0xff]
    %v764 = vld [vmem:[%s586 + $0x80] sm:$0xf]
    %v765 = vld [vmem:[%s586 + $0x84] sm:$0xff]
    %v766 = vld [vmem:[%s586 + $0x8c] sm:$0xf]
    %v767 = vld [vmem:[%s586 + $0x90] sm:$0xff]
    %v768 = vld [vmem:[%s586 + $0x98] sm:$0xf]
    %v769 = vld [vmem:[%s586 + $0x9c] sm:$0xff]
    %v770 = vld [vmem:[%s586 + $0xa4] sm:$0xf]
    %v771 = vld [vmem:[%s586 + $0xa8] sm:$0xff]
    %v772 = vld [vmem:[%s586 + $0xb0] sm:$0xf]
    %v773 = vld [vmem:[%s586 + $0xb4] sm:$0xff]
    %v774 = vld [vmem:[%s586 + $0xbc] sm:$0xf]
    %v775 = vld [vmem:[%s586 + $0xc0] sm:$0xff]
    %v776 = vld [vmem:[%s586 + $0xc8] sm:$0xf]
    %v777 = vld [vmem:[%s586 + $0xcc] sm:$0xff]
    %v778 = vld [vmem:[%s586 + $0xd4] sm:$0xf]
    %s779 = scalar_lea.vmem [#allocation8], 192
    %v780 = vld [vmem:[%s779] sm:$0xf]
    %v781 = vld [vmem:[%s779 + $0x4] sm:$0xf]
    %v782 = vld [vmem:[%s779 + $0x8] sm:$0xf]
    %v783 = vld [vmem:[%s779 + $0xc] sm:$0xf]
    %v784 = vld [vmem:[%s779 + $0x10] sm:$0xf]
    %v785 = vld [vmem:[%s779 + $0x14] sm:$0xf]
    %v786 = vld [vmem:[%s779 + $0x18] sm:$0xf]
    %v787 = vld [vmem:[%s779 + $0x1c] sm:$0xf]
    %v788 = vld [vmem:[%s779 + $0x20] sm:$0xf]
    %v789 = vld [vmem:[%s779 + $0x24] sm:$0xf]
    %v790 = vld [vmem:[%s779 + $0x28] sm:$0xf]
    %v791 = vld [vmem:[%s779 + $0x2c] sm:$0xf]
    %v792 = vld [vmem:[%s779 + $0x30] sm:$0xf]
    %v793 = vld [vmem:[%s779 + $0x34] sm:$0xf]
    %v794 = vld [vmem:[%s779 + $0x38] sm:$0xf]
    %v795 = vld [vmem:[%s779 + $0x3c] sm:$0xf]
    %v796 = vld [vmem:[%s779 + $0x40] sm:$0xf]
    %v797 = vld [vmem:[%s779 + $0x44] sm:$0xf]
    %v798 = vld [vmem:[%s779 + $0x48] sm:$0xf]
    %v799 = vld [vmem:[%s779 + $0x4c] sm:$0xf]
    %v800 = vld [vmem:[%s779 + $0x50] sm:$0xf]
    %v801 = vld [vmem:[%s779 + $0x54] sm:$0xf]
    %v802 = vld [vmem:[%s779 + $0x58] sm:$0xf]
    %v803 = vld [vmem:[%s779 + $0x5c] sm:$0xf]
    %v804 = vld [vmem:[%s779 + $0x60] sm:$0xf]
    %v805 = vld [vmem:[%s779 + $0x64] sm:$0xf]
    %v806 = vld [vmem:[%s779 + $0x68] sm:$0xf]
    %v807 = vld [vmem:[%s779 + $0x6c] sm:$0xf]
    %v808 = vld [vmem:[%s779 + $0x70] sm:$0xf]
    %v809 = vld [vmem:[%s779 + $0x74] sm:$0xf]
    %v810 = vld [vmem:[%s779 + $0x78] sm:$0xf]
    %v811 = vld [vmem:[%s779 + $0x7c] sm:$0xf]
    %v812 = vld [vmem:[%s779 + $0x80] sm:$0xf]
    %v813 = vld [vmem:[%s779 + $0x84] sm:$0xf]
    %v814 = vld [vmem:[%s779 + $0x88] sm:$0xf]
    %v815 = vld [vmem:[%s779 + $0x8c] sm:$0xf]
    %v816 = vld [vmem:[%s779 + $0x90] sm:$0xf]
    %v817 = vld [vmem:[%s779 + $0x94] sm:$0xf]
    %v818 = vld [vmem:[%s779 + $0x98] sm:$0xf]
    %v819 = vld [vmem:[%s779 + $0x9c] sm:$0xf]
    %v820 = vld [vmem:[%s779 + $0xa0] sm:$0xf]
    %v821 = vld [vmem:[%s779 + $0xa4] sm:$0xf]
    %v822 = vld [vmem:[%s779 + $0xa8] sm:$0xf]
    %v823 = vld [vmem:[%s779 + $0xac] sm:$0xf]
    %v824 = vld [vmem:[%s779 + $0xb0] sm:$0xf]
    %v825 = vld [vmem:[%s779 + $0xb4] sm:$0xf]
    %v826 = vld [vmem:[%s779 + $0xb8] sm:$0xf]
    %v827 = vld [vmem:[%s779 + $0xbc] sm:$0xf]
    %v860 = vunpack.c.l.b16 %v747
    %v861 = vunpack.c.h.b16 %v747
    %v862 = vunpack.c.l.b16 %v748
    %v863 = vunpack.c.l.b16 %v749
    %v864 = vunpack.c.h.b16 %v749
    %v865 = vunpack.c.l.b16 %v750
    %v866 = vunpack.c.l.b16 %v751
    %v867 = vunpack.c.h.b16 %v751
    %v868 = vunpack.c.l.b16 %v752
    %v869 = vunpack.c.l.b16 %v753
    %v870 = vunpack.c.h.b16 %v753
    %v871 = vunpack.c.l.b16 %v754
    %v872 = vunpack.c.l.b16 %v755
    %v873 = vunpack.c.h.b16 %v755
    %v874 = vunpack.c.l.b16 %v756
    %v875 = vunpack.c.l.b16 %v757
    %v876 = vunpack.c.h.b16 %v757
    %v877 = vunpack.c.l.b16 %v758
    %v878 = vunpack.c.l.b16 %v759
    %v879 = vunpack.c.h.b16 %v759
    %v880 = vunpack.c.l.b16 %v760
    %v881 = vunpack.c.l.b16 %v761
    %v882 = vunpack.c.h.b16 %v761
    %v883 = vunpack.c.l.b16 %v762
    %v884 = vunpack.c.l.b16 %v763
    %v885 = vunpack.c.h.b16 %v763
    %v886 = vunpack.c.l.b16 %v764
    %v887 = vunpack.c.l.b16 %v765
    %v888 = vunpack.c.h.b16 %v765
    %v889 = vunpack.c.l.b16 %v766
    %v890 = vunpack.c.l.b16 %v767
    %v891 = vunpack.c.h.b16 %v767
    %v892 = vunpack.c.l.b16 %v768
    %v893 = vunpack.c.l.b16 %v769
    %v894 = vunpack.c.h.b16 %v769
    %v895 = vunpack.c.l.b16 %v770
    %v896 = vunpack.c.l.b16 %v771
    %v897 = vunpack.c.h.b16 %v771
    %v898 = vunpack.c.l.b16 %v772
    %v899 = vunpack.c.l.b16 %v773
    %v900 = vunpack.c.h.b16 %v773
    %v901 = vunpack.c.l.b16 %v774
    %v902 = vunpack.c.l.b16 %v775
    %v903 = vunpack.c.h.b16 %v775
    %v904 = vunpack.c.l.b16 %v776
    %v905 = vunpack.c.l.b16 %v777
    %v906 = vunpack.c.h.b16 %v777
    %v907 = vunpack.c.l.b16 %v778
    %v908 = vpack.c.b16 %v863, %v860
    %v909 = vpack.c.b16 %v864, %v861
    %v910 = vpack.c.b16 %v865, %v862
    %v911 = vpack.c.b16 %v869, %v866
    %v912 = vpack.c.b16 %v870, %v867
    %v913 = vpack.c.b16 %v871, %v868
    %v914 = vpack.c.b16 %v875, %v872
    %v915 = vpack.c.b16 %v876, %v873
    %v916 = vpack.c.b16 %v877, %v874
    %v917 = vpack.c.b16 %v881, %v878
    %v918 = vpack.c.b16 %v882, %v879
    %v919 = vpack.c.b16 %v883, %v880
    %v920 = vpack.c.b16 %v887, %v884
    %v921 = vpack.c.b16 %v888, %v885
    %v922 = vpack.c.b16 %v889, %v886
    %v923 = vpack.c.b16 %v893, %v890
    %v924 = vpack.c.b16 %v894, %v891
    %v925 = vpack.c.b16 %v895, %v892
    %v926 = vpack.c.b16 %v899, %v896
    %v927 = vpack.c.b16 %v900, %v897
    %v928 = vpack.c.b16 %v901, %v898
    %v929 = vpack.c.b16 %v905, %v902
    %v930 = vpack.c.b16 %v906, %v903
    %v931 = vpack.c.b16 %v907, %v904
    %v1004 = vunpack.c.l.b16 %v780
    %v1005 = vunpack.c.l.b16 %v781
    %v1006 = vunpack.c.l.b16 %v782
    %v1007 = vunpack.c.l.b16 %v783
    %v1008 = vunpack.c.l.b16 %v784
    %v1009 = vunpack.c.l.b16 %v785
    %v1010 = vunpack.c.l.b16 %v786
    %v1011 = vunpack.c.l.b16 %v787
    %v1012 = vunpack.c.l.b16 %v788
    %v1013 = vunpack.c.l.b16 %v789
    %v1014 = vunpack.c.l.b16 %v790
    %v1015 = vunpack.c.l.b16 %v791
    %v1016 = vunpack.c.l.b16 %v792
    %v1017 = vunpack.c.l.b16 %v793
    %v1018 = vunpack.c.l.b16 %v794
    %v1019 = vunpack.c.l.b16 %v795
    %v1020 = vunpack.c.l.b16 %v796
    %v1021 = vunpack.c.l.b16 %v797
    %v1022 = vunpack.c.l.b16 %v798
    %v1023 = vunpack.c.l.b16 %v799
    %v1024 = vunpack.c.l.b16 %v800
    %v1025 = vunpack.c.l.b16 %v801
    %v1026 = vunpack.c.l.b16 %v802
    %v1027 = vunpack.c.l.b16 %v803
    %v1028 = vunpack.c.l.b16 %v804
    %v1029 = vunpack.c.l.b16 %v805
    %v1030 = vunpack.c.l.b16 %v806
    %v1031 = vunpack.c.l.b16 %v807
    %v1032 = vunpack.c.l.b16 %v808
    %v1033 = vunpack.c.l.b16 %v809
    %v1034 = vunpack.c.l.b16 %v810
    %v1035 = vunpack.c.l.b16 %v811
    %v1036 = vunpack.c.l.b16 %v812
    %v1037 = vunpack.c.l.b16 %v813
    %v1038 = vunpack.c.l.b16 %v814
    %v1039 = vunpack.c.l.b16 %v815
    %v1040 = vunpack.c.l.b16 %v816
    %v1041 = vunpack.c.l.b16 %v817
    %v1042 = vunpack.c.l.b16 %v818
    %v1043 = vunpack.c.l.b16 %v819
    %v1044 = vunpack.c.l.b16 %v820
    %v1045 = vunpack.c.l.b16 %v821
    %v1046 = vunpack.c.l.b16 %v822
    %v1047 = vunpack.c.l.b16 %v823
    %v1048 = vunpack.c.l.b16 %v824
    %v1049 = vunpack.c.l.b16 %v825
    %v1050 = vunpack.c.l.b16 %v826
    %v1051 = vunpack.c.l.b16 %v827
    %v1052 = vpack.c.b16 %v1005, %v1004
    %v1053 = vpack.c.b16 %v1007, %v1006
    %v1054 = vpack.c.b16 %v1009, %v1008
    %v1055 = vpack.c.b16 %v1011, %v1010
    %v1056 = vpack.c.b16 %v1013, %v1012
    %v1057 = vpack.c.b16 %v1015, %v1014
    %v1058 = vpack.c.b16 %v1017, %v1016
    %v1059 = vpack.c.b16 %v1019, %v1018
    %v1060 = vpack.c.b16 %v1021, %v1020
    %v1061 = vpack.c.b16 %v1023, %v1022
    %v1062 = vpack.c.b16 %v1025, %v1024
    %v1063 = vpack.c.b16 %v1027, %v1026
    %v1064 = vpack.c.b16 %v1029, %v1028
    %v1065 = vpack.c.b16 %v1031, %v1030
    %v1066 = vpack.c.b16 %v1033, %v1032
    %v1067 = vpack.c.b16 %v1035, %v1034
    %v1068 = vpack.c.b16 %v1037, %v1036
    %v1069 = vpack.c.b16 %v1039, %v1038
    %v1070 = vpack.c.b16 %v1041, %v1040
    %v1071 = vpack.c.b16 %v1043, %v1042
    %v1072 = vpack.c.b16 %v1045, %v1044
    %v1073 = vpack.c.b16 %v1047, %v1046
    %v1074 = vpack.c.b16 %v1049, %v1048
    %v1075 = vpack.c.b16 %v1051, %v1050
    %1100 = vmatprep.subr.bf16.mxu0 0
    %1101 = vmatpush1.bf16.msra.mxu0 %v1052
    %1102 = vmatprep.subr.bf16.mxu0 0
    %1103 = vmatpush1.bf16.msra.mxu0 %v1053
    %1104 = vmatprep.subr.bf16.mxu0 0
    %1105 = vmatpush1.bf16.msra.mxu0 %v1054
    %1106 = vmatprep.subr.bf16.mxu0 0
    %1107 = vmatpush1.bf16.msra.mxu0 %v1055
    %1108 = vmatprep.subr.bf16.mxu0 0
    %1109 = vmatpush1.bf16.msra.mxu0 %v1056
    %1110 = vmatprep.subr.bf16.mxu0 0
    %1111 = vmatpush1.bf16.msra.mxu0 %v1057
    %1112 = vmatprep.subr.bf16.mxu0 0
    %1113 = vmatpush1.bf16.msra.mxu0 %v1058
    %1114 = vmatprep.subr.bf16.mxu0 0
    %1115 = vmatpush1.bf16.msra.mxu0 %v1059
    %1116 = vmatprep.subr.bf16.mxu0 0
    %1117 = vmatpush1.bf16.msra.mxu0 %v1060
    %1118 = vmatprep.subr.bf16.mxu0 0
    %1119 = vmatpush1.bf16.msra.mxu0 %v1061
    %1120 = vmatprep.subr.bf16.mxu0 0
    %1121 = vmatpush1.bf16.msra.mxu0 %v1062
    %1122 = vmatprep.subr.bf16.mxu0 0
    %1123 = vmatpush1.bf16.msra.mxu0 %v1063
    %1124 = vmatprep.subr.bf16.mxu0 0
    %1125 = vmatpush1.bf16.msra.mxu0 %v1064
    %1126 = vmatprep.subr.bf16.mxu0 0
    %1127 = vmatpush1.bf16.msra.mxu0 %v1065
    %1128 = vmatprep.subr.bf16.mxu0 0
    %1129 = vmatpush1.bf16.msra.mxu0 %v1066
    %1130 = vmatprep.subr.bf16.mxu0 0
    %1131 = vmatpush1.bf16.msra.mxu0 %v1067
    %1132 = vmatprep.mubr.bf16.mxu0 %v909
    %1133 = vmatmul.mubr.bf16.gmra.mrb[0].mxu0 %v908
    %v1134 = vpop.f32.mrb[0].mxu0
    %v1135 = vadd.f32 0.0, %v1134
    %v1136 = vpop.f32.mrb[0].mxu0
    %v1137 = vpop.f32.mrb[0].mxu0
    %v1138 = vadd.f32 0.0, %v1137
    %v1139 = vpop.f32.mrb[0].mxu0
    %1140 = vmatprep.mubr.bf16.mxu0 %v912
    %1141 = vmatmul.mubr.bf16.gmra.mrb[0].mxu0 %v911
    %v1142 = vpop.f32.mrb[0].mxu0
    %v1143 = vadd.f32 0.0, %v1142
    %v1144 = vpop.f32.mrb[0].mxu0
    %v1145 = vpop.f32.mrb[0].mxu0
    %v1146 = vadd.f32 0.0, %v1145
    %v1147 = vpop.f32.mrb[0].mxu0
    %1148 = vmatprep.mubr.bf16.mxu0 %v915
    %1149 = vmatmul.mubr.bf16.gmra.mrb[0].mxu0 %v914
    %v1150 = vpop.f32.mrb[0].mxu0
    %v1151 = vadd.f32 0.0, %v1150
    %v1152 = vpop.f32.mrb[0].mxu0
    %v1153 = vpop.f32.mrb[0].mxu0
    %v1154 = vadd.f32 0.0, %v1153
    %v1155 = vpop.f32.mrb[0].mxu0
    %1156 = vmatprep.mubr.bf16.mxu0 %v918
    %1157 = vmatmul.mubr.bf16.gmra.mrb[0].mxu0 %v917
    %v1158 = vpop.f32.mrb[0].mxu0
    %v1159 = vadd.f32 0.0, %v1158
    %v1160 = vpop.f32.mrb[0].mxu0
    %v1161 = vpop.f32.mrb[0].mxu0
    %v1162 = vadd.f32 0.0, %v1161
    %v1163 = vpop.f32.mrb[0].mxu0
    %1164 = vmatprep.mubr.bf16.mxu0 %v921
    %1165 = vmatmul.mubr.bf16.gmra.mrb[0].mxu0 %v920
    %v1166 = vpop.f32.mrb[0].mxu0
    %v1167 = vadd.f32 0.0, %v1166
    %v1168 = vpop.f32.mrb[0].mxu0
    %v1169 = vpop.f32.mrb[0].mxu0
    %v1170 = vadd.f32 0.0, %v1169
    %v1171 = vpop.f32.mrb[0].mxu0
    %1172 = vmatprep.mubr.bf16.mxu0 %v924
    %1173 = vmatmul.mubr.bf16.gmra.mrb[0].mxu0 %v923
    %v1174 = vpop.f32.mrb[0].mxu0
    %v1175 = vadd.f32 0.0, %v1174
    %v1176 = vpop.f32.mrb[0].mxu0
    %v1177 = vpop.f32.mrb[0].mxu0
    %v1178 = vadd.f32 0.0, %v1177
    %v1179 = vpop.f32.mrb[0].mxu0
    %1180 = vmatprep.mubr.bf16.mxu0 %v927
    %1181 = vmatmul.mubr.bf16.gmra.mrb[0].mxu0 %v926
    %v1182 = vpop.f32.mrb[0].mxu0
    %v1183 = vadd.f32 0.0, %v1182
    %v1184 = vpop.f32.mrb[0].mxu0
    %v1185 = vpop.f32.mrb[0].mxu0
    %v1186 = vadd.f32 0.0, %v1185
    %v1187 = vpop.f32.mrb[0].mxu0
    %1188 = vmatprep.mubr.bf16.mxu0 %v930
    %1189 = vmatmul.mubr.bf16.gmra.mrb[0].mxu0 %v929
    %v1190 = vpop.f32.mrb[0].mxu0
    %v1191 = vadd.f32 0.0, %v1190
    %v1192 = vpop.f32.mrb[0].mxu0
    %v1193 = vpop.f32.mrb[0].mxu0
    %v1194 = vadd.f32 0.0, %v1193
    %v1195 = vpop.f32.mrb[0].mxu0
    %1196 = vdwg.mxu0
    %1197 = vmatprep.subr.bf16.mxu0 0
    %1198 = vmatpush1.bf16.msra.mxu0 %v1068
    %1199 = vmatprep.subr.bf16.mxu0 0
    %1200 = vmatpush1.bf16.msra.mxu0 %v1069
    %1201 = vmatprep.subr.bf16.mxu0 0
    %1202 = vmatpush1.bf16.msra.mxu0 %v1070
    %1203 = vmatprep.subr.bf16.mxu0 0
    %1204 = vmatpush1.bf16.msra.mxu0 %v1071
    %1205 = vmatprep.subr.bf16.mxu0 0
    %1206 = vmatpush1.bf16.msra.mxu0 %v1072
    %1207 = vmatprep.subr.bf16.mxu0 0
    %1208 = vmatpush1.bf16.msra.mxu0 %v1073
    %1209 = vmatprep.subr.bf16.mxu0 0
    %1210 = vmatpush1.bf16.msra.mxu0 %v1074
    %1211 = vmatprep.subr.bf16.mxu0 0
    %1212 = vmatpush1.bf16.msra.mxu0 %v1075
    %1213 = vmatprep.subr.bf16.mxu0 0
    %1214 = vmatpush1.bf16.msra.mxu0 0
    %1215 = vmatprep.subr.bf16.mxu0 0
    %1216 = vmatpush1.bf16.msra.mxu0 0
    %1217 = vmatprep.subr.bf16.mxu0 0
    %1218 = vmatpush1.bf16.msra.mxu0 0
    %1219 = vmatprep.subr.bf16.mxu0 0
    %1220 = vmatpush1.bf16.msra.mxu0 0
    %1221 = vmatprep.subr.bf16.mxu0 0
    %1222 = vmatpush1.bf16.msra.mxu0 0
    %1223 = vmatprep.subr.bf16.mxu0 0
    %1224 = vmatpush1.bf16.msra.mxu0 0
    %1225 = vmatprep.subr.bf16.mxu0 0
    %1226 = vmatpush1.bf16.msra.mxu0 0
    %1227 = vmatprep.subr.bf16.mxu0 0
    %1228 = vmatpush1.bf16.msra.mxu0 0
    %1229 = vmatprep.mubr.bf16.mxu0 0
    %1230 = vmatmul.mubr.bf16.gmra.mrb[0].mxu0 %v910
    %v1231 = vpop.f32.mrb[0].mxu0
    %v1232 = vadd.f32 %v1135, %v1231
    %v1233 = vpop.f32.mrb[0].mxu0
    %v1234 = vpop.f32.mrb[0].mxu0
    %v1235 = vadd.f32 %v1138, %v1234
    %v1236 = vpop.f32.mrb[0].mxu0
    %1237 = vmatprep.mubr.bf16.mxu0 0
    %1238 = vmatmul.mubr.bf16.gmra.mrb[0].mxu0 %v913
    %v1239 = vpop.f32.mrb[0].mxu0
    %v1240 = vadd.f32 %v1143, %v1239
    %v1241 = vpop.f32.mrb[0].mxu0
    %v1242 = vpop.f32.mrb[0].mxu0
    %v1243 = vadd.f32 %v1146, %v1242
    %v1244 = vpop.f32.mrb[0].mxu0
    %1245 = vmatprep.mubr.bf16.mxu0 0
    %1246 = vmatmul.mubr.bf16.gmra.mrb[0].mxu0 %v916
    %v1247 = vpop.f32.mrb[0].mxu0
    %v1248 = vadd.f32 %v1151, %v1247
    %v1249 = vpop.f32.mrb[0].mxu0
    %v1250 = vpop.f32.mrb[0].mxu0
    %v1251 = vadd.f32 %v1154, %v1250
    %v1252 = vpop.f32.mrb[0].mxu0
    %1253 = vmatprep.mubr.bf16.mxu0 0
    %1254 = vmatmul.mubr.bf16.gmra.mrb[0].mxu0 %v919
    %v1255 = vpop.f32.mrb[0].mxu0
    %v1256 = vadd.f32 %v1159, %v1255
    %v1257 = vpop.f32.mrb[0].mxu0
    %v1258 = vpop.f32.mrb[0].mxu0
    %v1259 = vadd.f32 %v1162, %v1258
    %v1260 = vpop.f32.mrb[0].mxu0
    %1261 = vmatprep.mubr.bf16.mxu0 0
    %1262 = vmatmul.mubr.bf16.gmra.mrb[0].mxu0 %v922
    %v1263 = vpop.f32.mrb[0].mxu0
    %v1264 = vadd.f32 %v1167, %v1263
    %v1265 = vpop.f32.mrb[0].mxu0
    %v1266 = vpop.f32.mrb[0].mxu0
    %v1267 = vadd.f32 %v1170, %v1266
    %v1268 = vpop.f32.mrb[0].mxu0
    %1269 = vmatprep.mubr.bf16.mxu0 0
    %1270 = vmatmul.mubr.bf16.gmra.mrb[0].mxu0 %v925
    %v1271 = vpop.f32.mrb[0].mxu0
    %v1272 = vadd.f32 %v1175, %v1271
    %v1273 = vpop.f32.mrb[0].mxu0
    %v1274 = vpop.f32.mrb[0].mxu0
    %v1275 = vadd.f32 %v1178, %v1274
    %v1276 = vpop.f32.mrb[0].mxu0
    %1277 = vmatprep.mubr.bf16.mxu0 0
    %1278 = vmatmul.mubr.bf16.gmra.mrb[0].mxu0 %v928
    %v1279 = vpop.f32.mrb[0].mxu0
    %v1280 = vadd.f32 %v1183, %v1279
    %v1281 = vpop.f32.mrb[0].mxu0
    %v1282 = vpop.f32.mrb[0].mxu0
    %v1283 = vadd.f32 %v1186, %v1282
    %v1284 = vpop.f32.mrb[0].mxu0
    %1285 = vmatprep.mubr.bf16.mxu0 0
    %1286 = vmatmul.mubr.bf16.gmra.mrb[0].mxu0 %v931
    %v1287 = vpop.f32.mrb[0].mxu0
    %v1288 = vadd.f32 %v1191, %v1287
    %v1289 = vpop.f32.mrb[0].mxu0
    %v1290 = vpop.f32.mrb[0].mxu0
    %v1291 = vadd.f32 %v1194, %v1290
    %v1292 = vpop.f32.mrb[0].mxu0
    %1293 = vdwg.mxu0
    %v1326 = vunpack.c.l.b16 %v667
    %v1327 = vunpack.c.h.b16 %v667
    %v1328 = vunpack.c.l.b16 %v668
    %v1329 = vunpack.c.l.b16 %v669
    %v1330 = vunpack.c.h.b16 %v669
    %v1331 = vunpack.c.l.b16 %v670
    %v1332 = vunpack.c.l.b16 %v671
    %v1333 = vunpack.c.h.b16 %v671
    %v1334 = vunpack.c.l.b16 %v672
    %v1335 = vunpack.c.l.b16 %v673
    %v1336 = vunpack.c.h.b16 %v673
    %v1337 = vunpack.c.l.b16 %v674
    %v1338 = vunpack.c.l.b16 %v675
    %v1339 = vunpack.c.h.b16 %v675
    %v1340 = vunpack.c.l.b16 %v676
    %v1341 = vunpack.c.l.b16 %v677
    %v1342 = vunpack.c.h.b16 %v677
    %v1343 = vunpack.c.l.b16 %v678
    %v1344 = vunpack.c.l.b16 %v679
    %v1345 = vunpack.c.h.b16 %v679
    %v1346 = vunpack.c.l.b16 %v680
    %v1347 = vunpack.c.l.b16 %v681
    %v1348 = vunpack.c.h.b16 %v681
    %v1349 = vunpack.c.l.b16 %v682
    %v1350 = vunpack.c.l.b16 %v683
    %v1351 = vunpack.c.h.b16 %v683
    %v1352 = vunpack.c.l.b16 %v684
    %v1353 = vunpack.c.l.b16 %v685
    %v1354 = vunpack.c.h.b16 %v685
    %v1355 = vunpack.c.l.b16 %v686
    %v1356 = vunpack.c.l.b16 %v687
    %v1357 = vunpack.c.h.b16 %v687
    %v1358 = vunpack.c.l.b16 %v688
    %v1359 = vunpack.c.l.b16 %v689
    %v1360 = vunpack.c.h.b16 %v689
    %v1361 = vunpack.c.l.b16 %v690
    %v1362 = vunpack.c.l.b16 %v691
    %v1363 = vunpack.c.h.b16 %v691
    %v1364 = vunpack.c.l.b16 %v692
    %v1365 = vunpack.c.l.b16 %v693
    %v1366 = vunpack.c.h.b16 %v693
    %v1367 = vunpack.c.l.b16 %v694
    %v1368 = vunpack.c.l.b16 %v695
    %v1369 = vunpack.c.h.b16 %v695
    %v1370 = vunpack.c.l.b16 %v696
    %v1371 = vunpack.c.l.b16 %v697
    %v1372 = vunpack.c.h.b16 %v697
    %v1373 = vunpack.c.l.b16 %v698
    %v1374 = vpack.c.b16 %v1329, %v1326
    %v1375 = vpack.c.b16 %v1330, %v1327
    %v1376 = vpack.c.b16 %v1331, %v1328
    %v1377 = vpack.c.b16 %v1335, %v1332
    %v1378 = vpack.c.b16 %v1336, %v1333
    %v1379 = vpack.c.b16 %v1337, %v1334
    %v1380 = vpack.c.b16 %v1341, %v1338
    %v1381 = vpack.c.b16 %v1342, %v1339
    %v1382 = vpack.c.b16 %v1343, %v1340
    %v1383 = vpack.c.b16 %v1347, %v1344
    %v1384 = vpack.c.b16 %v1348, %v1345
    %v1385 = vpack.c.b16 %v1349, %v1346
    %v1386 = vpack.c.b16 %v1353, %v1350
    %v1387 = vpack.c.b16 %v1354, %v1351
    %v1388 = vpack.c.b16 %v1355, %v1352
    %v1389 = vpack.c.b16 %v1359, %v1356
    %v1390 = vpack.c.b16 %v1360, %v1357
    %v1391 = vpack.c.b16 %v1361, %v1358
    %v1392 = vpack.c.b16 %v1365, %v1362
    %v1393 = vpack.c.b16 %v1366, %v1363
    %v1394 = vpack.c.b16 %v1367, %v1364
    %v1395 = vpack.c.b16 %v1371, %v1368
    %v1396 = vpack.c.b16 %v1372, %v1369
    %v1397 = vpack.c.b16 %v1373, %v1370
    %v1470 = vunpack.c.l.b16 %v699
    %v1471 = vunpack.c.l.b16 %v700
    %v1472 = vunpack.c.l.b16 %v701
    %v1473 = vunpack.c.l.b16 %v702
    %v1474 = vunpack.c.l.b16 %v703
    %v1475 = vunpack.c.l.b16 %v704
    %v1476 = vunpack.c.l.b16 %v705
    %v1477 = vunpack.c.l.b16 %v706
    %v1478 = vunpack.c.l.b16 %v707
    %v1479 = vunpack.c.l.b16 %v708
    %v1480 = vunpack.c.l.b16 %v709
    %v1481 = vunpack.c.l.b16 %v710
    %v1482 = vunpack.c.l.b16 %v711
    %v1483 = vunpack.c.l.b16 %v712
    %v1484 = vunpack.c.l.b16 %v713
    %v1485 = vunpack.c.l.b16 %v714
    %v1486 = vunpack.c.l.b16 %v715
    %v1487 = vunpack.c.l.b16 %v716
    %v1488 = vunpack.c.l.b16 %v717
    %v1489 = vunpack.c.l.b16 %v718
    %v1490 = vunpack.c.l.b16 %v719
    %v1491 = vunpack.c.l.b16 %v720
    %v1492 = vunpack.c.l.b16 %v721
    %v1493 = vunpack.c.l.b16 %v722
    %v1494 = vunpack.c.l.b16 %v723
    %v1495 = vunpack.c.l.b16 %v724
    %v1496 = vunpack.c.l.b16 %v725
    %v1497 = vunpack.c.l.b16 %v726
    %v1498 = vunpack.c.l.b16 %v727
    %v1499 = vunpack.c.l.b16 %v728
    %v1500 = vunpack.c.l.b16 %v729
    %v1501 = vunpack.c.l.b16 %v730
    %v1502 = vunpack.c.l.b16 %v731
    %v1503 = vunpack.c.l.b16 %v732
    %v1504 = vunpack.c.l.b16 %v733
    %v1505 = vunpack.c.l.b16 %v734
    %v1506 = vunpack.c.l.b16 %v735
    %v1507 = vunpack.c.l.b16 %v736
    %v1508 = vunpack.c.l.b16 %v737
    %v1509 = vunpack.c.l.b16 %v738
    %v1510 = vunpack.c.l.b16 %v739
    %v1511 = vunpack.c.l.b16 %v740
    %v1512 = vunpack.c.l.b16 %v741
    %v1513 = vunpack.c.l.b16 %v742
    %v1514 = vunpack.c.l.b16 %v743
    %v1515 = vunpack.c.l.b16 %v744
    %v1516 = vunpack.c.l.b16 %v745
    %v1517 = vunpack.c.l.b16 %v746
    %v1518 = vpack.c.b16 %v1471, %v1470
    %v1519 = vpack.c.b16 %v1473, %v1472
    %v1520 = vpack.c.b16 %v1475, %v1474
    %v1521 = vpack.c.b16 %v1477, %v1476
    %v1522 = vpack.c.b16 %v1479, %v1478
    %v1523 = vpack.c.b16 %v1481, %v1480
    %v1524 = vpack.c.b16 %v1483, %v1482
    %v1525 = vpack.c.b16 %v1485, %v1484
    %v1526 = vpack.c.b16 %v1487, %v1486
    %v1527 = vpack.c.b16 %v1489, %v1488
    %v1528 = vpack.c.b16 %v1491, %v1490
    %v1529 = vpack.c.b16 %v1493, %v1492
    %v1530 = vpack.c.b16 %v1495, %v1494
    %v1531 = vpack.c.b16 %v1497, %v1496
    %v1532 = vpack.c.b16 %v1499, %v1498
    %v1533 = vpack.c.b16 %v1501, %v1500
    %v1534 = vpack.c.b16 %v1503, %v1502
    %v1535 = vpack.c.b16 %v1505, %v1504
    %v1536 = vpack.c.b16 %v1507, %v1506
    %v1537 = vpack.c.b16 %v1509, %v1508
    %v1538 = vpack.c.b16 %v1511, %v1510
    %v1539 = vpack.c.b16 %v1513, %v1512
    %v1540 = vpack.c.b16 %v1515, %v1514
    %v1541 = vpack.c.b16 %v1517, %v1516
    %1566 = vmatprep.subr.bf16.mxu0 0
    %1567 = vmatpush1.bf16.msra.mxu0 %v1518
    %1568 = vmatprep.subr.bf16.mxu0 0
    %1569 = vmatpush1.bf16.msra.mxu0 %v1519
    %1570 = vmatprep.subr.bf16.mxu0 0
    %1571 = vmatpush1.bf16.msra.mxu0 %v1520
    %1572 = vmatprep.subr.bf16.mxu0 0
    %1573 = vmatpush1.bf16.msra.mxu0 %v1521
    %1574 = vmatprep.subr.bf16.mxu0 0
    %1575 = vmatpush1.bf16.msra.mxu0 %v1522
    %1576 = vmatprep.subr.bf16.mxu0 0
    %1577 = vmatpush1.bf16.msra.mxu0 %v1523
    %1578 = vmatprep.subr.bf16.mxu0 0
    %1579 = vmatpush1.bf16.msra.mxu0 %v1524
    %1580 = vmatprep.subr.bf16.mxu0 0
    %1581 = vmatpush1.bf16.msra.mxu0 %v1525
    %1582 = vmatprep.subr.bf16.mxu0 0
    %1583 = vmatpush1.bf16.msra.mxu0 %v1526
    %1584 = vmatprep.subr.bf16.mxu0 0
    %1585 = vmatpush1.bf16.msra.mxu0 %v1527
    %1586 = vmatprep.subr.bf16.mxu0 0
    %1587 = vmatpush1.bf16.msra.mxu0 %v1528
    %1588 = vmatprep.subr.bf16.mxu0 0
    %1589 = vmatpush1.bf16.msra.mxu0 %v1529
    %1590 = vmatprep.subr.bf16.mxu0 0
    %1591 = vmatpush1.bf16.msra.mxu0 %v1530
    %1592 = vmatprep.subr.bf16.mxu0 0
    %1593 = vmatpush1.bf16.msra.mxu0 %v1531
    %1594 = vmatprep.subr.bf16.mxu0 0
    %1595 = vmatpush1.bf16.msra.mxu0 %v1532
    %1596 = vmatprep.subr.bf16.mxu0 0
    %1597 = vmatpush1.bf16.msra.mxu0 %v1533
    %1598 = vmatprep.mubr.bf16.mxu0 %v1375
    %1599 = vmatmul.mubr.bf16.gmra.mrb[0].mxu0 %v1374
    %v1600 = vpop.f32.mrb[0].mxu0
    %v1601 = vadd.f32 %v1232, %v1600
    %v1602 = vpop.f32.mrb[0].mxu0
    %v1603 = vpop.f32.mrb[0].mxu0
    %v1604 = vadd.f32 %v1235, %v1603
    %v1605 = vpop.f32.mrb[0].mxu0
    %1606 = vmatprep.mubr.bf16.mxu0 %v1378
    %1607 = vmatmul.mubr.bf16.gmra.mrb[0].mxu0 %v1377
    %v1608 = vpop.f32.mrb[0].mxu0
    %v1609 = vadd.f32 %v1240, %v1608
    %v1610 = vpop.f32.mrb[0].mxu0
    %v1611 = vpop.f32.mrb[0].mxu0
    %v1612 = vadd.f32 %v1243, %v1611
    %v1613 = vpop.f32.mrb[0].mxu0
    %1614 = vmatprep.mubr.bf16.mxu0 %v1381
    %1615 = vmatmul.mubr.bf16.gmra.mrb[0].mxu0 %v1380
    %v1616 = vpop.f32.mrb[0].mxu0
    %v1617 = vadd.f32 %v1248, %v1616
    %v1618 = vpop.f32.mrb[0].mxu0
    %v1619 = vpop.f32.mrb[0].mxu0
    %v1620 = vadd.f32 %v1251, %v1619
    %v1621 = vpop.f32.mrb[0].mxu0
    %1622 = vmatprep.mubr.bf16.mxu0 %v1384
    %1623 = vmatmul.mubr.bf16.gmra.mrb[0].mxu0 %v1383
    %v1624 = vpop.f32.mrb[0].mxu0
    %v1625 = vadd.f32 %v1256, %v1624
    %v1626 = vpop.f32.mrb[0].mxu0
    %v1627 = vpop.f32.mrb[0].mxu0
    %v1628 = vadd.f32 %v1259, %v1627
    %v1629 = vpop.f32.mrb[0].mxu0
    %1630 = vmatprep.mubr.bf16.mxu0 %v1387
    %1631 = vmatmul.mubr.bf16.gmra.mrb[0].mxu0 %v1386
    %v1632 = vpop.f32.mrb[0].mxu0
    %v1633 = vadd.f32 %v1264, %v1632
    %v1634 = vpop.f32.mrb[0].mxu0
    %v1635 = vpop.f32.mrb[0].mxu0
    %v1636 = vadd.f32 %v1267, %v1635
    %v1637 = vpop.f32.mrb[0].mxu0
    %1638 = vmatprep.mubr.bf16.mxu0 %v1390
    %1639 = vmatmul.mubr.bf16.gmra.mrb[0].mxu0 %v1389
    %v1640 = vpop.f32.mrb[0].mxu0
    %v1641 = vadd.f32 %v1272, %v1640
    %v1642 = vpop.f32.mrb[0].mxu0
    %v1643 = vpop.f32.mrb[0].mxu0
    %v1644 = vadd.f32 %v1275, %v1643
    %v1645 = vpop.f32.mrb[0].mxu0
    %1646 = vmatprep.mubr.bf16.mxu0 %v1393
    %1647 = vmatmul.mubr.bf16.gmra.mrb[0].mxu0 %v1392
    %v1648 = vpop.f32.mrb[0].mxu0
    %v1649 = vadd.f32 %v1280, %v1648
    %v1650 = vpop.f32.mrb[0].mxu0
    %v1651 = vpop.f32.mrb[0].mxu0
    %v1652 = vadd.f32 %v1283, %v1651
    %v1653 = vpop.f32.mrb[0].mxu0
    %1654 = vmatprep.mubr.bf16.mxu0 %v1396
    %1655 = vmatmul.mubr.bf16.gmra.mrb[0].mxu0 %v1395
    %v1656 = vpop.f32.mrb[0].mxu0
    %v1657 = vadd.f32 %v1288, %v1656
    %v1658 = vpop.f32.mrb[0].mxu0
    %v1659 = vpop.f32.mrb[0].mxu0
    %v1660 = vadd.f32 %v1291, %v1659
    %v1661 = vpop.f32.mrb[0].mxu0
    %1662 = vdwg.mxu0
    %1663 = vmatprep.subr.bf16.mxu0 0
    %1664 = vmatpush1.bf16.msra.mxu0 %v1534
    %1665 = vmatprep.subr.bf16.mxu0 0
    %1666 = vmatpush1.bf16.msra.mxu0 %v1535
    %1667 = vmatprep.subr.bf16.mxu0 0
    %1668 = vmatpush1.bf16.msra.mxu0 %v1536
    %1669 = vmatprep.subr.bf16.mxu0 0
    %1670 = vmatpush1.bf16.msra.mxu0 %v1537
    %1671 = vmatprep.subr.bf16.mxu0 0
    %1672 = vmatpush1.bf16.msra.mxu0 %v1538
    %1673 = vmatprep.subr.bf16.mxu0 0
    %1674 = vmatpush1.bf16.msra.mxu0 %v1539
    %1675 = vmatprep.subr.bf16.mxu0 0
    %1676 = vmatpush1.bf16.msra.mxu0 %v1540
    %1677 = vmatprep.subr.bf16.mxu0 0
    %1678 = vmatpush1.bf16.msra.mxu0 %v1541
    %1679 = vmatprep.subr.bf16.mxu0 0
    %1680 = vmatpush1.bf16.msra.mxu0 0
    %1681 = vmatprep.subr.bf16.mxu0 0
    %1682 = vmatpush1.bf16.msra.mxu0 0
    %1683 = vmatprep.subr.bf16.mxu0 0
    %1684 = vmatpush1.bf16.msra.mxu0 0
    %1685 = vmatprep.subr.bf16.mxu0 0
    %1686 = vmatpush1.bf16.msra.mxu0 0
    %1687 = vmatprep.subr.bf16.mxu0 0
    %1688 = vmatpush1.bf16.msra.mxu0 0
    %1689 = vmatprep.subr.bf16.mxu0 0
    %1690 = vmatpush1.bf16.msra.mxu0 0
    %1691 = vmatprep.subr.bf16.mxu0 0
    %1692 = vmatpush1.bf16.msra.mxu0 0
    %1693 = vmatprep.subr.bf16.mxu0 0
    %1694 = vmatpush1.bf16.msra.mxu0 0
    %1695 = vmatprep.mubr.bf16.mxu0 0
    %1696 = vmatmul.mubr.bf16.gmra.mrb[0].mxu0 %v1376
    %v1697 = vpop.f32.mrb[0].mxu0
    %v1698 = vadd.f32 %v1601, %v1697
    %v1699 = vpop.f32.mrb[0].mxu0
    %v1700 = vpop.f32.mrb[0].mxu0
    %v1701 = vadd.f32 %v1604, %v1700
    %v1702 = vpop.f32.mrb[0].mxu0
    %1703 = vmatprep.mubr.bf16.mxu0 0
    %1704 = vmatmul.mubr.bf16.gmra.mrb[0].mxu0 %v1379
    %v1705 = vpop.f32.mrb[0].mxu0
    %v1706 = vadd.f32 %v1609, %v1705
    %v1707 = vpop.f32.mrb[0].mxu0
    %v1708 = vpop.f32.mrb[0].mxu0
    %v1709 = vadd.f32 %v1612, %v1708
    %v1710 = vpop.f32.mrb[0].mxu0
    %1711 = vmatprep.mubr.bf16.mxu0 0
    %1712 = vmatmul.mubr.bf16.gmra.mrb[0].mxu0 %v1382
    %v1713 = vpop.f32.mrb[0].mxu0
    %v1714 = vadd.f32 %v1617, %v1713
    %v1715 = vpop.f32.mrb[0].mxu0
    %v1716 = vpop.f32.mrb[0].mxu0
    %v1717 = vadd.f32 %v1620, %v1716
    %v1718 = vpop.f32.mrb[0].mxu0
    %1719 = vmatprep.mubr.bf16.mxu0 0
    %1720 = vmatmul.mubr.bf16.gmra.mrb[0].mxu0 %v1385
    %v1721 = vpop.f32.mrb[0].mxu0
    %v1722 = vadd.f32 %v1625, %v1721
    %v1723 = vpop.f32.mrb[0].mxu0
    %v1724 = vpop.f32.mrb[0].mxu0
    %v1725 = vadd.f32 %v1628, %v1724
    %v1726 = vpop.f32.mrb[0].mxu0
    %1727 = vmatprep.mubr.bf16.mxu0 0
    %1728 = vmatmul.mubr.bf16.gmra.mrb[0].mxu0 %v1388
    %v1729 = vpop.f32.mrb[0].mxu0
    %v1730 = vadd.f32 %v1633, %v1729
    %v1731 = vpop.f32.mrb[0].mxu0
    %v1732 = vpop.f32.mrb[0].mxu0
    %v1733 = vadd.f32 %v1636, %v1732
    %v1734 = vpop.f32.mrb[0].mxu0
    %1735 = vmatprep.mubr.bf16.mxu0 0
    %1736 = vmatmul.mubr.bf16.gmra.mrb[0].mxu0 %v1391
    %v1737 = vpop.f32.mrb[0].mxu0
    %v1738 = vadd.f32 %v1641, %v1737
    %v1739 = vpop.f32.mrb[0].mxu0
    %v1740 = vpop.f32.mrb[0].mxu0
    %v1741 = vadd.f32 %v1644, %v1740
    %v1742 = vpop.f32.mrb[0].mxu0
    %1743 = vmatprep.mubr.bf16.mxu0 0
    %1744 = vmatmul.mubr.bf16.gmra.mrb[0].mxu0 %v1394
    %v1745 = vpop.f32.mrb[0].mxu0
    %v1746 = vadd.f32 %v1649, %v1745
    %v1747 = vpop.f32.mrb[0].mxu0
    %v1748 = vpop.f32.mrb[0].mxu0
    %v1749 = vadd.f32 %v1652, %v1748
    %v1750 = vpop.f32.mrb[0].mxu0
    %1751 = vmatprep.mubr.bf16.mxu0 0
    %1752 = vmatmul.mubr.bf16.gmra.mrb[0].mxu0 %v1397
    %v1753 = vpop.f32.mrb[0].mxu0
    %v1754 = vadd.f32 %v1657, %v1753
    %v1755 = vpop.f32.mrb[0].mxu0
    %v1756 = vpop.f32.mrb[0].mxu0
    %v1757 = vadd.f32 %v1660, %v1756
    %v1758 = vpop.f32.mrb[0].mxu0
    %1759 = vdwg.mxu0
    %s1760 = scalar_lea.vmem [#allocation2], 24
    %v1761 = vld [vmem:[%s1760] sm:$0xff]
    %v1762 = vld [vmem:[%s1760 + $0x8] sm:$0xf]
    %v1763 = vld [vmem:[%s1760 + $0xc] sm:$0xff]
    %v1764 = vld [vmem:[%s1760 + $0x14] sm:$0xf]
    %v1765 = vld [vmem:[%s1760 + $0x18] sm:$0xff]
    %v1766 = vld [vmem:[%s1760 + $0x20] sm:$0xf]
    %v1767 = vld [vmem:[%s1760 + $0x24] sm:$0xff]
    %v1768 = vld [vmem:[%s1760 + $0x2c] sm:$0xf]
    %v1769 = vld [vmem:[%s1760 + $0x30] sm:$0xff]
    %v1770 = vld [vmem:[%s1760 + $0x38] sm:$0xf]
    %v1771 = vld [vmem:[%s1760 + $0x3c] sm:$0xff]
    %v1772 = vld [vmem:[%s1760 + $0x44] sm:$0xf]
    %v1773 = vld [vmem:[%s1760 + $0x48] sm:$0xff]
    %v1774 = vld [vmem:[%s1760 + $0x50] sm:$0xf]
    %v1775 = vld [vmem:[%s1760 + $0x54] sm:$0xff]
    %v1776 = vld [vmem:[%s1760 + $0x5c] sm:$0xf]
    %v1777 = vld [vmem:[%s1760 + $0x78] sm:$0xff]
    %v1778 = vld [vmem:[%s1760 + $0x80] sm:$0xf]
    %v1779 = vld [vmem:[%s1760 + $0x84] sm:$0xff]
    %v1780 = vld [vmem:[%s1760 + $0x8c] sm:$0xf]
    %v1781 = vld [vmem:[%s1760 + $0x90] sm:$0xff]
    %v1782 = vld [vmem:[%s1760 + $0x98] sm:$0xf]
    %v1783 = vld [vmem:[%s1760 + $0x9c] sm:$0xff]
    %v1784 = vld [vmem:[%s1760 + $0xa4] sm:$0xf]
    %v1785 = vld [vmem:[%s1760 + $0xa8] sm:$0xff]
    %v1786 = vld [vmem:[%s1760 + $0xb0] sm:$0xf]
    %v1787 = vld [vmem:[%s1760 + $0xb4] sm:$0xff]
    %v1788 = vld [vmem:[%s1760 + $0xbc] sm:$0xf]
    %v1789 = vld [vmem:[%s1760 + $0xc0] sm:$0xff]
    %v1790 = vld [vmem:[%s1760 + $0xc8] sm:$0xf]
    %v1791 = vld [vmem:[%s1760 + $0xcc] sm:$0xff]
    %v1792 = vld [vmem:[%s1760 + $0xd4] sm:$0xf]
    %s1793 = scalar_lea.vmem [#allocation8], 384
    %v1794 = vld [vmem:[%s1793] sm:$0xf]
    %v1795 = vld [vmem:[%s1793 + $0x4] sm:$0xf]
    %v1796 = vld [vmem:[%s1793 + $0x8] sm:$0xf]
    %v1797 = vld [vmem:[%s1793 + $0xc] sm:$0xf]
    %v1798 = vld [vmem:[%s1793 + $0x10] sm:$0xf]
    %v1799 = vld [vmem:[%s1793 + $0x14] sm:$0xf]
    %v1800 = vld [vmem:[%s1793 + $0x18] sm:$0xf]
    %v1801 = vld [vmem:[%s1793 + $0x1c] sm:$0xf]
    %v1802 = vld [vmem:[%s1793 + $0x20] sm:$0xf]
    %v1803 = vld [vmem:[%s1793 + $0x24] sm:$0xf]
    %v1804 = vld [vmem:[%s1793 + $0x28] sm:$0xf]
    %v1805 = vld [vmem:[%s1793 + $0x2c] sm:$0xf]
    %v1806 = vld [vmem:[%s1793 + $0x30] sm:$0xf]
    %v1807 = vld [vmem:[%s1793 + $0x34] sm:$0xf]
    %v1808 = vld [vmem:[%s1793 + $0x38] sm:$0xf]
    %v1809 = vld [vmem:[%s1793 + $0x3c] sm:$0xf]
    %v1810 = vld [vmem:[%s1793 + $0x40] sm:$0xf]
    %v1811 = vld [vmem:[%s1793 + $0x44] sm:$0xf]
    %v1812 = vld [vmem:[%s1793 + $0x48] sm:$0xf]
    %v1813 = vld [vmem:[%s1793 + $0x4c] sm:$0xf]
    %v1814 = vld [vmem:[%s1793 + $0x50] sm:$0xf]
    %v1815 = vld [vmem:[%s1793 + $0x54] sm:$0xf]
    %v1816 = vld [vmem:[%s1793 + $0x58] sm:$0xf]
    %v1817 = vld [vmem:[%s1793 + $0x5c] sm:$0xf]
    %v1818 = vld [vmem:[%s1793 + $0x60] sm:$0xf]
    %v1819 = vld [vmem:[%s1793 + $0x64] sm:$0xf]
    %v1820 = vld [vmem:[%s1793 + $0x68] sm:$0xf]
    %v1821 = vld [vmem:[%s1793 + $0x6c] sm:$0xf]
    %v1822 = vld [vmem:[%s1793 + $0x70] sm:$0xf]
    %v1823 = vld [vmem:[%s1793 + $0x74] sm:$0xf]
    %v1824 = vld [vmem:[%s1793 + $0x78] sm:$0xf]
    %v1825 = vld [vmem:[%s1793 + $0x7c] sm:$0xf]
    %v1826 = vld [vmem:[%s1793 + $0x80] sm:$0xf]
    %v1827 = vld [vmem:[%s1793 + $0x84] sm:$0xf]
    %v1828 = vld [vmem:[%s1793 + $0x88] sm:$0xf]
    %v1829 = vld [vmem:[%s1793 + $0x8c] sm:$0xf]
    %v1830 = vld [vmem:[%s1793 + $0x90] sm:$0xf]
    %v1831 = vld [vmem:[%s1793 + $0x94] sm:$0xf]
    %v1832 = vld [vmem:[%s1793 + $0x98] sm:$0xf]
    %v1833 = vld [vmem:[%s1793 + $0x9c] sm:$0xf]
    %v1834 = vld [vmem:[%s1793 + $0xa0] sm:$0xf]
    %v1835 = vld [vmem:[%s1793 + $0xa4] sm:$0xf]
    %v1836 = vld [vmem:[%s1793 + $0xa8] sm:$0xf]
    %v1837 = vld [vmem:[%s1793 + $0xac] sm:$0xf]
    %v1838 = vld [vmem:[%s1793 + $0xb0] sm:$0xf]
    %v1839 = vld [vmem:[%s1793 + $0xb4] sm:$0xf]
    %v1840 = vld [vmem:[%s1793 + $0xb8] sm:$0xf]
    %v1841 = vld [vmem:[%s1793 + $0xbc] sm:$0xf]
    %v1874 = vunpack.c.l.b16 %v1761
    %v1875 = vunpack.c.h.b16 %v1761
    %v1876 = vunpack.c.l.b16 %v1762
    %v1877 = vunpack.c.l.b16 %v1763
    %v1878 = vunpack.c.h.b16 %v1763
    %v1879 = vunpack.c.l.b16 %v1764
    %v1880 = vunpack.c.l.b16 %v1765
    %v1881 = vunpack.c.h.b16 %v1765
    %v1882 = vunpack.c.l.b16 %v1766
    %v1883 = vunpack.c.l.b16 %v1767
    %v1884 = vunpack.c.h.b16 %v1767
    %v1885 = vunpack.c.l.b16 %v1768
    %v1886 = vunpack.c.l.b16 %v1769
    %v1887 = vunpack.c.h.b16 %v1769
    %v1888 = vunpack.c.l.b16 %v1770
    %v1889 = vunpack.c.l.b16 %v1771
    %v1890 = vunpack.c.h.b16 %v1771
    %v1891 = vunpack.c.l.b16 %v1772
    %v1892 = vunpack.c.l.b16 %v1773
    %v1893 = vunpack.c.h.b16 %v1773
    %v1894 = vunpack.c.l.b16 %v1774
    %v1895 = vunpack.c.l.b16 %v1775
    %v1896 = vunpack.c.h.b16 %v1775
    %v1897 = vunpack.c.l.b16 %v1776
    %v1898 = vunpack.c.l.b16 %v1777
    %v1899 = vunpack.c.h.b16 %v1777
    %v1900 = vunpack.c.l.b16 %v1778
    %v1901 = vunpack.c.l.b16 %v1779
    %v1902 = vunpack.c.h.b16 %v1779
    %v1903 = vunpack.c.l.b16 %v1780
    %v1904 = vunpack.c.l.b16 %v1781
    %v1905 = vunpack.c.h.b16 %v1781
    %v1906 = vunpack.c.l.b16 %v1782
    %v1907 = vunpack.c.l.b16 %v1783
    %v1908 = vunpack.c.h.b16 %v1783
    %v1909 = vunpack.c.l.b16 %v1784
    %v1910 = vunpack.c.l.b16 %v1785
    %v1911 = vunpack.c.h.b16 %v1785
    %v1912 = vunpack.c.l.b16 %v1786
    %v1913 = vunpack.c.l.b16 %v1787
    %v1914 = vunpack.c.h.b16 %v1787
    %v1915 = vunpack.c.l.b16 %v1788
    %v1916 = vunpack.c.l.b16 %v1789
    %v1917 = vunpack.c.h.b16 %v1789
    %v1918 = vunpack.c.l.b16 %v1790
    %v1919 = vunpack.c.l.b16 %v1791
    %v1920 = vunpack.c.h.b16 %v1791
    %v1921 = vunpack.c.l.b16 %v1792
    %v1922 = vpack.c.b16 %v1877, %v1874
    %v1923 = vpack.c.b16 %v1878, %v1875
    %v1924 = vpack.c.b16 %v1879, %v1876
    %v1925 = vpack.c.b16 %v1883, %v1880
    %v1926 = vpack.c.b16 %v1884, %v1881
    %v1927 = vpack.c.b16 %v1885, %v1882
    %v1928 = vpack.c.b16 %v1889, %v1886
    %v1929 = vpack.c.b16 %v1890, %v1887
    %v1930 = vpack.c.b16 %v1891, %v1888
    %v1931 = vpack.c.b16 %v1895, %v1892
    %v1932 = vpack.c.b16 %v1896, %v1893
    %v1933 = vpack.c.b16 %v1897, %v1894
    %v1934 = vpack.c.b16 %v1901, %v1898
    %v1935 = vpack.c.b16 %v1902, %v1899
    %v1936 = vpack.c.b16 %v1903, %v1900
    %v1937 = vpack.c.b16 %v1907, %v1904
    %v1938 = vpack.c.b16 %v1908, %v1905
    %v1939 = vpack.c.b16 %v1909, %v1906
    %v1940 = vpack.c.b16 %v1913, %v1910
    %v1941 = vpack.c.b16 %v1914, %v1911
    %v1942 = vpack.c.b16 %v1915, %v1912
    %v1943 = vpack.c.b16 %v1919, %v1916
    %v1944 = vpack.c.b16 %v1920, %v1917
    %v1945 = vpack.c.b16 %v1921, %v1918
    %v2018 = vunpack.c.l.b16 %v1794
    %v2019 = vunpack.c.l.b16 %v1795
    %v2020 = vunpack.c.l.b16 %v1796
    %v2021 = vunpack.c.l.b16 %v1797
    %v2022 = vunpack.c.l.b16 %v1798
    %v2023 = vunpack.c.l.b16 %v1799
    %v2024 = vunpack.c.l.b16 %v1800
    %v2025 = vunpack.c.l.b16 %v1801
    %v2026 = vunpack.c.l.b16 %v1802
    %v2027 = vunpack.c.l.b16 %v1803
    %v2028 = vunpack.c.l.b16 %v1804
    %v2029 = vunpack.c.l.b16 %v1805
    %v2030 = vunpack.c.l.b16 %v1806
    %v2031 = vunpack.c.l.b16 %v1807
    %v2032 = vunpack.c.l.b16 %v1808
    %v2033 = vunpack.c.l.b16 %v1809
    %v2034 = vunpack.c.l.b16 %v1810
    %v2035 = vunpack.c.l.b16 %v1811
    %v2036 = vunpack.c.l.b16 %v1812
    %v2037 = vunpack.c.l.b16 %v1813
    %v2038 = vunpack.c.l.b16 %v1814
    %v2039 = vunpack.c.l.b16 %v1815
    %v2040 = vunpack.c.l.b16 %v1816
    %v2041 = vunpack.c.l.b16 %v1817
    %v2042 = vunpack.c.l.b16 %v1818
    %v2043 = vunpack.c.l.b16 %v1819
    %v2044 = vunpack.c.l.b16 %v1820
    %v2045 = vunpack.c.l.b16 %v1821
    %v2046 = vunpack.c.l.b16 %v1822
    %v2047 = vunpack.c.l.b16 %v1823
    %v2048 = vunpack.c.l.b16 %v1824
    %v2049 = vunpack.c.l.b16 %v1825
    %v2050 = vunpack.c.l.b16 %v1826
    %v2051 = vunpack.c.l.b16 %v1827
    %v2052 = vunpack.c.l.b16 %v1828
    %v2053 = vunpack.c.l.b16 %v1829
    %v2054 = vunpack.c.l.b16 %v1830
    %v2055 = vunpack.c.l.b16 %v1831
    %v2056 = vunpack.c.l.b16 %v1832
    %v2057 = vunpack.c.l.b16 %v1833
    %v2058 = vunpack.c.l.b16 %v1834
    %v2059 = vunpack.c.l.b16 %v1835
    %v2060 = vunpack.c.l.b16 %v1836
    %v2061 = vunpack.c.l.b16 %v1837
    %v2062 = vunpack.c.l.b16 %v1838
    %v2063 = vunpack.c.l.b16 %v1839
    %v2064 = vunpack.c.l.b16 %v1840
    %v2065 = vunpack.c.l.b16 %v1841
    %v2066 = vpack.c.b16 %v2019, %v2018
    %v2067 = vpack.c.b16 %v2021, %v2020
    %v2068 = vpack.c.b16 %v2023, %v2022
    %v2069 = vpack.c.b16 %v2025, %v2024
    %v2070 = vpack.c.b16 %v2027, %v2026
    %v2071 = vpack.c.b16 %v2029, %v2028
    %v2072 = vpack.c.b16 %v2031, %v2030
    %v2073 = vpack.c.b16 %v2033, %v2032
    %v2074 = vpack.c.b16 %v2035, %v2034
    %v2075 = vpack.c.b16 %v2037, %v2036
    %v2076 = vpack.c.b16 %v2039, %v2038
    %v2077 = vpack.c.b16 %v2041, %v2040
    %v2078 = vpack.c.b16 %v2043, %v2042
    %v2079 = vpack.c.b16 %v2045, %v2044
    %v2080 = vpack.c.b16 %v2047, %v2046
    %v2081 = vpack.c.b16 %v2049, %v2048
    %v2082 = vpack.c.b16 %v2051, %v2050
    %v2083 = vpack.c.b16 %v2053, %v2052
    %v2084 = vpack.c.b16 %v2055, %v2054
    %v2085 = vpack.c.b16 %v2057, %v2056
    %v2086 = vpack.c.b16 %v2059, %v2058
    %v2087 = vpack.c.b16 %v2061, %v2060
    %v2088 = vpack.c.b16 %v2063, %v2062
    %v2089 = vpack.c.b16 %v2065, %v2064
    %2114 = vmatprep.subr.bf16.mxu0 0
    %2115 = vmatpush1.bf16.msra.mxu0 %v2066
    %2116 = vmatprep.subr.bf16.mxu0 0
    %2117 = vmatpush1.bf16.msra.mxu0 %v2067
    %2118 = vmatprep.subr.bf16.mxu0 0
    %2119 = vmatpush1.bf16.msra.mxu0 %v2068
    %2120 = vmatprep.subr.bf16.mxu0 0
    %2121 = vmatpush1.bf16.msra.mxu0 %v2069
    %2122 = vmatprep.subr.bf16.mxu0 0
    %2123 = vmatpush1.bf16.msra.mxu0 %v2070
    %2124 = vmatprep.subr.bf16.mxu0 0
    %2125 = vmatpush1.bf16.msra.mxu0 %v2071
    %2126 = vmatprep.subr.bf16.mxu0 0
    %2127 = vmatpush1.bf16.msra.mxu0 %v2072
    %2128 = vmatprep.subr.bf16.mxu0 0
    %2129 = vmatpush1.bf16.msra.mxu0 %v2073
    %2130 = vmatprep.subr.bf16.mxu0 0
    %2131 = vmatpush1.bf16.msra.mxu0 %v2074
    %2132 = vmatprep.subr.bf16.mxu0 0
    %2133 = vmatpush1.bf16.msra.mxu0 %v2075
    %2134 = vmatprep.subr.bf16.mxu0 0
    %2135 = vmatpush1.bf16.msra.mxu0 %v2076
    %2136 = vmatprep.subr.bf16.mxu0 0
    %2137 = vmatpush1.bf16.msra.mxu0 %v2077
    %2138 = vmatprep.subr.bf16.mxu0 0
    %2139 = vmatpush1.bf16.msra.mxu0 %v2078
    %2140 = vmatprep.subr.bf16.mxu0 0
    %2141 = vmatpush1.bf16.msra.mxu0 %v2079
    %2142 = vmatprep.subr.bf16.mxu0 0
    %2143 = vmatpush1.bf16.msra.mxu0 %v2080
    %2144 = vmatprep.subr.bf16.mxu0 0
    %2145 = vmatpush1.bf16.msra.mxu0 %v2081
    %2146 = vmatprep.mubr.bf16.mxu0 %v1923
    %2147 = vmatmul.mubr.bf16.gmra.mrb[0].mxu0 %v1922
    %v2148 = vpop.f32.mrb[0].mxu0
    %v2149 = vadd.f32 0.0, %v2148
    %v2150 = vpop.f32.mrb[0].mxu0
    %v2151 = vpop.f32.mrb[0].mxu0
    %v2152 = vadd.f32 0.0, %v2151
    %v2153 = vpop.f32.mrb[0].mxu0
    %2154 = vmatprep.mubr.bf16.mxu0 %v1926
    %2155 = vmatmul.mubr.bf16.gmra.mrb[0].mxu0 %v1925
    %v2156 = vpop.f32.mrb[0].mxu0
    %v2157 = vadd.f32 0.0, %v2156
    %v2158 = vpop.f32.mrb[0].mxu0
    %v2159 = vpop.f32.mrb[0].mxu0
    %v2160 = vadd.f32 0.0, %v2159
    %v2161 = vpop.f32.mrb[0].mxu0
    %2162 = vmatprep.mubr.bf16.mxu0 %v1929
    %2163 = vmatmul.mubr.bf16.gmra.mrb[0].mxu0 %v1928
    %v2164 = vpop.f32.mrb[0].mxu0
    %v2165 = vadd.f32 0.0, %v2164
    %v2166 = vpop.f32.mrb[0].mxu0
    %v2167 = vpop.f32.mrb[0].mxu0
    %v2168 = vadd.f32 0.0, %v2167
    %v2169 = vpop.f32.mrb[0].mxu0
    %2170 = vmatprep.mubr.bf16.mxu0 %v1932
    %2171 = vmatmul.mubr.bf16.gmra.mrb[0].mxu0 %v1931
    %v2172 = vpop.f32.mrb[0].mxu0
    %v2173 = vadd.f32 0.0, %v2172
    %v2174 = vpop.f32.mrb[0].mxu0
    %v2175 = vpop.f32.mrb[0].mxu0
    %v2176 = vadd.f32 0.0, %v2175
    %v2177 = vpop.f32.mrb[0].mxu0
    %2178 = vmatprep.mubr.bf16.mxu0 %v1935
    %2179 = vmatmul.mubr.bf16.gmra.mrb[0].mxu0 %v1934
    %v2180 = vpop.f32.mrb[0].mxu0
    %v2181 = vadd.f32 0.0, %v2180
    %v2182 = vpop.f32.mrb[0].mxu0
    %v2183 = vpop.f32.mrb[0].mxu0
    %v2184 = vadd.f32 0.0, %v2183
    %v2185 = vpop.f32.mrb[0].mxu0
    %2186 = vmatprep.mubr.bf16.mxu0 %v1938
    %2187 = vmatmul.mubr.bf16.gmra.mrb[0].mxu0 %v1937
    %v2188 = vpop.f32.mrb[0].mxu0
    %v2189 = vadd.f32 0.0, %v2188
    %v2190 = vpop.f32.mrb[0].mxu0
    %v2191 = vpop.f32.mrb[0].mxu0
    %v2192 = vadd.f32 0.0, %v2191
    %v2193 = vpop.f32.mrb[0].mxu0
    %2194 = vmatprep.mubr.bf16.mxu0 %v1941
    %2195 = vmatmul.mubr.bf16.gmra.mrb[0].mxu0 %v1940
    %v2196 = vpop.f32.mrb[0].mxu0
    %v2197 = vadd.f32 0.0, %v2196
    %v2198 = vpop.f32.mrb[0].mxu0
    %v2199 = vpop.f32.mrb[0].mxu0
    %v2200 = vadd.f32 0.0, %v2199
    %v2201 = vpop.f32.mrb[0].mxu0
    %2202 = vmatprep.mubr.bf16.mxu0 %v1944
    %2203 = vmatmul.mubr.bf16.gmra.mrb[0].mxu0 %v1943
    %v2204 = vpop.f32.mrb[0].mxu0
    %v2205 = vadd.f32 0.0, %v2204
    %v2206 = vpop.f32.mrb[0].mxu0
    %v2207 = vpop.f32.mrb[0].mxu0
    %v2208 = vadd.f32 0.0, %v2207
    %v2209 = vpop.f32.mrb[0].mxu0
    %2210 = vdwg.mxu0
    %2211 = vmatprep.subr.bf16.mxu0 0
    %2212 = vmatpush1.bf16.msra.mxu0 %v2082
    %2213 = vmatprep.subr.bf16.mxu0 0
    %2214 = vmatpush1.bf16.msra.mxu0 %v2083
    %2215 = vmatprep.subr.bf16.mxu0 0
    %2216 = vmatpush1.bf16.msra.mxu0 %v2084
    %2217 = vmatprep.subr.bf16.mxu0 0
    %2218 = vmatpush1.bf16.msra.mxu0 %v2085
    %2219 = vmatprep.subr.bf16.mxu0 0
    %2220 = vmatpush1.bf16.msra.mxu0 %v2086
    %2221 = vmatprep.subr.bf16.mxu0 0
    %2222 = vmatpush1.bf16.msra.mxu0 %v2087
    %2223 = vmatprep.subr.bf16.mxu0 0
    %2224 = vmatpush1.bf16.msra.mxu0 %v2088
    %2225 = vmatprep.subr.bf16.mxu0 0
    %2226 = vmatpush1.bf16.msra.mxu0 %v2089
    %2227 = vmatprep.subr.bf16.mxu0 0
    %2228 = vmatpush1.bf16.msra.mxu0 0
    %2229 = vmatprep.subr.bf16.mxu0 0
    %2230 = vmatpush1.bf16.msra.mxu0 0
    %2231 = vmatprep.subr.bf16.mxu0 0
    %2232 = vmatpush1.bf16.msra.mxu0 0
    %2233 = vmatprep.subr.bf16.mxu0 0
    %2234 = vmatpush1.bf16.msra.mxu0 0
    %2235 = vmatprep.subr.bf16.mxu0 0
    %2236 = vmatpush1.bf16.msra.mxu0 0
    %2237 = vmatprep.subr.bf16.mxu0 0
    %2238 = vmatpush1.bf16.msra.mxu0 0
    %2239 = vmatprep.subr.bf16.mxu0 0
    %2240 = vmatpush1.bf16.msra.mxu0 0
    %2241 = vmatprep.subr.bf16.mxu0 0
    %2242 = vmatpush1.bf16.msra.mxu0 0
    %2243 = vmatprep.mubr.bf16.mxu0 0
    %2244 = vmatmul.mubr.bf16.gmra.mrb[0].mxu0 %v1924
    %v2245 = vpop.f32.mrb[0].mxu0
    %v2246 = vadd.f32 %v2149, %v2245
    %v2247 = vpop.f32.mrb[0].mxu0
    %v2248 = vpop.f32.mrb[0].mxu0
    %v2249 = vadd.f32 %v2152, %v2248
    %v2250 = vpop.f32.mrb[0].mxu0
    %2251 = vmatprep.mubr.bf16.mxu0 0
    %2252 = vmatmul.mubr.bf16.gmra.mrb[0].mxu0 %v1927
    %v2253 = vpop.f32.mrb[0].mxu0
    %v2254 = vadd.f32 %v2157, %v2253
    %v2255 = vpop.f32.mrb[0].mxu0
    %v2256 = vpop.f32.mrb[0].mxu0
    %v2257 = vadd.f32 %v2160, %v2256
    %v2258 = vpop.f32.mrb[0].mxu0
    %2259 = vmatprep.mubr.bf16.mxu0 0
    %2260 = vmatmul.mubr.bf16.gmra.mrb[0].mxu0 %v1930
    %v2261 = vpop.f32.mrb[0].mxu0
    %v2262 = vadd.f32 %v2165, %v2261
    %v2263 = vpop.f32.mrb[0].mxu0
    %v2264 = vpop.f32.mrb[0].mxu0
    %v2265 = vadd.f32 %v2168, %v2264
    %v2266 = vpop.f32.mrb[0].mxu0
    %2267 = vmatprep.mubr.bf16.mxu0 0
    %2268 = vmatmul.mubr.bf16.gmra.mrb[0].mxu0 %v1933
    %v2269 = vpop.f32.mrb[0].mxu0
    %v2270 = vadd.f32 %v2173, %v2269
    %v2271 = vpop.f32.mrb[0].mxu0
    %v2272 = vpop.f32.mrb[0].mxu0
    %v2273 = vadd.f32 %v2176, %v2272
    %v2274 = vpop.f32.mrb[0].mxu0
    %2275 = vmatprep.mubr.bf16.mxu0 0
    %2276 = vmatmul.mubr.bf16.gmra.mrb[0].mxu0 %v1936
    %v2277 = vpop.f32.mrb[0].mxu0
    %v2278 = vadd.f32 %v2181, %v2277
    %v2279 = vpop.f32.mrb[0].mxu0
    %v2280 = vpop.f32.mrb[0].mxu0
    %v2281 = vadd.f32 %v2184, %v2280
    %v2282 = vpop.f32.mrb[0].mxu0
    %2283 = vmatprep.mubr.bf16.mxu0 0
    %2284 = vmatmul.mubr.bf16.gmra.mrb[0].mxu0 %v1939
    %v2285 = vpop.f32.mrb[0].mxu0
    %v2286 = vadd.f32 %v2189, %v2285
    %v2287 = vpop.f32.mrb[0].mxu0
    %v2288 = vpop.f32.mrb[0].mxu0
    %v2289 = vadd.f32 %v2192, %v2288
    %v2290 = vpop.f32.mrb[0].mxu0
    %2291 = vmatprep.mubr.bf16.mxu0 0
    %2292 = vmatmul.mubr.bf16.gmra.mrb[0].mxu0 %v1942
    %v2293 = vpop.f32.mrb[0].mxu0
    %v2294 = vadd.f32 %v2197, %v2293
    %v2295 = vpop.f32.mrb[0].mxu0
    %v2296 = vpop.f32.mrb[0].mxu0
    %v2297 = vadd.f32 %v2200, %v2296
    %v2298 = vpop.f32.mrb[0].mxu0
    %2299 = vmatprep.mubr.bf16.mxu0 0
    %2300 = vmatmul.mubr.bf16.gmra.mrb[0].mxu0 %v1945
    %v2301 = vpop.f32.mrb[0].mxu0
    %v2302 = vadd.f32 %v2205, %v2301
    %v2303 = vpop.f32.mrb[0].mxu0
    %v2304 = vpop.f32.mrb[0].mxu0
    %v2305 = vadd.f32 %v2208, %v2304
    %v2306 = vpop.f32.mrb[0].mxu0
    %2307 = vdwg.mxu0
    %v2308 = vadd.f32 %v1698, %v2246
    %v2309 = vadd.f32 %v1701, %v2249
    %v2310 = vadd.f32 %v1706, %v2254
    %v2311 = vadd.f32 %v1709, %v2257
    %v2312 = vadd.f32 %v1714, %v2262
    %v2313 = vadd.f32 %v1717, %v2265
    %v2314 = vadd.f32 %v1722, %v2270
    %v2315 = vadd.f32 %v1725, %v2273
    %v2316 = vadd.f32 %v1730, %v2278
    %v2317 = vadd.f32 %v1733, %v2281
    %v2318 = vadd.f32 %v1738, %v2286
    %v2319 = vadd.f32 %v1741, %v2289
    %v2320 = vadd.f32 %v1746, %v2294
    %v2321 = vadd.f32 %v1749, %v2297
    %v2322 = vadd.f32 %v1754, %v2302
    %v2323 = vadd.f32 %v1757, %v2305
    %v2324 = vld [vmem:[#allocation15] sm:$0x1]
    %v2326 = vlaneseq
    %v2327 = vshrl.u32 %v2326, 7
    %v2328 = vsub.s32 0, %v2327
    %v2329 = vrot.slane %v2324, %v2328
    %v2331 = vmul.f32 %v2308, %v2329
    %v2332 = vmul.f32 %v2309, %v2329
    %v2333 = vmul.f32 %v2310, %v2329
    %v2334 = vmul.f32 %v2311, %v2329
    %v2335 = vmul.f32 %v2312, %v2329
    %v2336 = vmul.f32 %v2313, %v2329
    %v2337 = vmul.f32 %v2314, %v2329
    %v2338 = vmul.f32 %v2315, %v2329
    %v2339 = vmul.f32 %v2316, %v2329
    %v2340 = vmul.f32 %v2317, %v2329
    %v2341 = vmul.f32 %v2318, %v2329
    %v2342 = vmul.f32 %v2319, %v2329
    %v2343 = vmul.f32 %v2320, %v2329
    %v2344 = vmul.f32 %v2321, %v2329
    %v2345 = vmul.f32 %v2322, %v2329
    %v2346 = vmul.f32 %v2323, %v2329
    %v2347 = vld [vmem:[#allocation17] sm:$0x1]
    %v2349 = vlaneseq
    %v2350 = vshrl.u32 %v2349, 7
    %v2351 = vsub.s32 0, %v2350
    %v2352 = vrot.slane %v2347, %v2351
    %v2354 = vadd.f32 %v2331, %v2352
    %v2355 = vadd.f32 %v2332, %v2352
    %v2356 = vadd.f32 %v2333, %v2352
    %v2357 = vadd.f32 %v2334, %v2352
    %v2358 = vadd.f32 %v2335, %v2352
    %v2359 = vadd.f32 %v2336, %v2352
    %v2360 = vadd.f32 %v2337, %v2352
    %v2361 = vadd.f32 %v2338, %v2352
    %v2362 = vadd.f32 %v2339, %v2352
    %v2363 = vadd.f32 %v2340, %v2352
    %v2364 = vadd.f32 %v2341, %v2352
    %v2365 = vadd.f32 %v2342, %v2352
    %v2366 = vadd.f32 %v2343, %v2352
    %v2367 = vadd.f32 %v2344, %v2352
    %v2368 = vadd.f32 %v2345, %v2352
    %v2369 = vadd.f32 %v2346, %v2352
    %v2370 = vmax.f32 %v2354, 0.0
    %v2371 = vmax.f32 %v2355, 0.0
    %v2372 = vmax.f32 %v2356, 0.0
    %v2373 = vmax.f32 %v2357, 0.0
    %v2374 = vmax.f32 %v2358, 0.0
    %v2375 = vmax.f32 %v2359, 0.0
    %v2376 = vmax.f32 %v2360, 0.0
    %v2377 = vmax.f32 %v2361, 0.0
    %v2378 = vmax.f32 %v2362, 0.0
    %v2379 = vmax.f32 %v2363, 0.0
    %v2380 = vmax.f32 %v2364, 0.0
    %v2381 = vmax.f32 %v2365, 0.0
    %v2382 = vmax.f32 %v2366, 0.0
    %v2383 = vmax.f32 %v2367, 0.0
    %v2384 = vmax.f32 %v2368, 0.0
    %v2385 = vmax.f32 %v2369, 0.0
    %v2386 = vpack.c.bf16 %v2371, %v2370
    %v2387 = vpack.c.bf16 %v2373, %v2372
    %v2388 = vpack.c.bf16 %v2375, %v2374
    %v2389 = vpack.c.bf16 %v2377, %v2376
    %v2390 = vpack.c.bf16 %v2379, %v2378
    %v2391 = vpack.c.bf16 %v2381, %v2380
    %v2392 = vpack.c.bf16 %v2383, %v2382
    %v2393 = vpack.c.bf16 %v2385, %v2384
    %v2394 = vld [vmem:[#allocation9] sm:$0xf]
    %v2395 = vld [vmem:[#allocation9 + $0x4] sm:$0xf]
    %v2396 = vld [vmem:[#allocation9 + $0x8] sm:$0xf]
    %v2397 = vld [vmem:[#allocation9 + $0xc] sm:$0xf]
    %v2398 = vld [vmem:[#allocation9 + $0x10] sm:$0xf]
    %v2399 = vld [vmem:[#allocation9 + $0x14] sm:$0xf]
    %v2400 = vld [vmem:[#allocation9 + $0x18] sm:$0xf]
    %v2401 = vld [vmem:[#allocation9 + $0x1c] sm:$0xf]
    %v2402 = vld [vmem:[#allocation9 + $0x20] sm:$0xf]
    %v2403 = vld [vmem:[#allocation9 + $0x24] sm:$0xf]
    %v2404 = vld [vmem:[#allocation9 + $0x28] sm:$0xf]
    %v2405 = vld [vmem:[#allocation9 + $0x2c] sm:$0xf]
    %v2406 = vld [vmem:[#allocation9 + $0x30] sm:$0xf]
    %v2407 = vld [vmem:[#allocation9 + $0x34] sm:$0xf]
    %v2408 = vld [vmem:[#allocation9 + $0x38] sm:$0xf]
    %v2409 = vld [vmem:[#allocation9 + $0x3c] sm:$0xf]
    %v2426 = vunpack.c.l.b16 %v2394
    %v2427 = vunpack.c.l.b16 %v2395
    %v2428 = vunpack.c.l.b16 %v2396
    %v2429 = vunpack.c.l.b16 %v2397
    %v2430 = vunpack.c.l.b16 %v2398
    %v2431 = vunpack.c.l.b16 %v2399
    %v2432 = vunpack.c.l.b16 %v2400
    %v2433 = vunpack.c.l.b16 %v2401
    %v2434 = vunpack.c.l.b16 %v2402
    %v2435 = vunpack.c.l.b16 %v2403
    %v2436 = vunpack.c.l.b16 %v2404
    %v2437 = vunpack.c.l.b16 %v2405
    %v2438 = vunpack.c.l.b16 %v2406
    %v2439 = vunpack.c.l.b16 %v2407
    %v2440 = vunpack.c.l.b16 %v2408
    %v2441 = vunpack.c.l.b16 %v2409
    %v2442 = vpack.c.b16 %v2427, %v2426
    %v2443 = vpack.c.b16 %v2429, %v2428
    %v2444 = vpack.c.b16 %v2431, %v2430
    %v2445 = vpack.c.b16 %v2433, %v2432
    %v2446 = vpack.c.b16 %v2435, %v2434
    %v2447 = vpack.c.b16 %v2437, %v2436
    %v2448 = vpack.c.b16 %v2439, %v2438
    %v2449 = vpack.c.b16 %v2441, %v2440
    %2458 = vmatprep.subr.bf16.mxu0 0
    %2459 = vmatpush1.bf16.msra.mxu0 %v2442
    %2460 = vmatprep.subr.bf16.mxu0 0
    %2461 = vmatpush1.bf16.msra.mxu0 %v2443
    %2462 = vmatprep.subr.bf16.mxu0 0
    %2463 = vmatpush1.bf16.msra.mxu0 %v2444
    %2464 = vmatprep.subr.bf16.mxu0 0
    %2465 = vmatpush1.bf16.msra.mxu0 %v2445
    %2466 = vmatprep.subr.bf16.mxu0 0
    %2467 = vmatpush1.bf16.msra.mxu0 %v2446
    %2468 = vmatprep.subr.bf16.mxu0 0
    %2469 = vmatpush1.bf16.msra.mxu0 %v2447
    %2470 = vmatprep.subr.bf16.mxu0 0
    %2471 = vmatpush1.bf16.msra.mxu0 %v2448
    %2472 = vmatprep.subr.bf16.mxu0 0
    %2473 = vmatpush1.bf16.msra.mxu0 %v2449
    %2474 = vmatprep.subr.bf16.mxu0 0
    %2475 = vmatpush1.bf16.msra.mxu0 0
    %2476 = vmatprep.subr.bf16.mxu0 0
    %2477 = vmatpush1.bf16.msra.mxu0 0
    %2478 = vmatprep.subr.bf16.mxu0 0
    %2479 = vmatpush1.bf16.msra.mxu0 0
    %2480 = vmatprep.subr.bf16.mxu0 0
    %2481 = vmatpush1.bf16.msra.mxu0 0
    %2482 = vmatprep.subr.bf16.mxu0 0
    %2483 = vmatpush1.bf16.msra.mxu0 0
    %2484 = vmatprep.subr.bf16.mxu0 0
    %2485 = vmatpush1.bf16.msra.mxu0 0
    %2486 = vmatprep.subr.bf16.mxu0 0
    %2487 = vmatpush1.bf16.msra.mxu0 0
    %2488 = vmatprep.subr.bf16.mxu0 0
    %2489 = vmatpush1.bf16.msra.mxu0 0
    %2490 = vmatprep.mubr.bf16.mxu0 0
    %2491 = vmatmul.mubr.bf16.gmra.mrb[0].mxu0 %v2386
    %v2492 = vpop.f32.mrb[0].mxu0
    %v2493 = vadd.f32 0.0, %v2492
    %v2494 = vpop.f32.mrb[0].mxu0
    %v2495 = vpop.f32.mrb[0].mxu0
    %v2496 = vadd.f32 0.0, %v2495
    %v2497 = vpop.f32.mrb[0].mxu0
    %2498 = vmatprep.mubr.bf16.mxu0 0
    %2499 = vmatmul.mubr.bf16.gmra.mrb[0].mxu0 %v2387
    %v2500 = vpop.f32.mrb[0].mxu0
    %v2501 = vadd.f32 0.0, %v2500
    %v2502 = vpop.f32.mrb[0].mxu0
    %v2503 = vpop.f32.mrb[0].mxu0
    %v2504 = vadd.f32 0.0, %v2503
    %v2505 = vpop.f32.mrb[0].mxu0
    %2506 = vmatprep.mubr.bf16.mxu0 0
    %2507 = vmatmul.mubr.bf16.gmra.mrb[0].mxu0 %v2388
    %v2508 = vpop.f32.mrb[0].mxu0
    %v2509 = vadd.f32 0.0, %v2508
    %v2510 = vpop.f32.mrb[0].mxu0
    %v2511 = vpop.f32.mrb[0].mxu0
    %v2512 = vadd.f32 0.0, %v2511
    %v2513 = vpop.f32.mrb[0].mxu0
    %2514 = vmatprep.mubr.bf16.mxu0 0
    %2515 = vmatmul.mubr.bf16.gmra.mrb[0].mxu0 %v2389
    %v2516 = vpop.f32.mrb[0].mxu0
    %v2517 = vadd.f32 0.0, %v2516
    %v2518 = vpop.f32.mrb[0].mxu0
    %v2519 = vpop.f32.mrb[0].mxu0
    %v2520 = vadd.f32 0.0, %v2519
    %v2521 = vpop.f32.mrb[0].mxu0
    %2522 = vmatprep.mubr.bf16.mxu0 0
    %2523 = vmatmul.mubr.bf16.gmra.mrb[0].mxu0 %v2390
    %v2524 = vpop.f32.mrb[0].mxu0
    %v2525 = vadd.f32 0.0, %v2524
    %v2526 = vpop.f32.mrb[0].mxu0
    %v2527 = vpop.f32.mrb[0].mxu0
    %v2528 = vadd.f32 0.0, %v2527
    %v2529 = vpop.f32.mrb[0].mxu0
    %2530 = vmatprep.mubr.bf16.mxu0 0
    %2531 = vmatmul.mubr.bf16.gmra.mrb[0].mxu0 %v2391
    %v2532 = vpop.f32.mrb[0].mxu0
    %v2533 = vadd.f32 0.0, %v2532
    %v2534 = vpop.f32.mrb[0].mxu0
    %v2535 = vpop.f32.mrb[0].mxu0
    %v2536 = vadd.f32 0.0, %v2535
    %v2537 = vpop.f32.mrb[0].mxu0
    %2538 = vmatprep.mubr.bf16.mxu0 0
    %2539 = vmatmul.mubr.bf16.gmra.mrb[0].mxu0 %v2392
    %v2540 = vpop.f32.mrb[0].mxu0
    %v2541 = vadd.f32 0.0, %v2540
    %v2542 = vpop.f32.mrb[0].mxu0
    %v2543 = vpop.f32.mrb[0].mxu0
    %v2544 = vadd.f32 0.0, %v2543
    %v2545 = vpop.f32.mrb[0].mxu0
    %2546 = vmatprep.mubr.bf16.mxu0 0
    %2547 = vmatmul.mubr.bf16.gmra.mrb[0].mxu0 %v2393
    %v2548 = vpop.f32.mrb[0].mxu0
    %v2549 = vadd.f32 0.0, %v2548
    %v2550 = vpop.f32.mrb[0].mxu0
    %v2551 = vpop.f32.mrb[0].mxu0
    %v2552 = vadd.f32 0.0, %v2551
    %v2553 = vpop.f32.mrb[0].mxu0
    %2554 = vdwg.mxu0
    %v2555 = vld [vmem:[#allocation18] sm:$0x1]
    %v2557 = vlaneseq
    %v2558 = vshrl.u32 %v2557, 7
    %v2559 = vsub.s32 0, %v2558
    %v2560 = vrot.slane %v2555, %v2559
    %v2562 = vmul.f32 %v2493, %v2560
    %v2563 = vmul.f32 %v2496, %v2560
    %v2564 = vmul.f32 %v2501, %v2560
    %v2565 = vmul.f32 %v2504, %v2560
    %v2566 = vmul.f32 %v2509, %v2560
    %v2567 = vmul.f32 %v2512, %v2560
    %v2568 = vmul.f32 %v2517, %v2560
    %v2569 = vmul.f32 %v2520, %v2560
    %v2570 = vmul.f32 %v2525, %v2560
    %v2571 = vmul.f32 %v2528, %v2560
    %v2572 = vmul.f32 %v2533, %v2560
    %v2573 = vmul.f32 %v2536, %v2560
    %v2574 = vmul.f32 %v2541, %v2560
    %v2575 = vmul.f32 %v2544, %v2560
    %v2576 = vmul.f32 %v2549, %v2560
    %v2577 = vmul.f32 %v2552, %v2560
    %v2578 = vld [vmem:[#allocation20] sm:$0x1]
    %v2580 = vlaneseq
    %v2581 = vshrl.u32 %v2580, 7
    %v2582 = vsub.s32 0, %v2581
    %v2583 = vrot.slane %v2578, %v2582
    %v2585 = vadd.f32 %v2562, %v2583
    %v2586 = vadd.f32 %v2563, %v2583
    %v2587 = vadd.f32 %v2564, %v2583
    %v2588 = vadd.f32 %v2565, %v2583
    %v2589 = vadd.f32 %v2566, %v2583
    %v2590 = vadd.f32 %v2567, %v2583
    %v2591 = vadd.f32 %v2568, %v2583
    %v2592 = vadd.f32 %v2569, %v2583
    %v2593 = vadd.f32 %v2570, %v2583
    %v2594 = vadd.f32 %v2571, %v2583
    %v2595 = vadd.f32 %v2572, %v2583
    %v2596 = vadd.f32 %v2573, %v2583
    %v2597 = vadd.f32 %v2574, %v2583
    %v2598 = vadd.f32 %v2575, %v2583
    %v2599 = vadd.f32 %v2576, %v2583
    %v2600 = vadd.f32 %v2577, %v2583
    %v2601 = vld [vmem:[#allocation11] sm:$0xf]
    %v2602 = vld [vmem:[#allocation11 + $0x4] sm:$0xf]
    %v2603 = vld [vmem:[#allocation11 + $0x8] sm:$0xf]
    %v2604 = vld [vmem:[#allocation11 + $0xc] sm:$0xf]
    %v2605 = vld [vmem:[#allocation11 + $0x10] sm:$0xf]
    %v2606 = vld [vmem:[#allocation11 + $0x14] sm:$0xf]
    %v2607 = vld [vmem:[#allocation11 + $0x18] sm:$0xf]
    %v2608 = vld [vmem:[#allocation11 + $0x1c] sm:$0xf]
    %v2609 = vld [vmem:[#allocation11 + $0x20] sm:$0xf]
    %v2610 = vld [vmem:[#allocation11 + $0x24] sm:$0xf]
    %v2611 = vld [vmem:[#allocation11 + $0x28] sm:$0xf]
    %v2612 = vld [vmem:[#allocation11 + $0x2c] sm:$0xf]
    %v2613 = vld [vmem:[#allocation11 + $0x30] sm:$0xf]
    %v2614 = vld [vmem:[#allocation11 + $0x34] sm:$0xf]
    %v2615 = vld [vmem:[#allocation11 + $0x38] sm:$0xf]
    %v2616 = vld [vmem:[#allocation11 + $0x3c] sm:$0xf]
    %v2633 = vunpack.c.l.b16 %v2601
    %v2634 = vunpack.c.l.b16 %v2602
    %v2635 = vunpack.c.l.b16 %v2603
    %v2636 = vunpack.c.l.b16 %v2604
    %v2637 = vunpack.c.l.b16 %v2605
    %v2638 = vunpack.c.l.b16 %v2606
    %v2639 = vunpack.c.l.b16 %v2607
    %v2640 = vunpack.c.l.b16 %v2608
    %v2641 = vunpack.c.l.b16 %v2609
    %v2642 = vunpack.c.l.b16 %v2610
    %v2643 = vunpack.c.l.b16 %v2611
    %v2644 = vunpack.c.l.b16 %v2612
    %v2645 = vunpack.c.l.b16 %v2613
    %v2646 = vunpack.c.l.b16 %v2614
    %v2647 = vunpack.c.l.b16 %v2615
    %v2648 = vunpack.c.l.b16 %v2616
    %v2649 = vpack.c.b16 %v2634, %v2633
    %v2650 = vpack.c.b16 %v2636, %v2635
    %v2651 = vpack.c.b16 %v2638, %v2637
    %v2652 = vpack.c.b16 %v2640, %v2639
    %v2653 = vpack.c.b16 %v2642, %v2641
    %v2654 = vpack.c.b16 %v2644, %v2643
    %v2655 = vpack.c.b16 %v2646, %v2645
    %v2656 = vpack.c.b16 %v2648, %v2647
    %2665 = vmatprep.subr.bf16.mxu0 0
    %2666 = vmatpush1.bf16.msra.mxu0 %v2649
    %2667 = vmatprep.subr.bf16.mxu0 0
    %2668 = vmatpush1.bf16.msra.mxu0 %v2650
    %2669 = vmatprep.subr.bf16.mxu0 0
    %2670 = vmatpush1.bf16.msra.mxu0 %v2651
    %2671 = vmatprep.subr.bf16.mxu0 0
    %2672 = vmatpush1.bf16.msra.mxu0 %v2652
    %2673 = vmatprep.subr.bf16.mxu0 0
    %2674 = vmatpush1.bf16.msra.mxu0 %v2653
    %2675 = vmatprep.subr.bf16.mxu0 0
    %2676 = vmatpush1.bf16.msra.mxu0 %v2654
    %2677 = vmatprep.subr.bf16.mxu0 0
    %2678 = vmatpush1.bf16.msra.mxu0 %v2655
    %2679 = vmatprep.subr.bf16.mxu0 0
    %2680 = vmatpush1.bf16.msra.mxu0 %v2656
    %2681 = vmatprep.subr.bf16.mxu0 0
    %2682 = vmatpush1.bf16.msra.mxu0 0
    %2683 = vmatprep.subr.bf16.mxu0 0
    %2684 = vmatpush1.bf16.msra.mxu0 0
    %2685 = vmatprep.subr.bf16.mxu0 0
    %2686 = vmatpush1.bf16.msra.mxu0 0
    %2687 = vmatprep.subr.bf16.mxu0 0
    %2688 = vmatpush1.bf16.msra.mxu0 0
    %2689 = vmatprep.subr.bf16.mxu0 0
    %2690 = vmatpush1.bf16.msra.mxu0 0
    %2691 = vmatprep.subr.bf16.mxu0 0
    %2692 = vmatpush1.bf16.msra.mxu0 0
    %2693 = vmatprep.subr.bf16.mxu0 0
    %2694 = vmatpush1.bf16.msra.mxu0 0
    %2695 = vmatprep.subr.bf16.mxu0 0
    %2696 = vmatpush1.bf16.msra.mxu0 0
    %2697 = vmatprep.mubr.bf16.mxu0 0
    %2698 = vmatmul.mubr.bf16.gmra.mrb[0].mxu0 %v270
    %v2699 = vpop.f32.mrb[0].mxu0
    %v2700 = vadd.f32 0.0, %v2699
    %v2701 = vpop.f32.mrb[0].mxu0
    %v2702 = vpop.f32.mrb[0].mxu0
    %v2703 = vadd.f32 0.0, %v2702
    %v2704 = vpop.f32.mrb[0].mxu0
    %2705 = vmatprep.mubr.bf16.mxu0 0
    %2706 = vmatmul.mubr.bf16.gmra.mrb[0].mxu0 %v271
    %v2707 = vpop.f32.mrb[0].mxu0
    %v2708 = vadd.f32 0.0, %v2707
    %v2709 = vpop.f32.mrb[0].mxu0
    %v2710 = vpop.f32.mrb[0].mxu0
    %v2711 = vadd.f32 0.0, %v2710
    %v2712 = vpop.f32.mrb[0].mxu0
    %2713 = vmatprep.mubr.bf16.mxu0 0
    %2714 = vmatmul.mubr.bf16.gmra.mrb[0].mxu0 %v272
    %v2715 = vpop.f32.mrb[0].mxu0
    %v2716 = vadd.f32 0.0, %v2715
    %v2717 = vpop.f32.mrb[0].mxu0
    %v2718 = vpop.f32.mrb[0].mxu0
    %v2719 = vadd.f32 0.0, %v2718
    %v2720 = vpop.f32.mrb[0].mxu0
    %2721 = vmatprep.mubr.bf16.mxu0 0
    %2722 = vmatmul.mubr.bf16.gmra.mrb[0].mxu0 %v273
    %v2723 = vpop.f32.mrb[0].mxu0
    %v2724 = vadd.f32 0.0, %v2723
    %v2725 = vpop.f32.mrb[0].mxu0
    %v2726 = vpop.f32.mrb[0].mxu0
    %v2727 = vadd.f32 0.0, %v2726
    %v2728 = vpop.f32.mrb[0].mxu0
    %2729 = vmatprep.mubr.bf16.mxu0 0
    %2730 = vmatmul.mubr.bf16.gmra.mrb[0].mxu0 %v274
    %v2731 = vpop.f32.mrb[0].mxu0
    %v2732 = vadd.f32 0.0, %v2731
    %v2733 = vpop.f32.mrb[0].mxu0
    %v2734 = vpop.f32.mrb[0].mxu0
    %v2735 = vadd.f32 0.0, %v2734
    %v2736 = vpop.f32.mrb[0].mxu0
    %2737 = vmatprep.mubr.bf16.mxu0 0
    %2738 = vmatmul.mubr.bf16.gmra.mrb[0].mxu0 %v275
    %v2739 = vpop.f32.mrb[0].mxu0
    %v2740 = vadd.f32 0.0, %v2739
    %v2741 = vpop.f32.mrb[0].mxu0
    %v2742 = vpop.f32.mrb[0].mxu0
    %v2743 = vadd.f32 0.0, %v2742
    %v2744 = vpop.f32.mrb[0].mxu0
    %2745 = vmatprep.mubr.bf16.mxu0 0
    %2746 = vmatmul.mubr.bf16.gmra.mrb[0].mxu0 %v276
    %v2747 = vpop.f32.mrb[0].mxu0
    %v2748 = vadd.f32 0.0, %v2747
    %v2749 = vpop.f32.mrb[0].mxu0
    %v2750 = vpop.f32.mrb[0].mxu0
    %v2751 = vadd.f32 0.0, %v2750
    %v2752 = vpop.f32.mrb[0].mxu0
    %2753 = vmatprep.mubr.bf16.mxu0 0
    %2754 = vmatmul.mubr.bf16.gmra.mrb[0].mxu0 %v277
    %v2755 = vpop.f32.mrb[0].mxu0
    %v2756 = vadd.f32 0.0, %v2755
    %v2757 = vpop.f32.mrb[0].mxu0
    %v2758 = vpop.f32.mrb[0].mxu0
    %v2759 = vadd.f32 0.0, %v2758
    %v2760 = vpop.f32.mrb[0].mxu0
    %2761 = vdwg.mxu0
    %v2762 = vld [vmem:[#allocation21] sm:$0x1]
    %v2764 = vlaneseq
    %v2765 = vshrl.u32 %v2764, 7
    %v2766 = vsub.s32 0, %v2765
    %v2767 = vrot.slane %v2762, %v2766
    %v2769 = vmul.f32 %v2700, %v2767
    %v2770 = vmul.f32 %v2703, %v2767
    %v2771 = vmul.f32 %v2708, %v2767
    %v2772 = vmul.f32 %v2711, %v2767
    %v2773 = vmul.f32 %v2716, %v2767
    %v2774 = vmul.f32 %v2719, %v2767
    %v2775 = vmul.f32 %v2724, %v2767
    %v2776 = vmul.f32 %v2727, %v2767
    %v2777 = vmul.f32 %v2732, %v2767
    %v2778 = vmul.f32 %v2735, %v2767
    %v2779 = vmul.f32 %v2740, %v2767
    %v2780 = vmul.f32 %v2743, %v2767
    %v2781 = vmul.f32 %v2748, %v2767
    %v2782 = vmul.f32 %v2751, %v2767
    %v2783 = vmul.f32 %v2756, %v2767
    %v2784 = vmul.f32 %v2759, %v2767
    %v2785 = vld [vmem:[#allocation23] sm:$0x1]
    %v2787 = vlaneseq
    %v2788 = vshrl.u32 %v2787, 7
    %v2789 = vsub.s32 0, %v2788
    %v2790 = vrot.slane %v2785, %v2789
    %v2792 = vadd.f32 %v2769, %v2790
    %v2793 = vadd.f32 %v2770, %v2790
    %v2794 = vadd.f32 %v2771, %v2790
    %v2795 = vadd.f32 %v2772, %v2790
    %v2796 = vadd.f32 %v2773, %v2790
    %v2797 = vadd.f32 %v2774, %v2790
    %v2798 = vadd.f32 %v2775, %v2790
    %v2799 = vadd.f32 %v2776, %v2790
    %v2800 = vadd.f32 %v2777, %v2790
    %v2801 = vadd.f32 %v2778, %v2790
    %v2802 = vadd.f32 %v2779, %v2790
    %v2803 = vadd.f32 %v2780, %v2790
    %v2804 = vadd.f32 %v2781, %v2790
    %v2805 = vadd.f32 %v2782, %v2790
    %v2806 = vadd.f32 %v2783, %v2790
    %v2807 = vadd.f32 %v2784, %v2790
    %v2808 = vadd.f32 %v2585, %v2792
    %v2809 = vadd.f32 %v2586, %v2793
    %v2810 = vadd.f32 %v2587, %v2794
    %v2811 = vadd.f32 %v2588, %v2795
    %v2812 = vadd.f32 %v2589, %v2796
    %v2813 = vadd.f32 %v2590, %v2797
    %v2814 = vadd.f32 %v2591, %v2798
    %v2815 = vadd.f32 %v2592, %v2799
    %v2816 = vadd.f32 %v2593, %v2800
    %v2817 = vadd.f32 %v2594, %v2801
    %v2818 = vadd.f32 %v2595, %v2802
    %v2819 = vadd.f32 %v2596, %v2803
    %v2820 = vadd.f32 %v2597, %v2804
    %v2821 = vadd.f32 %v2598, %v2805
    %v2822 = vadd.f32 %v2599, %v2806
    %v2823 = vadd.f32 %v2600, %v2807
    %v2824 = vmax.f32 %v2808, 0.0
    %v2825 = vmax.f32 %v2809, 0.0
    %v2826 = vmax.f32 %v2810, 0.0
    %v2827 = vmax.f32 %v2811, 0.0
    %v2828 = vmax.f32 %v2812, 0.0
    %v2829 = vmax.f32 %v2813, 0.0
    %v2830 = vmax.f32 %v2814, 0.0
    %v2831 = vmax.f32 %v2815, 0.0
    %v2832 = vmax.f32 %v2816, 0.0
    %v2833 = vmax.f32 %v2817, 0.0
    %v2834 = vmax.f32 %v2818, 0.0
    %v2835 = vmax.f32 %v2819, 0.0
    %v2836 = vmax.f32 %v2820, 0.0
    %v2837 = vmax.f32 %v2821, 0.0
    %v2838 = vmax.f32 %v2822, 0.0
    %v2839 = vmax.f32 %v2823, 0.0
    %v2840 = vpack.c.bf16 %v2825, %v2824
    %v2841 = vpack.c.bf16 %v2827, %v2826
    %v2842 = vpack.c.bf16 %v2829, %v2828
    %v2843 = vpack.c.bf16 %v2831, %v2830
    %v2844 = vpack.c.bf16 %v2833, %v2832
    %v2845 = vpack.c.bf16 %v2835, %v2834
    %v2846 = vpack.c.bf16 %v2837, %v2836
    %v2847 = vpack.c.bf16 %v2839, %v2838
    %v2856 = vunpack.c.l.b16 %v2840
    %v2857 = vunpack.c.h.b16 %v2840
    %v2858 = vunpack.c.l.b16 %v2841
    %v2859 = vunpack.c.h.b16 %v2841
    %v2860 = vunpack.c.l.b16 %v2842
    %v2861 = vunpack.c.h.b16 %v2842
    %v2862 = vunpack.c.l.b16 %v2843
    %v2863 = vunpack.c.h.b16 %v2843
    %v2864 = vunpack.c.l.b16 %v2844
    %v2865 = vunpack.c.h.b16 %v2844
    %v2866 = vunpack.c.l.b16 %v2845
    %v2867 = vunpack.c.h.b16 %v2845
    %v2868 = vunpack.c.l.b16 %v2846
    %v2869 = vunpack.c.h.b16 %v2846
    %v2870 = vunpack.c.l.b16 %v2847
    %v2871 = vunpack.c.h.b16 %v2847
    %v2872 = vpack.c.b16 %v2856, %v2856
    %v2873 = vpack.c.b16 %v2857, %v2857
    %v2874 = vpack.c.b16 %v2858, %v2858
    %v2875 = vpack.c.b16 %v2859, %v2859
    %v2876 = vpack.c.b16 %v2860, %v2860
    %v2877 = vpack.c.b16 %v2861, %v2861
    %v2878 = vpack.c.b16 %v2862, %v2862
    %v2879 = vpack.c.b16 %v2863, %v2863
    %v2880 = vpack.c.b16 %v2864, %v2864
    %v2881 = vpack.c.b16 %v2865, %v2865
    %v2882 = vpack.c.b16 %v2866, %v2866
    %v2883 = vpack.c.b16 %v2867, %v2867
    %v2884 = vpack.c.b16 %v2868, %v2868
    %v2885 = vpack.c.b16 %v2869, %v2869
    %v2886 = vpack.c.b16 %v2870, %v2870
    %v2887 = vpack.c.b16 %v2871, %v2871
    %2904 = vst [vmem:[#allocation24] sm:$0xf] %v2872
    %2905 = vst [vmem:[#allocation24 + $0x4] sm:$0xf] %v2873
    %2906 = vst [vmem:[#allocation24 + $0x8] sm:$0xf] %v2874
    %2907 = vst [vmem:[#allocation24 + $0xc] sm:$0xf] %v2875
    %2908 = vst [vmem:[#allocation24 + $0x10] sm:$0xf] %v2876
    %2909 = vst [vmem:[#allocation24 + $0x14] sm:$0xf] %v2877
    %2910 = vst [vmem:[#allocation24 + $0x18] sm:$0xf] %v2878
    %2911 = vst [vmem:[#allocation24 + $0x1c] sm:$0xf] %v2879
    %2912 = vst [vmem:[#allocation24 + $0x20] sm:$0xf] %v2880
    %2913 = vst [vmem:[#allocation24 + $0x24] sm:$0xf] %v2881
    %2914 = vst [vmem:[#allocation24 + $0x28] sm:$0xf] %v2882
    %2915 = vst [vmem:[#allocation24 + $0x2c] sm:$0xf] %v2883
    %2916 = vst [vmem:[#allocation24 + $0x30] sm:$0xf] %v2884
    %2917 = vst [vmem:[#allocation24 + $0x34] sm:$0xf] %v2885
    %2918 = vst [vmem:[#allocation24 + $0x38] sm:$0xf] %v2886
    %2919 = vst [vmem:[#allocation24 + $0x3c] sm:$0xf] %v2887
    // Predicated region
    $region106: #{tpu_custom_call.1} parent=1 // pred_check
      _
    $region107: #{tpu_custom_call.1} parent=1 // pred_check_branch
      %2921 = sbr.rel (0) target = $region109
    $region108: #{tpu_custom_call.1} parent=1 // pred_region
      %s2923 = ssub.s32 1024, 1024
      %2924 = vsyncadd [#allocation5], %s2923
      %s2925 = sshll.u32 [#allocation24], 4
      %s2926 = int_to_ptr.vmem [resolvable:$true] %s2925
      %2931 = dma.vmem_to_hbm [thread:$0]  %s2926, 1024, %s13, [#allocation5], 64, 64, 4
    $region109: #{tpu_custom_call.1} parent=1 // pred_fallthru
      _
    // Predicated region
    $region110: #{tpu_custom_call.1} parent=1 // pred_check
      _
    $region111: #{tpu_custom_call.1} parent=1 // pred_check_branch
      %2933 = sbr.rel (0) target = $region113
    $region112: #{tpu_custom_call.1} parent=1 // pred_region
      %2934 = dma.done [#allocation5], 1024
    $region113: #{tpu_custom_call.1} parent=1 // pred_fallthru
      _
    %2935 = vsyncpa [#allocation4], 1
    %2936 = vsyncpa [#allocation7], 1
    %2937 = vsyncpa [#allocation10], 1
    %2938 = vsyncpa [#allocation13], 1
    %2939 = vsyncpa [#allocation16], 1
    %2940 = vsyncpa [#allocation19], 1
    %2941 = vsyncpa [#allocation22], 1
    %2942 = vsyncpa [#allocation5], 1

</llo_original>
